<compile_context>
chip_gen: v6e
topology: v6e:2x2x1
jax: 0.10.0
libtpu: 0.0.40
codegen_flags: <defaults>
</compile_context>

<pallas_src>
import functools
import math

import jax
import jax.numpy as jnp
from jax.experimental import pallas as pl
from jax.experimental.pallas import tpu as pltpu

BN_EPS = 1e-5
LANE = 128


def _vmem_limit_bytes():
    """Per-generation VMEM budget (v5e/v6e: 128 MiB, v7x: 64 MiB per TC)."""
    try:
        cap = int(pltpu.get_tpu_info().vmem_capacity_bytes)
    except Exception:
        cap = 128 * 1024 * 1024
    if cap <= 64 * 1024 * 1024:                       # v7x-class
        return min(int(cap * 0.75), 48 * 1024 * 1024)
    return min(int(cap * 0.8), 100 * 1024 * 1024)     # v5e / v6e


_VMEM_LIMIT = _vmem_limit_bytes()
_PLAN_BUDGET = int(_VMEM_LIMIT * 0.85)    # planning budget for tile derivation


# ----------------------------------------------------------------------------
# Pallas kernel: fused 3x3 same-conv on an H-row tile (+1-row halos),
# 1 or 2 fused inputs, folded BN + optional ReLU.
# ----------------------------------------------------------------------------
def _conv3x3_kernel(*args, n_in, tH, W, relu, h_axis):
    # Inputs (per fused activation i): main rows (1,tH,W,Ci), top halo (1,1,W,Ci),
    # bottom halo (1,1,W,Ci).  Then per-input weights (9,Ci,TCO), scale (1,TCO),
    # bias (1,TCO).  Output (1,tH,W,TCO).  Scratch: per-input padded buffer
    # (tH+2,W+2,Ci) bf16 and a (tH*W,TCO) f32 accumulator.
    x_refs = args[:3 * n_in]
    w_refs = args[3 * n_in:4 * n_in]
    scale_ref = args[4 * n_in]
    bias_ref = args[4 * n_in + 1]
    o_ref = args[4 * n_in + 2]
    pad_refs = args[4 * n_in + 3:5 * n_in + 3]
    acc_ref = args[5 * n_in + 3]

    hi = pl.program_id(h_axis)
    n_h = pl.num_programs(h_axis)
    tco = o_ref.shape[-1]
    M = tH * W

    first = True
    for i in range(n_in):
        mref, tref, bref = x_refs[3 * i:3 * i + 3]
        pref = pad_refs[i]
        cin = mref.shape[-1]
        dt = mref.dtype

        # Fill padded scratch; zero ONLY the 1-pixel border, never the interior.
        pref[:, 0:1, :] = jnp.zeros((tH + 2, 1, cin), dt)            # left pad col
        pref[:, W + 1:W + 2, :] = jnp.zeros((tH + 2, 1, cin), dt)    # right pad col
        top_valid = (hi > 0).astype(dt)                              # 0 on first tile
        bot_valid = (hi < n_h - 1).astype(dt)                        # 0 on last tile
        pref[0:1, 1:W + 1, :] = tref[0] * top_valid                  # top halo row
        pref[tH + 1:tH + 2, 1:W + 1, :] = bref[0] * bot_valid        # bottom halo row
        pref[1:tH + 1, 1:W + 1, :] = mref[0]                         # interior rows

        # 9 shifted MXU matmuls accumulated into a VMEM f32 scratch (no vreg spill).
        for dy in range(3):
            for dx in range(3):
                patch = pref[dy:dy + tH, dx:dx + W, :].reshape(M, cin)
                contrib = jnp.dot(patch, w_refs[i][dy * 3 + dx],
                                  preferred_element_type=jnp.float32)
                if first:
                    acc_ref[...] = contrib
                    first = False
                else:
                    acc_ref[...] += contrib

    y = acc_ref[...] * scale_ref[...] + bias_ref[...]   # folded eval-mode BatchNorm
    if relu:
        y = jnp.maximum(y, 0.0)
    o_ref[...] = y.reshape(1, tH, W, tco).astype(o_ref.dtype)


def _pick_tile_h(H, W, cins, tco, max_th=None):
    """Largest divisor of H whose per-grid-step VMEM estimate fits the budget."""
    cap = H if max_th is None else min(H, max_th)

    def cost(th):
        act = sum((th + 2) * W * c * 2 * 2 for c in cins)        # main+halos, 2x buffered
        wts = sum(9 * c * tco * 2 * 2 for c in cins)             # weights, 2x buffered
        out = th * W * tco * 2 * 2                               # output, 2x buffered
        scr = sum((th + 2) * (W + 2) * c * 2 for c in cins)      # padded scratch
        acc = th * W * tco * 4                                   # f32 accumulator
        return act + wts + out + scr + acc

    best = 1
    for th in range(1, cap + 1):
        if H % th == 0 and cost(th) <= _PLAN_BUDGET:
            best = th
    return best


def conv3x3_bn_act(xs, layer, relu=True, max_th=None, force_weights_resident=None):
    """Fused 3x3 'same' conv (+BN+ReLU).  xs: NHWC bf16 array or [a, b] (fused concat).

    Returns a lane-dense (physical, >=128-channel) NHWC bf16 tensor.
    """
    xs = list(xs) if isinstance(xs, (list, tuple)) else [xs]
    n_in = len(xs)
    N, H, W, _ = (int(s) for s in xs[0].shape)
    cins = [int(x.shape[-1]) for x in xs]
    for w, c in zip(layer["ws"], cins):
        assert int(w.shape[1]) == c, "layer wiring mismatch"

    cout_phys = int(layer["scale"].shape[-1])
    tco = 256 if cout_phys % 256 == 0 else cout_phys
    n_co = cout_phys // tco

    tH = _pick_tile_h(H, W, cins, tco, max_th=max_th)
    n_h = H // tH

    # Grid-axis order: keep the larger operand resident across the inner axes.
    weight_bytes = sum(9 * c * tco * 2 for c in cins)
    act_bytes = sum((tH + 2) * W * c * 2 for c in cins)
    if force_weights_resident is None:
        weights_resident = weight_bytes >= act_bytes
    else:
        weights_resident = force_weights_resident

    if weights_resident:
        grid = (n_co, N, n_h)      # weights constant across inner (N, n_h) axes
        h_axis = 2

        def im_main(co, n, hi): return (n, hi, 0, 0)
        def im_top(co, n, hi): return (n, jnp.maximum(hi * tH - 1, 0), 0, 0)
        def im_bot(co, n, hi): return (n, jnp.minimum((hi + 1) * tH, H - 1), 0, 0)
        def im_w(co, n, hi): return (0, 0, co)
        def im_sb(co, n, hi): return (0, co)
        def im_out(co, n, hi): return (n, hi, 0, co)
    else:
        grid = (N, n_h, n_co)      # activations constant across inner co axis
        h_axis = 1

        def im_main(n, hi, co): return (n, hi, 0, 0)
        def im_top(n, hi, co): return (n, jnp.maximum(hi * tH - 1, 0), 0, 0)
        def im_bot(n, hi, co): return (n, jnp.minimum((hi + 1) * tH, H - 1), 0, 0)
        def im_w(n, hi, co): return (0, 0, co)
        def im_sb(n, hi, co): return (0, co)
        def im_out(n, hi, co): return (n, hi, 0, co)

    operands, in_specs = [], []
    for x, c in zip(xs, cins):
        operands += [x, x, x]      # main rows + 1-row top/bottom halo views
        in_specs += [pl.BlockSpec((1, tH, W, c), im_main),
                     pl.BlockSpec((1, 1, W, c), im_top),
                     pl.BlockSpec((1, 1, W, c), im_bot)]
    for w, c in zip(layer["ws"], cins):
        operands.append(w)
        in_specs.append(pl.BlockSpec((9, c, tco), im_w))
    operands += [layer["scale"], layer["bias"]]
    in_specs += [pl.BlockSpec((1, tco), im_sb), pl.BlockSpec((1, tco), im_sb)]

    kern = functools.partial(_conv3x3_kernel, n_in=n_in, tH=tH, W=W,
                             relu=relu, h_axis=h_axis)
    out = pl.pallas_call(
        kern,
        out_shape=jax.ShapeDtypeStruct((N, H, W, cout_phys), jnp.bfloat16),
        grid=grid,
        in_specs=in_specs,
        out_specs=pl.BlockSpec((1, tH, W, tco), im_out),
        scratch_shapes=[pltpu.VMEM((tH + 2, W + 2, c), jnp.bfloat16) for c in cins]
                       + [pltpu.VMEM((tH * W, tco), jnp.float32)],
        compiler_params=pltpu.CompilerParams(
            dimension_semantics=("parallel", "parallel", "parallel"),
            vmem_limit_bytes=_VMEM_LIMIT,
        ),
    )(*operands)
    return out


# ----------------------------------------------------------------------------
# Pooling glue (plain JAX).
# TODO(synk): MaxPool2d(return_indices=True)/MaxUnpool2d have no direct Pallas
#             equivalent; indices are represented as a boolean one-hot argmax
#             mask, and the unpool is (for now) done in plain JAX rather than
#             fused into the decoder conv kernel.
# ----------------------------------------------------------------------------
def maxpool2x2_with_mask(x):
    N, H, W, C = x.shape
    xr = x.reshape(N, H // 2, 2, W // 2, 2, C)
    m = xr.max(axis=(2, 4))
    win = xr.transpose(0, 1, 3, 2, 4, 5).reshape(N, H // 2, W // 2, 4, C)
    eq = win == m[:, :, :, None, :]
    first = jnp.logical_and(eq, jnp.cumsum(eq.astype(jnp.int32), axis=3) == 1)
    mask = first.reshape(N, H // 2, W // 2, 2, 2, C)
    mask = mask.transpose(0, 1, 3, 2, 4, 5).reshape(N, H, W, C)
    return m, mask


def maxunpool2x2(x, mask):
    up = jnp.repeat(jnp.repeat(x, 2, axis=1), 2, axis=2)
    return jnp.where(mask, up, jnp.zeros((), up.dtype))


# ----------------------------------------------------------------------------
# Deterministic synthetic parameters (conv weight + bias, BN folded, bf16 weights).
# Padded output channels carry zero weights / scale=1 / bias=0, so lane-padded
# activation channels stay exactly zero through the whole network.
# ----------------------------------------------------------------------------
def _phys(c):
    return ((max(c, LANE) + LANE - 1) // LANE) * LANE


def _make_layer(key, in_specs, cout, with_bn=True):
    """in_specs: tuple of (cin_logical, cin_physical) per fused input."""
    cout_phys = _phys(cout)
    keys = jax.random.split(key, len(in_specs) + 3)
    fan_in = 9 * sum(cl for cl, _ in in_specs)
    ws = []
    for i, (cl, cp) in enumerate(in_specs):
        w = jax.random.normal(keys[i], (9, cl, cout), jnp.float32) / math.sqrt(fan_in)
        w = jnp.pad(w, ((0, 0), (0, cp - cl), (0, cout_phys - cout)))
        ws.append(w.astype(jnp.bfloat16))
    b = 0.01 * jax.random.normal(keys[-3], (cout,), jnp.float32)
    if with_bn:
        gamma = 1.0 + 0.1 * jax.random.normal(keys[-2], (cout,), jnp.float32)
        beta = 0.01 * jax.random.normal(keys[-1], (cout,), jnp.float32)
        mean = jnp.zeros((cout,), jnp.float32)
        var = jnp.ones((cout,), jnp.float32)
        s = gamma * jax.lax.rsqrt(var + BN_EPS)
        scale, bias = s, (b - mean) * s + beta
    else:
        scale, bias = jnp.ones((cout,), jnp.float32), b
    scale = jnp.pad(scale, (0, cout_phys - cout), constant_values=1.0)
    bias = jnp.pad(bias, (0, cout_phys - cout))
    return dict(ws=ws, scale=scale.reshape(1, -1), bias=bias.reshape(1, -1),
                cout=cout, cout_phys=cout_phys)


def _make_block(key, specs, with_bn=True):
    keys = jax.random.split(key, len(specs))
    return [_make_layer(k, ins, co, with_bn) for k, (ins, co) in zip(keys, specs)]


def _run_block(x, layers, relu_flags=None):
    if relu_flags is None:
        relu_flags = [True] * len(layers)
    for p, r in zip(layers, relu_flags):
        x = conv3x3_bn_act(x, p, relu=r)
    return x


# ----------------------------------------------------------------------------
# Self-test: H-tiled + halo + fused-concat kernel vs lax.conv reference,
# for both grid-axis orderings.
# ----------------------------------------------------------------------------
def _reference_conv(xs, layer, relu):
    x = jnp.concatenate([a.astype(jnp.float32) for a in xs], axis=-1)
    w = jnp.concatenate([wi.astype(jnp.float32) for wi in layer["ws"]], axis=1)
    w = w.reshape(3, 3, w.shape[1], w.shape[2])                  # HWIO
    y = jax.lax.conv_general_dilated(
        x, w, window_strides=(1, 1), padding="SAME",
        dimension_numbers=("NHWC", "HWIO", "NHWC"))
    y = y * layer["scale"][0] + layer["bias"][0]
    if relu:
        y = jnp.maximum(y, 0.0)
    return y


def _self_test():
    key = jax.random.PRNGKey(42)
    k1, k2, k3 = jax.random.split(key, 3)
    a = jax.random.normal(k1, (2, 16, 8, 32), jnp.float32).astype(jnp.bfloat16)
    b = jax.random.normal(k2, (2, 16, 8, 16), jnp.float32).astype(jnp.bfloat16)
    layer = _make_layer(k3, ((32, 32), (16, 16)), 5, with_bn=True)
    ref = _reference_conv([a, b], layer, relu=True)
    for resident in (True, False):
        got = conv3x3_bn_act([a, b], layer, relu=True, max_th=4,
                             force_weights_resident=resident).astype(jnp.float32)
        err = float(jnp.max(jnp.abs(got - ref)))
        assert err < 0.1, (
            f"conv3x3 self-test failed (weights_resident={resident}, max_err={err})")


# ----------------------------------------------------------------------------
# vgg_16_ms
# ----------------------------------------------------------------------------
class VGG16MSPallas:
    def __init__(self, input_channel, output_channel, key):
        f = [64, 128, 256, 512, 512]
        P = _phys
        ci = input_channel
        self.output_channel = output_channel
        ks = jax.random.split(key, 16)

        self.conv1 = _make_block(ks[0], [(((ci, ci),), f[0]),
                                         (((f[0], P(f[0])),), f[0])])
        self.conv2 = _make_block(ks[1], [(((f[0], P(f[0])),), f[1]),
                                         (((f[1], P(f[1])),), f[1])])
        self.conv3 = _make_block(ks[2], [(((f[1], P(f[1])),), f[2]),
                                         (((f[2], P(f[2])),), f[2]),
                                         (((f[2], P(f[2])),), f[2])])
        self.conv4 = _make_block(ks[3], [(((f[2], P(f[2])),), f[3]),
                                         (((f[3], P(f[3])),), f[3]),
                                         (((f[3], P(f[3])),), f[3])])
        self.conv5 = _make_block(ks[4], [(((f[3], P(f[3])),), f[4]),
                                         (((f[4], P(f[4])),), f[4]),
                                         (((f[4], P(f[4])),), f[4])])
        self.deconv5 = _make_block(ks[5], [(((f[4], P(f[4])),), f[3]),
                                           (((f[3], P(f[3])),), f[3]),
                                           (((f[3], P(f[3])),), f[3])])
        # first layer of each decoder block consumes the skip-concat as two fused inputs
        self.deconv4 = _make_block(ks[6], [(((f[3], P(f[3])), (f[3], P(f[3]))), f[2]),
                                           (((f[2], P(f[2])),), f[2]),
                                           (((f[2], P(f[2])),), f[2])])
        self.deconv3 = _make_block(ks[7], [(((f[2], P(f[2])), (f[2], P(f[2]))), f[1]),
                                           (((f[1], P(f[1])),), f[1]),
                                           (((f[1], P(f[1])),), f[1])])
        self.deconv2 = _make_block(ks[8], [(((f[1], P(f[1])), (f[1], P(f[1]))), f[0]),
                                           (((f[0], P(f[0])),), f[0])])
        self.deconv1 = (_make_block(ks[9], [(((f[0], P(f[0])), (f[0], P(f[0]))), f[0])])
                        + _make_block(ks[10], [(((f[0], P(f[0])),), output_channel)],
                                      with_bn=False))
        self.deconv5_ms = _make_block(ks[11], [(((f[3], P(f[3])),), 3)], with_bn=False)
        self.deconv4_ms = _make_block(ks[12], [(((f[2], P(f[2])),), 3)], with_bn=False)
        self.deconv3_ms = _make_block(ks[13], [(((f[1], P(f[1])),), 3)], with_bn=False)
        self.deconv2_ms = _make_block(ks[14], [(((f[0], P(f[0])),), 3)], with_bn=False)

        self._forward = jax.jit(self._forward_impl)

    def _forward_impl(self, x_nchw):
        x = jnp.transpose(x_nchw, (0, 2, 3, 1)).astype(jnp.bfloat16)   # NCHW -> NHWC bf16

        f1 = _run_block(x, self.conv1)
        f1p, m1 = maxpool2x2_with_mask(f1)
        f2 = _run_block(f1p, self.conv2)
        f2p, m2 = maxpool2x2_with_mask(f2)
        f3 = _run_block(f2p, self.conv3)
        f3p, m3 = maxpool2x2_with_mask(f3)
        f4 = _run_block(f3p, self.conv4)
        f4p, m4 = maxpool2x2_with_mask(f4)
        f5 = _run_block(f4p, self.conv5)

        d5 = _run_block(f5, self.deconv5)
        # TODO(synk): fuse maxunpool2x2 (2x2 repeat + mask) into the first decoder
        #             conv of each block to kill one full-res HBM round trip/stage.
        d3t = _run_block([maxunpool2x2(d5, m4), f4], self.deconv4)
        d2t = _run_block([maxunpool2x2(d3t, m3), f3], self.deconv3)
        d1t = _run_block([maxunpool2x2(d2t, m2), f2], self.deconv2)
        out_full = _run_block([maxunpool2x2(d1t, m1), f1], self.deconv1,
                              relu_flags=[True, False])

        o5 = _run_block(d5, self.deconv5_ms, relu_flags=[False])
        o4 = _run_block(d3t, self.deconv4_ms, relu_flags=[False])
        o3 = _run_block(d2t, self.deconv3_ms, relu_flags=[False])
        o2 = _run_block(d1t, self.deconv2_ms, relu_flags=[False])

        # physical (lane-padded) channels -> logical channels, NHWC -> NCHW f32
        def finish(t, c):
            return jnp.transpose(t[..., :c], (0, 3, 1, 2)).astype(jnp.float32)

        return (finish(out_full, self.output_channel),
                finish(o2, 3), finish(o3, 3), finish(o4, 3), finish(o5, 3))

    def __call__(self, x_nchw):
        return self._forward(x_nchw)


if __name__ == "__main__":
    _self_test()   # validates H-tiling/halos + fused-concat conv against lax.conv

    key = jax.random.PRNGKey(0)
    pkey, xkey = jax.random.split(key)

    model = VGG16MSPallas(input_channel=3, output_channel=3, key=pkey)
    x = jax.random.normal(xkey, (2, 3, 16, 16), jnp.float32)   # NCHW like PyTorch

    outs = model(x)
    outs = jax.block_until_ready(outs)

    assert outs[0].shape == (2, 3, 16, 16)   # output
    assert outs[1].shape == (2, 3, 8, 8)     # output2
    assert outs[2].shape == (2, 3, 4, 4)     # output3
    assert outs[3].shape == (2, 3, 2, 2)     # output4
    assert outs[4].shape == (2, 3, 1, 1)     # output5
    assert all(bool(jnp.all(jnp.isfinite(o))) for o in outs)

    print("KERNEL_OK")
</pallas_src>

<mosaic_0001>
module attributes {stable_mosaic.version = 11 : i64} {
  func.func @_conv3x3_kernel(%arg0: i32, %arg1: i32, %arg2: i32, %arg3: memref<1x4x8x32xbf16, #tpu.memory_space<vmem>>, %arg4: memref<1x1x8x32xbf16, #tpu.memory_space<vmem>>, %arg5: memref<1x1x8x32xbf16, #tpu.memory_space<vmem>>, %arg6: memref<1x4x8x16xbf16, #tpu.memory_space<vmem>>, %arg7: memref<1x1x8x16xbf16, #tpu.memory_space<vmem>>, %arg8: memref<1x1x8x16xbf16, #tpu.memory_space<vmem>>, %arg9: memref<9x32x128xbf16, #tpu.memory_space<vmem>>, %arg10: memref<9x16x128xbf16, #tpu.memory_space<vmem>>, %arg11: memref<1x128xf32, #tpu.memory_space<vmem>>, %arg12: memref<1x128xf32, #tpu.memory_space<vmem>>, %arg13: memref<1x4x8x128xbf16, #tpu.memory_space<vmem>>, %arg14: memref<6x10x32xbf16, #tpu.memory_space<vmem>>, %arg15: memref<6x10x16xbf16, #tpu.memory_space<vmem>>, %arg16: memref<32x128xf32, #tpu.memory_space<vmem>>) attributes {dimension_semantics = [#tpu.dimension_semantics<parallel>, #tpu.dimension_semantics<parallel>, #tpu.dimension_semantics<parallel>], iteration_bounds = array<i64: 1, 2, 4>, scalar_prefetch = 0 : i64, scratch_operands = 3 : i64, tpu.core_type = #tpu.core_type<tc>, window_params = [{transform_indices = @transform_0, window_bounds = array<i64: 1, 4, 8, 32>}, {transform_indices = @transform_1, window_bounds = array<i64: 1, 1, 8, 32>}, {transform_indices = @transform_2, window_bounds = array<i64: 1, 1, 8, 32>}, {transform_indices = @transform_3, window_bounds = array<i64: 1, 4, 8, 16>}, {transform_indices = @transform_4, window_bounds = array<i64: 1, 1, 8, 16>}, {transform_indices = @transform_5, window_bounds = array<i64: 1, 1, 8, 16>}, {transform_indices = @transform_6, window_bounds = array<i64: 9, 32, 128>}, {transform_indices = @transform_7, window_bounds = array<i64: 9, 16, 128>}, {transform_indices = @transform_8, window_bounds = array<i64: 1, 128>}, {transform_indices = @transform_9, window_bounds = array<i64: 1, 128>}, {transform_indices = @transform_10, window_bounds = array<i64: 1, 4, 8, 128>}]} {
    %cst = arith.constant 0.000000e+00 : bf16
    %0 = vector.broadcast %cst : bf16 to vector<6x1x32xbf16>
    %c0 = arith.constant 0 : index
    %c0_0 = arith.constant 0 : index
    %c0_1 = arith.constant 0 : index
    %1 = vector.load %arg14[%c0, %c0_0, %c0_1] : memref<6x10x32xbf16, #tpu.memory_space<vmem>>, vector<6x1x32xbf16>
    tpu.vector_store %arg14[%c0, %c0_0, %c0_1], %0 {strides = array<i32>} : memref<6x10x32xbf16, #tpu.memory_space<vmem>>, vector<6x1x32xbf16>,
    %cst_2 = arith.constant 0.000000e+00 : bf16
    %2 = vector.broadcast %cst_2 : bf16 to vector<6x1x32xbf16>
    %c0_3 = arith.constant 0 : index
    %c9 = arith.constant 9 : index
    %c0_4 = arith.constant 0 : index
    %3 = vector.load %arg14[%c0_3, %c9, %c0_4] : memref<6x10x32xbf16, #tpu.memory_space<vmem>>, vector<6x1x32xbf16>
    tpu.vector_store %arg14[%c0_3, %c9, %c0_4], %2 {strides = array<i32>} : memref<6x10x32xbf16, #tpu.memory_space<vmem>>, vector<6x1x32xbf16>,
    %c0_i32 = arith.constant 0 : i32
    %4 = arith.cmpi sgt, %arg2, %c0_i32 : i32
    %5 = arith.extui %4 : i1 to i32
    %6 = arith.sitofp %5 : i32 to f32
    %7 = arith.truncf %6 : f32 to bf16
    %c3_i32 = arith.constant 3 : i32
    %8 = arith.cmpi slt, %arg2, %c3_i32 : i32
    %9 = arith.extui %8 : i1 to i32
    %10 = arith.sitofp %9 : i32 to f32
    %11 = arith.truncf %10 : f32 to bf16
    %c0_5 = arith.constant 0 : index
    %c0_6 = arith.constant 0 : index
    %c0_7 = arith.constant 0 : index
    %c0_8 = arith.constant 0 : index
    %12 = vector.load %arg4[%c0_5, %c0_6, %c0_7, %c0_8] : memref<1x1x8x32xbf16, #tpu.memory_space<vmem>>, vector<1x1x8x32xbf16>
    %13 = vector.shape_cast %12 : vector<1x1x8x32xbf16> to vector<1x8x32xbf16>
    %14 = vector.broadcast %7 : bf16 to vector<1x8x32xbf16>
    %15 = arith.mulf %13, %14 : vector<1x8x32xbf16>
    %c0_9 = arith.constant 0 : index
    %c1 = arith.constant 1 : index
    %c0_10 = arith.constant 0 : index
    %16 = vector.load %arg14[%c0_9, %c1, %c0_10] : memref<6x10x32xbf16, #tpu.memory_space<vmem>>, vector<1x8x32xbf16>
    tpu.vector_store %arg14[%c0_9, %c1, %c0_10], %15 {strides = array<i32>} : memref<6x10x32xbf16, #tpu.memory_space<vmem>>, vector<1x8x32xbf16>,
    %c0_11 = arith.constant 0 : index
    %c0_12 = arith.constant 0 : index
    %c0_13 = arith.constant 0 : index
    %c0_14 = arith.constant 0 : index
    %17 = vector.load %arg5[%c0_11, %c0_12, %c0_13, %c0_14] : memref<1x1x8x32xbf16, #tpu.memory_space<vmem>>, vector<1x1x8x32xbf16>
    %18 = vector.shape_cast %17 : vector<1x1x8x32xbf16> to vector<1x8x32xbf16>
    %19 = vector.broadcast %11 : bf16 to vector<1x8x32xbf16>
    %20 = arith.mulf %18, %19 : vector<1x8x32xbf16>
    %c5 = arith.constant 5 : index
    %c1_15 = arith.constant 1 : index
    %c0_16 = arith.constant 0 : index
    %21 = vector.load %arg14[%c5, %c1_15, %c0_16] : memref<6x10x32xbf16, #tpu.memory_space<vmem>>, vector<1x8x32xbf16>
    tpu.vector_store %arg14[%c5, %c1_15, %c0_16], %20 {strides = array<i32>} : memref<6x10x32xbf16, #tpu.memory_space<vmem>>, vector<1x8x32xbf16>,
    %c0_17 = arith.constant 0 : index
    %c0_18 = arith.constant 0 : index
    %c0_19 = arith.constant 0 : index
    %c0_20 = arith.constant 0 : index
    %22 = vector.load %arg3[%c0_17, %c0_18, %c0_19, %c0_20] : memref<1x4x8x32xbf16, #tpu.memory_space<vmem>>, vector<1x4x8x32xbf16>
    %23 = vector.shape_cast %22 : vector<1x4x8x32xbf16> to vector<4x8x32xbf16>
    %c1_21 = arith.constant 1 : index
    %c1_22 = arith.constant 1 : index
    %c0_23 = arith.constant 0 : index
    %24 = vector.load %arg14[%c1_21, %c1_22, %c0_23] : memref<6x10x32xbf16, #tpu.memory_space<vmem>>, vector<4x8x32xbf16>
    tpu.vector_store %arg14[%c1_21, %c1_22, %c0_23], %23 {strides = array<i32>} : memref<6x10x32xbf16, #tpu.memory_space<vmem>>, vector<4x8x32xbf16>,
    %c0_24 = arith.constant 0 : index
    %c0_25 = arith.constant 0 : index
    %c0_26 = arith.constant 0 : index
    %25 = vector.load %arg14[%c0_24, %c0_25, %c0_26] : memref<6x10x32xbf16, #tpu.memory_space<vmem>>, vector<4x8x32xbf16>
    %26 = vector.shape_cast %25 : vector<4x8x32xbf16> to vector<32x32xbf16>
    %c0_27 = arith.constant 0 : index
    %c0_28 = arith.constant 0 : index
    %c0_29 = arith.constant 0 : index
    %27 = vector.load %arg9[%c0_27, %c0_28, %c0_29] : memref<9x32x128xbf16, #tpu.memory_space<vmem>>, vector<1x32x128xbf16>
    %28 = vector.shape_cast %27 : vector<1x32x128xbf16> to vector<32x128xbf16>
    %cst_30 = arith.constant dense<0.000000e+00> : vector<32x128xf32>
    %29 = tpu.matmul %26, %28, %cst_30 {dimension_numbers = #tpu.dot_dimension_numbers<[1], [0], [0], [1], [0, 0, 1, 1], [], []>} : vector<32x32xbf16>, vector<32x128xbf16>, vector<32x128xf32> -> vector<32x128xf32>
    %c0_31 = arith.constant 0 : index
    %c0_32 = arith.constant 0 : index
    %30 = vector.load %arg16[%c0_31, %c0_32] : memref<32x128xf32, #tpu.memory_space<vmem>>, vector<32x128xf32>
    tpu.vector_store %arg16[%c0_31, %c0_32], %29 {strides = array<i32>} : memref<32x128xf32, #tpu.memory_space<vmem>>, vector<32x128xf32>,
    %c0_33 = arith.constant 0 : index
    %c1_34 = arith.constant 1 : index
    %c0_35 = arith.constant 0 : index
    %31 = vector.load %arg14[%c0_33, %c1_34, %c0_35] : memref<6x10x32xbf16, #tpu.memory_space<vmem>>, vector<4x8x32xbf16>
    %32 = vector.shape_cast %31 : vector<4x8x32xbf16> to vector<32x32xbf16>
    %c1_36 = arith.constant 1 : index
    %c0_37 = arith.constant 0 : index
    %c0_38 = arith.constant 0 : index
    %33 = vector.load %arg9[%c1_36, %c0_37, %c0_38] : memref<9x32x128xbf16, #tpu.memory_space<vmem>>, vector<1x32x128xbf16>
    %34 = vector.shape_cast %33 : vector<1x32x128xbf16> to vector<32x128xbf16>
    %cst_39 = arith.constant dense<0.000000e+00> : vector<32x128xf32>
    %35 = tpu.matmul %32, %34, %cst_39 {dimension_numbers = #tpu.dot_dimension_numbers<[1], [0], [0], [1], [0, 0, 1, 1], [], []>} : vector<32x32xbf16>, vector<32x128xbf16>, vector<32x128xf32> -> vector<32x128xf32>
    %c0_40 = arith.constant 0 : index
    %c0_41 = arith.constant 0 : index
    %36 = vector.load %arg16[%c0_40, %c0_41] : memref<32x128xf32, #tpu.memory_space<vmem>>, vector<32x128xf32>
    %37 = arith.addf %36, %35 : vector<32x128xf32>
    %c0_42 = arith.constant 0 : index
    %c0_43 = arith.constant 0 : index
    %38 = vector.load %arg16[%c0_42, %c0_43] : memref<32x128xf32, #tpu.memory_space<vmem>>, vector<32x128xf32>
    tpu.vector_store %arg16[%c0_42, %c0_43], %37 {strides = array<i32>} : memref<32x128xf32, #tpu.memory_space<vmem>>, vector<32x128xf32>,
    %c0_44 = arith.constant 0 : index
    %c2 = arith.constant 2 : index
    %c0_45 = arith.constant 0 : index
    %39 = vector.load %arg14[%c0_44, %c2, %c0_45] : memref<6x10x32xbf16, #tpu.memory_space<vmem>>, vector<4x8x32xbf16>
    %40 = vector.shape_cast %39 : vector<4x8x32xbf16> to vector<32x32xbf16>
    %c2_46 = arith.constant 2 : index
    %c0_47 = arith.constant 0 : index
    %c0_48 = arith.constant 0 : index
    %41 = vector.load %arg9[%c2_46, %c0_47, %c0_48] : memref<9x32x128xbf16, #tpu.memory_space<vmem>>, vector<1x32x128xbf16>
    %42 = vector.shape_cast %41 : vector<1x32x128xbf16> to vector<32x128xbf16>
    %cst_49 = arith.constant dense<0.000000e+00> : vector<32x128xf32>
    %43 = tpu.matmul %40, %42, %cst_49 {dimension_numbers = #tpu.dot_dimension_numbers<[1], [0], [0], [1], [0, 0, 1, 1], [], []>} : vector<32x32xbf16>, vector<32x128xbf16>, vector<32x128xf32> -> vector<32x128xf32>
    %c0_50 = arith.constant 0 : index
    %c0_51 = arith.constant 0 : index
    %44 = vector.load %arg16[%c0_50, %c0_51] : memref<32x128xf32, #tpu.memory_space<vmem>>, vector<32x128xf32>
    %45 = arith.addf %44, %43 : vector<32x128xf32>
    %c0_52 = arith.constant 0 : index
    %c0_53 = arith.constant 0 : index
    %46 = vector.load %arg16[%c0_52, %c0_53] : memref<32x128xf32, #tpu.memory_space<vmem>>, vector<32x128xf32>
    tpu.vector_store %arg16[%c0_52, %c0_53], %45 {strides = array<i32>} : memref<32x128xf32, #tpu.memory_space<vmem>>, vector<32x128xf32>,
    %c1_54 = arith.constant 1 : index
    %c0_55 = arith.constant 0 : index
    %c0_56 = arith.constant 0 : index
    %47 = vector.load %arg14[%c1_54, %c0_55, %c0_56] : memref<6x10x32xbf16, #tpu.memory_space<vmem>>, vector<4x8x32xbf16>
    %48 = vector.shape_cast %47 : vector<4x8x32xbf16> to vector<32x32xbf16>
    %c3 = arith.constant 3 : index
    %c0_57 = arith.constant 0 : index
    %c0_58 = arith.constant 0 : index
    %49 = vector.load %arg9[%c3, %c0_57, %c0_58] : memref<9x32x128xbf16, #tpu.memory_space<vmem>>, vector<1x32x128xbf16>
    %50 = vector.shape_cast %49 : vector<1x32x128xbf16> to vector<32x128xbf16>
    %cst_59 = arith.constant dense<0.000000e+00> : vector<32x128xf32>
    %51 = tpu.matmul %48, %50, %cst_59 {dimension_numbers = #tpu.dot_dimension_numbers<[1], [0], [0], [1], [0, 0, 1, 1], [], []>} : vector<32x32xbf16>, vector<32x128xbf16>, vector<32x128xf32> -> vector<32x128xf32>
    %c0_60 = arith.constant 0 : index
    %c0_61 = arith.constant 0 : index
    %52 = vector.load %arg16[%c0_60, %c0_61] : memref<32x128xf32, #tpu.memory_space<vmem>>, vector<32x128xf32>
    %53 = arith.addf %52, %51 : vector<32x128xf32>
    %c0_62 = arith.constant 0 : index
    %c0_63 = arith.constant 0 : index
    %54 = vector.load %arg16[%c0_62, %c0_63] : memref<32x128xf32, #tpu.memory_space<vmem>>, vector<32x128xf32>
    tpu.vector_store %arg16[%c0_62, %c0_63], %53 {strides = array<i32>} : memref<32x128xf32, #tpu.memory_space<vmem>>, vector<32x128xf32>,
    %c1_64 = arith.constant 1 : index
    %c1_65 = arith.constant 1 : index
    %c0_66 = arith.constant 0 : index
    %55 = vector.load %arg14[%c1_64, %c1_65, %c0_66] : memref<6x10x32xbf16, #tpu.memory_space<vmem>>, vector<4x8x32xbf16>
    %56 = vector.shape_cast %55 : vector<4x8x32xbf16> to vector<32x32xbf16>
    %c4 = arith.constant 4 : index
    %c0_67 = arith.constant 0 : index
    %c0_68 = arith.constant 0 : index
    %57 = vector.load %arg9[%c4, %c0_67, %c0_68] : memref<9x32x128xbf16, #tpu.memory_space<vmem>>, vector<1x32x128xbf16>
    %58 = vector.shape_cast %57 : vector<1x32x128xbf16> to vector<32x128xbf16>
    %cst_69 = arith.constant dense<0.000000e+00> : vector<32x128xf32>
    %59 = tpu.matmul %56, %58, %cst_69 {dimension_numbers = #tpu.dot_dimension_numbers<[1], [0], [0], [1], [0, 0, 1, 1], [], []>} : vector<32x32xbf16>, vector<32x128xbf16>, vector<32x128xf32> -> vector<32x128xf32>
    %c0_70 = arith.constant 0 : index
    %c0_71 = arith.constant 0 : index
    %60 = vector.load %arg16[%c0_70, %c0_71] : memref<32x128xf32, #tpu.memory_space<vmem>>, vector<32x128xf32>
    %61 = arith.addf %60, %59 : vector<32x128xf32>
    %c0_72 = arith.constant 0 : index
    %c0_73 = arith.constant 0 : index
    %62 = vector.load %arg16[%c0_72, %c0_73] : memref<32x128xf32, #tpu.memory_space<vmem>>, vector<32x128xf32>
    tpu.vector_store %arg16[%c0_72, %c0_73], %61 {strides = array<i32>} : memref<32x128xf32, #tpu.memory_space<vmem>>, vector<32x128xf32>,
    %c1_74 = arith.constant 1 : index
    %c2_75 = arith.constant 2 : index
    %c0_76 = arith.constant 0 : index
    %63 = vector.load %arg14[%c1_74, %c2_75, %c0_76] : memref<6x10x32xbf16, #tpu.memory_space<vmem>>, vector<4x8x32xbf16>
    %64 = vector.shape_cast %63 : vector<4x8x32xbf16> to vector<32x32xbf16>
    %c5_77 = arith.constant 5 : index
    %c0_78 = arith.constant 0 : index
    %c0_79 = arith.constant 0 : index
    %65 = vector.load %arg9[%c5_77, %c0_78, %c0_79] : memref<9x32x128xbf16, #tpu.memory_space<vmem>>, vector<1x32x128xbf16>
    %66 = vector.shape_cast %65 : vector<1x32x128xbf16> to vector<32x128xbf16>
    %cst_80 = arith.constant dense<0.000000e+00> : vector<32x128xf32>
    %67 = tpu.matmul %64, %66, %cst_80 {dimension_numbers = #tpu.dot_dimension_numbers<[1], [0], [0], [1], [0, 0, 1, 1], [], []>} : vector<32x32xbf16>, vector<32x128xbf16>, vector<32x128xf32> -> vector<32x128xf32>
    %c0_81 = arith.constant 0 : index
    %c0_82 = arith.constant 0 : index
    %68 = vector.load %arg16[%c0_81, %c0_82] : memref<32x128xf32, #tpu.memory_space<vmem>>, vector<32x128xf32>
    %69 = arith.addf %68, %67 : vector<32x128xf32>
    %c0_83 = arith.constant 0 : index
    %c0_84 = arith.constant 0 : index
    %70 = vector.load %arg16[%c0_83, %c0_84] : memref<32x128xf32, #tpu.memory_space<vmem>>, vector<32x128xf32>
    tpu.vector_store %arg16[%c0_83, %c0_84], %69 {strides = array<i32>} : memref<32x128xf32, #tpu.memory_space<vmem>>, vector<32x128xf32>,
    %c2_85 = arith.constant 2 : index
    %c0_86 = arith.constant 0 : index
    %c0_87 = arith.constant 0 : index
    %71 = vector.load %arg14[%c2_85, %c0_86, %c0_87] : memref<6x10x32xbf16, #tpu.memory_space<vmem>>, vector<4x8x32xbf16>
    %72 = vector.shape_cast %71 : vector<4x8x32xbf16> to vector<32x32xbf16>
    %c6 = arith.constant 6 : index
    %c0_88 = arith.constant 0 : index
    %c0_89 = arith.constant 0 : index
    %73 = vector.load %arg9[%c6, %c0_88, %c0_89] : memref<9x32x128xbf16, #tpu.memory_space<vmem>>, vector<1x32x128xbf16>
    %74 = vector.shape_cast %73 : vector<1x32x128xbf16> to vector<32x128xbf16>
    %cst_90 = arith.constant dense<0.000000e+00> : vector<32x128xf32>
    %75 = tpu.matmul %72, %74, %cst_90 {dimension_numbers = #tpu.dot_dimension_numbers<[1], [0], [0], [1], [0, 0, 1, 1], [], []>} : vector<32x32xbf16>, vector<32x128xbf16>, vector<32x128xf32> -> vector<32x128xf32>
    %c0_91 = arith.constant 0 : index
    %c0_92 = arith.constant 0 : index
    %76 = vector.load %arg16[%c0_91, %c0_92] : memref<32x128xf32, #tpu.memory_space<vmem>>, vector<32x128xf32>
    %77 = arith.addf %76, %75 : vector<32x128xf32>
    %c0_93 = arith.constant 0 : index
    %c0_94 = arith.constant 0 : index
    %78 = vector.load %arg16[%c0_93, %c0_94] : memref<32x128xf32, #tpu.memory_space<vmem>>, vector<32x128xf32>
    tpu.vector_store %arg16[%c0_93, %c0_94], %77 {strides = array<i32>} : memref<32x128xf32, #tpu.memory_space<vmem>>, vector<32x128xf32>,
    %c2_95 = arith.constant 2 : index
    %c1_96 = arith.constant 1 : index
    %c0_97 = arith.constant 0 : index
    %79 = vector.load %arg14[%c2_95, %c1_96, %c0_97] : memref<6x10x32xbf16, #tpu.memory_space<vmem>>, vector<4x8x32xbf16>
    %80 = vector.shape_cast %79 : vector<4x8x32xbf16> to vector<32x32xbf16>
    %c7 = arith.constant 7 : index
    %c0_98 = arith.constant 0 : index
    %c0_99 = arith.constant 0 : index
    %81 = vector.load %arg9[%c7, %c0_98, %c0_99] : memref<9x32x128xbf16, #tpu.memory_space<vmem>>, vector<1x32x128xbf16>
    %82 = vector.shape_cast %81 : vector<1x32x128xbf16> to vector<32x128xbf16>
    %cst_100 = arith.constant dense<0.000000e+00> : vector<32x128xf32>
    %83 = tpu.matmul %80, %82, %cst_100 {dimension_numbers = #tpu.dot_dimension_numbers<[1], [0], [0], [1], [0, 0, 1, 1], [], []>} : vector<32x32xbf16>, vector<32x128xbf16>, vector<32x128xf32> -> vector<32x128xf32>
    %c0_101 = arith.constant 0 : index
    %c0_102 = arith.constant 0 : index
    %84 = vector.load %arg16[%c0_101, %c0_102] : memref<32x128xf32, #tpu.memory_space<vmem>>, vector<32x128xf32>
    %85 = arith.addf %84, %83 : vector<32x128xf32>
    %c0_103 = arith.constant 0 : index
    %c0_104 = arith.constant 0 : index
    %86 = vector.load %arg16[%c0_103, %c0_104] : memref<32x128xf32, #tpu.memory_space<vmem>>, vector<32x128xf32>
    tpu.vector_store %arg16[%c0_103, %c0_104], %85 {strides = array<i32>} : memref<32x128xf32, #tpu.memory_space<vmem>>, vector<32x128xf32>,
    %c2_105 = arith.constant 2 : index
    %c2_106 = arith.constant 2 : index
    %c0_107 = arith.constant 0 : index
    %87 = vector.load %arg14[%c2_105, %c2_106, %c0_107] : memref<6x10x32xbf16, #tpu.memory_space<vmem>>, vector<4x8x32xbf16>
    %88 = vector.shape_cast %87 : vector<4x8x32xbf16> to vector<32x32xbf16>
    %c8 = arith.constant 8 : index
    %c0_108 = arith.constant 0 : index
    %c0_109 = arith.constant 0 : index
    %89 = vector.load %arg9[%c8, %c0_108, %c0_109] : memref<9x32x128xbf16, #tpu.memory_space<vmem>>, vector<1x32x128xbf16>
    %90 = vector.shape_cast %89 : vector<1x32x128xbf16> to vector<32x128xbf16>
    %cst_110 = arith.constant dense<0.000000e+00> : vector<32x128xf32>
    %91 = tpu.matmul %88, %90, %cst_110 {dimension_numbers = #tpu.dot_dimension_numbers<[1], [0], [0], [1], [0, 0, 1, 1], [], []>} : vector<32x32xbf16>, vector<32x128xbf16>, vector<32x128xf32> -> vector<32x128xf32>
    %c0_111 = arith.constant 0 : index
    %c0_112 = arith.constant 0 : index
    %92 = vector.load %arg16[%c0_111, %c0_112] : memref<32x128xf32, #tpu.memory_space<vmem>>, vector<32x128xf32>
    %93 = arith.addf %92, %91 : vector<32x128xf32>
    %c0_113 = arith.constant 0 : index
    %c0_114 = arith.constant 0 : index
    %94 = vector.load %arg16[%c0_113, %c0_114] : memref<32x128xf32, #tpu.memory_space<vmem>>, vector<32x128xf32>
    tpu.vector_store %arg16[%c0_113, %c0_114], %93 {strides = array<i32>} : memref<32x128xf32, #tpu.memory_space<vmem>>, vector<32x128xf32>,
    %cst_115 = arith.constant 0.000000e+00 : bf16
    %95 = vector.broadcast %cst_115 : bf16 to vector<6x1x16xbf16>
    %c0_116 = arith.constant 0 : index
    %c0_117 = arith.constant 0 : index
    %c0_118 = arith.constant 0 : index
    %96 = vector.load %arg15[%c0_116, %c0_117, %c0_118] : memref<6x10x16xbf16, #tpu.memory_space<vmem>>, vector<6x1x16xbf16>
    tpu.vector_store %arg15[%c0_116, %c0_117, %c0_118], %95 {strides = array<i32>} : memref<6x10x16xbf16, #tpu.memory_space<vmem>>, vector<6x1x16xbf16>,
    %cst_119 = arith.constant 0.000000e+00 : bf16
    %97 = vector.broadcast %cst_119 : bf16 to vector<6x1x16xbf16>
    %c0_120 = arith.constant 0 : index
    %c9_121 = arith.constant 9 : index
    %c0_122 = arith.constant 0 : index
    %98 = vector.load %arg15[%c0_120, %c9_121, %c0_122] : memref<6x10x16xbf16, #tpu.memory_space<vmem>>, vector<6x1x16xbf16>
    tpu.vector_store %arg15[%c0_120, %c9_121, %c0_122], %97 {strides = array<i32>} : memref<6x10x16xbf16, #tpu.memory_space<vmem>>, vector<6x1x16xbf16>,
    %c0_i32_123 = arith.constant 0 : i32
    %99 = arith.cmpi sgt, %arg2, %c0_i32_123 : i32
    %100 = arith.extui %99 : i1 to i32
    %101 = arith.sitofp %100 : i32 to f32
    %102 = arith.truncf %101 : f32 to bf16
    %c3_i32_124 = arith.constant 3 : i32
    %103 = arith.cmpi slt, %arg2, %c3_i32_124 : i32
    %104 = arith.extui %103 : i1 to i32
    %105 = arith.sitofp %104 : i32 to f32
    %106 = arith.truncf %105 : f32 to bf16
    %c0_125 = arith.constant 0 : index
    %c0_126 = arith.constant 0 : index
    %c0_127 = arith.constant 0 : index
    %c0_128 = arith.constant 0 : index
    %107 = vector.load %arg7[%c0_125, %c0_126, %c0_127, %c0_128] : memref<1x1x8x16xbf16, #tpu.memory_space<vmem>>, vector<1x1x8x16xbf16>
    %108 = vector.shape_cast %107 : vector<1x1x8x16xbf16> to vector<1x8x16xbf16>
    %109 = vector.broadcast %102 : bf16 to vector<1x8x16xbf16>
    %110 = arith.mulf %108, %109 : vector<1x8x16xbf16>
    %c0_129 = arith.constant 0 : index
    %c1_130 = arith.constant 1 : index
    %c0_131 = arith.constant 0 : index
    %111 = vector.load %arg15[%c0_129, %c1_130, %c0_131] : memref<6x10x16xbf16, #tpu.memory_space<vmem>>, vector<1x8x16xbf16>
    tpu.vector_store %arg15[%c0_129, %c1_130, %c0_131], %110 {strides = array<i32>} : memref<6x10x16xbf16, #tpu.memory_space<vmem>>, vector<1x8x16xbf16>,
    %c0_132 = arith.constant 0 : index
    %c0_133 = arith.constant 0 : index
    %c0_134 = arith.constant 0 : index
    %c0_135 = arith.constant 0 : index
    %112 = vector.load %arg8[%c0_132, %c0_133, %c0_134, %c0_135] : memref<1x1x8x16xbf16, #tpu.memory_space<vmem>>, vector<1x1x8x16xbf16>
    %113 = vector.shape_cast %112 : vector<1x1x8x16xbf16> to vector<1x8x16xbf16>
    %114 = vector.broadcast %106 : bf16 to vector<1x8x16xbf16>
    %115 = arith.mulf %113, %114 : vector<1x8x16xbf16>
    %c5_136 = arith.constant 5 : index
    %c1_137 = arith.constant 1 : index
    %c0_138 = arith.constant 0 : index
    %116 = vector.load %arg15[%c5_136, %c1_137, %c0_138] : memref<6x10x16xbf16, #tpu.memory_space<vmem>>, vector<1x8x16xbf16>
    tpu.vector_store %arg15[%c5_136, %c1_137, %c0_138], %115 {strides = array<i32>} : memref<6x10x16xbf16, #tpu.memory_space<vmem>>, vector<1x8x16xbf16>,
    %c0_139 = arith.constant 0 : index
    %c0_140 = arith.constant 0 : index
    %c0_141 = arith.constant 0 : index
    %c0_142 = arith.constant 0 : index
    %117 = vector.load %arg6[%c0_139, %c0_140, %c0_141, %c0_142] : memref<1x4x8x16xbf16, #tpu.memory_space<vmem>>, vector<1x4x8x16xbf16>
    %118 = vector.shape_cast %117 : vector<1x4x8x16xbf16> to vector<4x8x16xbf16>
    %c1_143 = arith.constant 1 : index
    %c1_144 = arith.constant 1 : index
    %c0_145 = arith.constant 0 : index
    %119 = vector.load %arg15[%c1_143, %c1_144, %c0_145] : memref<6x10x16xbf16, #tpu.memory_space<vmem>>, vector<4x8x16xbf16>
    tpu.vector_store %arg15[%c1_143, %c1_144, %c0_145], %118 {strides = array<i32>} : memref<6x10x16xbf16, #tpu.memory_space<vmem>>, vector<4x8x16xbf16>,
    %c0_146 = arith.constant 0 : index
    %c0_147 = arith.constant 0 : index
    %c0_148 = arith.constant 0 : index
    %120 = vector.load %arg15[%c0_146, %c0_147, %c0_148] : memref<6x10x16xbf16, #tpu.memory_space<vmem>>, vector<4x8x16xbf16>
    %121 = vector.shape_cast %120 : vector<4x8x16xbf16> to vector<32x16xbf16>
    %c0_149 = arith.constant 0 : index
    %c0_150 = arith.constant 0 : index
    %c0_151 = arith.constant 0 : index
    %122 = vector.load %arg10[%c0_149, %c0_150, %c0_151] : memref<9x16x128xbf16, #tpu.memory_space<vmem>>, vector<1x16x128xbf16>
    %123 = vector.shape_cast %122 : vector<1x16x128xbf16> to vector<16x128xbf16>
    %cst_152 = arith.constant dense<0.000000e+00> : vector<32x128xf32>
    %124 = tpu.matmul %121, %123, %cst_152 {dimension_numbers = #tpu.dot_dimension_numbers<[1], [0], [0], [1], [0, 0, 1, 1], [], []>} : vector<32x16xbf16>, vector<16x128xbf16>, vector<32x128xf32> -> vector<32x128xf32>
    %c0_153 = arith.constant 0 : index
    %c0_154 = arith.constant 0 : index
    %125 = vector.load %arg16[%c0_153, %c0_154] : memref<32x128xf32, #tpu.memory_space<vmem>>, vector<32x128xf32>
    %126 = arith.addf %125, %124 : vector<32x128xf32>
    %c0_155 = arith.constant 0 : index
    %c0_156 = arith.constant 0 : index
    %127 = vector.load %arg16[%c0_155, %c0_156] : memref<32x128xf32, #tpu.memory_space<vmem>>, vector<32x128xf32>
    tpu.vector_store %arg16[%c0_155, %c0_156], %126 {strides = array<i32>} : memref<32x128xf32, #tpu.memory_space<vmem>>, vector<32x128xf32>,
    %c0_157 = arith.constant 0 : index
    %c1_158 = arith.constant 1 : index
    %c0_159 = arith.constant 0 : index
    %128 = vector.load %arg15[%c0_157, %c1_158, %c0_159] : memref<6x10x16xbf16, #tpu.memory_space<vmem>>, vector<4x8x16xbf16>
    %129 = vector.shape_cast %128 : vector<4x8x16xbf16> to vector<32x16xbf16>
    %c1_160 = arith.constant 1 : index
    %c0_161 = arith.constant 0 : index
    %c0_162 = arith.constant 0 : index
    %130 = vector.load %arg10[%c1_160, %c0_161, %c0_162] : memref<9x16x128xbf16, #tpu.memory_space<vmem>>, vector<1x16x128xbf16>
    %131 = vector.shape_cast %130 : vector<1x16x128xbf16> to vector<16x128xbf16>
    %cst_163 = arith.constant dense<0.000000e+00> : vector<32x128xf32>
    %132 = tpu.matmul %129, %131, %cst_163 {dimension_numbers = #tpu.dot_dimension_numbers<[1], [0], [0], [1], [0, 0, 1, 1], [], []>} : vector<32x16xbf16>, vector<16x128xbf16>, vector<32x128xf32> -> vector<32x128xf32>
    %c0_164 = arith.constant 0 : index
    %c0_165 = arith.constant 0 : index
    %133 = vector.load %arg16[%c0_164, %c0_165] : memref<32x128xf32, #tpu.memory_space<vmem>>, vector<32x128xf32>
    %134 = arith.addf %133, %132 : vector<32x128xf32>
    %c0_166 = arith.constant 0 : index
    %c0_167 = arith.constant 0 : index
    %135 = vector.load %arg16[%c0_166, %c0_167] : memref<32x128xf32, #tpu.memory_space<vmem>>, vector<32x128xf32>
    tpu.vector_store %arg16[%c0_166, %c0_167], %134 {strides = array<i32>} : memref<32x128xf32, #tpu.memory_space<vmem>>, vector<32x128xf32>,
    %c0_168 = arith.constant 0 : index
    %c2_169 = arith.constant 2 : index
    %c0_170 = arith.constant 0 : index
    %136 = vector.load %arg15[%c0_168, %c2_169, %c0_170] : memref<6x10x16xbf16, #tpu.memory_space<vmem>>, vector<4x8x16xbf16>
    %137 = vector.shape_cast %136 : vector<4x8x16xbf16> to vector<32x16xbf16>
    %c2_171 = arith.constant 2 : index
    %c0_172 = arith.constant 0 : index
    %c0_173 = arith.constant 0 : index
    %138 = vector.load %arg10[%c2_171, %c0_172, %c0_173] : memref<9x16x128xbf16, #tpu.memory_space<vmem>>, vector<1x16x128xbf16>
    %139 = vector.shape_cast %138 : vector<1x16x128xbf16> to vector<16x128xbf16>
    %cst_174 = arith.constant dense<0.000000e+00> : vector<32x128xf32>
    %140 = tpu.matmul %137, %139, %cst_174 {dimension_numbers = #tpu.dot_dimension_numbers<[1], [0], [0], [1], [0, 0, 1, 1], [], []>} : vector<32x16xbf16>, vector<16x128xbf16>, vector<32x128xf32> -> vector<32x128xf32>
    %c0_175 = arith.constant 0 : index
    %c0_176 = arith.constant 0 : index
    %141 = vector.load %arg16[%c0_175, %c0_176] : memref<32x128xf32, #tpu.memory_space<vmem>>, vector<32x128xf32>
    %142 = arith.addf %141, %140 : vector<32x128xf32>
    %c0_177 = arith.constant 0 : index
    %c0_178 = arith.constant 0 : index
    %143 = vector.load %arg16[%c0_177, %c0_178] : memref<32x128xf32, #tpu.memory_space<vmem>>, vector<32x128xf32>
    tpu.vector_store %arg16[%c0_177, %c0_178], %142 {strides = array<i32>} : memref<32x128xf32, #tpu.memory_space<vmem>>, vector<32x128xf32>,
    %c1_179 = arith.constant 1 : index
    %c0_180 = arith.constant 0 : index
    %c0_181 = arith.constant 0 : index
    %144 = vector.load %arg15[%c1_179, %c0_180, %c0_181] : memref<6x10x16xbf16, #tpu.memory_space<vmem>>, vector<4x8x16xbf16>
    %145 = vector.shape_cast %144 : vector<4x8x16xbf16> to vector<32x16xbf16>
    %c3_182 = arith.constant 3 : index
    %c0_183 = arith.constant 0 : index
    %c0_184 = arith.constant 0 : index
    %146 = vector.load %arg10[%c3_182, %c0_183, %c0_184] : memref<9x16x128xbf16, #tpu.memory_space<vmem>>, vector<1x16x128xbf16>
    %147 = vector.shape_cast %146 : vector<1x16x128xbf16> to vector<16x128xbf16>
    %cst_185 = arith.constant dense<0.000000e+00> : vector<32x128xf32>
    %148 = tpu.matmul %145, %147, %cst_185 {dimension_numbers = #tpu.dot_dimension_numbers<[1], [0], [0], [1], [0, 0, 1, 1], [], []>} : vector<32x16xbf16>, vector<16x128xbf16>, vector<32x128xf32> -> vector<32x128xf32>
    %c0_186 = arith.constant 0 : index
    %c0_187 = arith.constant 0 : index
    %149 = vector.load %arg16[%c0_186, %c0_187] : memref<32x128xf32, #tpu.memory_space<vmem>>, vector<32x128xf32>
    %150 = arith.addf %149, %148 : vector<32x128xf32>
    %c0_188 = arith.constant 0 : index
    %c0_189 = arith.constant 0 : index
    %151 = vector.load %arg16[%c0_188, %c0_189] : memref<32x128xf32, #tpu.memory_space<vmem>>, vector<32x128xf32>
    tpu.vector_store %arg16[%c0_188, %c0_189], %150 {strides = array<i32>} : memref<32x128xf32, #tpu.memory_space<vmem>>, vector<32x128xf32>,
    %c1_190 = arith.constant 1 : index
    %c1_191 = arith.constant 1 : index
    %c0_192 = arith.constant 0 : index
    %152 = vector.load %arg15[%c1_190, %c1_191, %c0_192] : memref<6x10x16xbf16, #tpu.memory_space<vmem>>, vector<4x8x16xbf16>
    %153 = vector.shape_cast %152 : vector<4x8x16xbf16> to vector<32x16xbf16>
    %c4_193 = arith.constant 4 : index
    %c0_194 = arith.constant 0 : index
    %c0_195 = arith.constant 0 : index
    %154 = vector.load %arg10[%c4_193, %c0_194, %c0_195] : memref<9x16x128xbf16, #tpu.memory_space<vmem>>, vector<1x16x128xbf16>
    %155 = vector.shape_cast %154 : vector<1x16x128xbf16> to vector<16x128xbf16>
    %cst_196 = arith.constant dense<0.000000e+00> : vector<32x128xf32>
    %156 = tpu.matmul %153, %155, %cst_196 {dimension_numbers = #tpu.dot_dimension_numbers<[1], [0], [0], [1], [0, 0, 1, 1], [], []>} : vector<32x16xbf16>, vector<16x128xbf16>, vector<32x128xf32> -> vector<32x128xf32>
    %c0_197 = arith.constant 0 : index
    %c0_198 = arith.constant 0 : index
    %157 = vector.load %arg16[%c0_197, %c0_198] : memref<32x128xf32, #tpu.memory_space<vmem>>, vector<32x128xf32>
    %158 = arith.addf %157, %156 : vector<32x128xf32>
    %c0_199 = arith.constant 0 : index
    %c0_200 = arith.constant 0 : index
    %159 = vector.load %arg16[%c0_199, %c0_200] : memref<32x128xf32, #tpu.memory_space<vmem>>, vector<32x128xf32>
    tpu.vector_store %arg16[%c0_199, %c0_200], %158 {strides = array<i32>} : memref<32x128xf32, #tpu.memory_space<vmem>>, vector<32x128xf32>,
    %c1_201 = arith.constant 1 : index
    %c2_202 = arith.constant 2 : index
    %c0_203 = arith.constant 0 : index
    %160 = vector.load %arg15[%c1_201, %c2_202, %c0_203] : memref<6x10x16xbf16, #tpu.memory_space<vmem>>, vector<4x8x16xbf16>
    %161 = vector.shape_cast %160 : vector<4x8x16xbf16> to vector<32x16xbf16>
    %c5_204 = arith.constant 5 : index
    %c0_205 = arith.constant 0 : index
    %c0_206 = arith.constant 0 : index
    %162 = vector.load %arg10[%c5_204, %c0_205, %c0_206] : memref<9x16x128xbf16, #tpu.memory_space<vmem>>, vector<1x16x128xbf16>
    %163 = vector.shape_cast %162 : vector<1x16x128xbf16> to vector<16x128xbf16>
    %cst_207 = arith.constant dense<0.000000e+00> : vector<32x128xf32>
    %164 = tpu.matmul %161, %163, %cst_207 {dimension_numbers = #tpu.dot_dimension_numbers<[1], [0], [0], [1], [0, 0, 1, 1], [], []>} : vector<32x16xbf16>, vector<16x128xbf16>, vector<32x128xf32> -> vector<32x128xf32>
    %c0_208 = arith.constant 0 : index
    %c0_209 = arith.constant 0 : index
    %165 = vector.load %arg16[%c0_208, %c0_209] : memref<32x128xf32, #tpu.memory_space<vmem>>, vector<32x128xf32>
    %166 = arith.addf %165, %164 : vector<32x128xf32>
    %c0_210 = arith.constant 0 : index
    %c0_211 = arith.constant 0 : index
    %167 = vector.load %arg16[%c0_210, %c0_211] : memref<32x128xf32, #tpu.memory_space<vmem>>, vector<32x128xf32>
    tpu.vector_store %arg16[%c0_210, %c0_211], %166 {strides = array<i32>} : memref<32x128xf32, #tpu.memory_space<vmem>>, vector<32x128xf32>,
    %c2_212 = arith.constant 2 : index
    %c0_213 = arith.constant 0 : index
    %c0_214 = arith.constant 0 : index
    %168 = vector.load %arg15[%c2_212, %c0_213, %c0_214] : memref<6x10x16xbf16, #tpu.memory_space<vmem>>, vector<4x8x16xbf16>
    %169 = vector.shape_cast %168 : vector<4x8x16xbf16> to vector<32x16xbf16>
    %c6_215 = arith.constant 6 : index
    %c0_216 = arith.constant 0 : index
    %c0_217 = arith.constant 0 : index
    %170 = vector.load %arg10[%c6_215, %c0_216, %c0_217] : memref<9x16x128xbf16, #tpu.memory_space<vmem>>, vector<1x16x128xbf16>
    %171 = vector.shape_cast %170 : vector<1x16x128xbf16> to vector<16x128xbf16>
    %cst_218 = arith.constant dense<0.000000e+00> : vector<32x128xf32>
    %172 = tpu.matmul %169, %171, %cst_218 {dimension_numbers = #tpu.dot_dimension_numbers<[1], [0], [0], [1], [0, 0, 1, 1], [], []>} : vector<32x16xbf16>, vector<16x128xbf16>, vector<32x128xf32> -> vector<32x128xf32>
    %c0_219 = arith.constant 0 : index
    %c0_220 = arith.constant 0 : index
    %173 = vector.load %arg16[%c0_219, %c0_220] : memref<32x128xf32, #tpu.memory_space<vmem>>, vector<32x128xf32>
    %174 = arith.addf %173, %172 : vector<32x128xf32>
    %c0_221 = arith.constant 0 : index
    %c0_222 = arith.constant 0 : index
    %175 = vector.load %arg16[%c0_221, %c0_222] : memref<32x128xf32, #tpu.memory_space<vmem>>, vector<32x128xf32>
    tpu.vector_store %arg16[%c0_221, %c0_222], %174 {strides = array<i32>} : memref<32x128xf32, #tpu.memory_space<vmem>>, vector<32x128xf32>,
    %c2_223 = arith.constant 2 : index
    %c1_224 = arith.constant 1 : index
    %c0_225 = arith.constant 0 : index
    %176 = vector.load %arg15[%c2_223, %c1_224, %c0_225] : memref<6x10x16xbf16, #tpu.memory_space<vmem>>, vector<4x8x16xbf16>
    %177 = vector.shape_cast %176 : vector<4x8x16xbf16> to vector<32x16xbf16>
    %c7_226 = arith.constant 7 : index
    %c0_227 = arith.constant 0 : index
    %c0_228 = arith.constant 0 : index
    %178 = vector.load %arg10[%c7_226, %c0_227, %c0_228] : memref<9x16x128xbf16, #tpu.memory_space<vmem>>, vector<1x16x128xbf16>
    %179 = vector.shape_cast %178 : vector<1x16x128xbf16> to vector<16x128xbf16>
    %cst_229 = arith.constant dense<0.000000e+00> : vector<32x128xf32>
    %180 = tpu.matmul %177, %179, %cst_229 {dimension_numbers = #tpu.dot_dimension_numbers<[1], [0], [0], [1], [0, 0, 1, 1], [], []>} : vector<32x16xbf16>, vector<16x128xbf16>, vector<32x128xf32> -> vector<32x128xf32>
    %c0_230 = arith.constant 0 : index
    %c0_231 = arith.constant 0 : index
    %181 = vector.load %arg16[%c0_230, %c0_231] : memref<32x128xf32, #tpu.memory_space<vmem>>, vector<32x128xf32>
    %182 = arith.addf %181, %180 : vector<32x128xf32>
    %c0_232 = arith.constant 0 : index
    %c0_233 = arith.constant 0 : index
    %183 = vector.load %arg16[%c0_232, %c0_233] : memref<32x128xf32, #tpu.memory_space<vmem>>, vector<32x128xf32>
    tpu.vector_store %arg16[%c0_232, %c0_233], %182 {strides = array<i32>} : memref<32x128xf32, #tpu.memory_space<vmem>>, vector<32x128xf32>,
    %c2_234 = arith.constant 2 : index
    %c2_235 = arith.constant 2 : index
    %c0_236 = arith.constant 0 : index
    %184 = vector.load %arg15[%c2_234, %c2_235, %c0_236] : memref<6x10x16xbf16, #tpu.memory_space<vmem>>, vector<4x8x16xbf16>
    %185 = vector.shape_cast %184 : vector<4x8x16xbf16> to vector<32x16xbf16>
    %c8_237 = arith.constant 8 : index
    %c0_238 = arith.constant 0 : index
    %c0_239 = arith.constant 0 : index
    %186 = vector.load %arg10[%c8_237, %c0_238, %c0_239] : memref<9x16x128xbf16, #tpu.memory_space<vmem>>, vector<1x16x128xbf16>
    %187 = vector.shape_cast %186 : vector<1x16x128xbf16> to vector<16x128xbf16>
    %cst_240 = arith.constant dense<0.000000e+00> : vector<32x128xf32>
    %188 = tpu.matmul %185, %187, %cst_240 {dimension_numbers = #tpu.dot_dimension_numbers<[1], [0], [0], [1], [0, 0, 1, 1], [], []>} : vector<32x16xbf16>, vector<16x128xbf16>, vector<32x128xf32> -> vector<32x128xf32>
    %c0_241 = arith.constant 0 : index
    %c0_242 = arith.constant 0 : index
    %189 = vector.load %arg16[%c0_241, %c0_242] : memref<32x128xf32, #tpu.memory_space<vmem>>, vector<32x128xf32>
    %190 = arith.addf %189, %188 : vector<32x128xf32>
    %c0_243 = arith.constant 0 : index
    %c0_244 = arith.constant 0 : index
    %191 = vector.load %arg16[%c0_243, %c0_244] : memref<32x128xf32, #tpu.memory_space<vmem>>, vector<32x128xf32>
    tpu.vector_store %arg16[%c0_243, %c0_244], %190 {strides = array<i32>} : memref<32x128xf32, #tpu.memory_space<vmem>>, vector<32x128xf32>,
    %c0_245 = arith.constant 0 : index
    %c0_246 = arith.constant 0 : index
    %192 = vector.load %arg16[%c0_245, %c0_246] : memref<32x128xf32, #tpu.memory_space<vmem>>, vector<32x128xf32>
    %c0_247 = arith.constant 0 : index
    %c0_248 = arith.constant 0 : index
    %193 = vector.load %arg11[%c0_247, %c0_248] : memref<1x128xf32, #tpu.memory_space<vmem>>, vector<1x128xf32>
    %194 = vector.broadcast %193 : vector<1x128xf32> to vector<32x128xf32>
    %195 = arith.mulf %192, %194 : vector<32x128xf32>
    %c0_249 = arith.constant 0 : index
    %c0_250 = arith.constant 0 : index
    %196 = vector.load %arg12[%c0_249, %c0_250] : memref<1x128xf32, #tpu.memory_space<vmem>>, vector<1x128xf32>
    %197 = vector.broadcast %196 : vector<1x128xf32> to vector<32x128xf32>
    %198 = arith.addf %195, %197 : vector<32x128xf32>
    %cst_251 = arith.constant 0.000000e+00 : f32
    %199 = vector.broadcast %cst_251 : f32 to vector<32x128xf32>
    %200 = arith.maximumf %198, %199 : vector<32x128xf32>
    %201 = vector.shape_cast %200 : vector<32x128xf32> to vector<1x4x8x128xf32>
    %202 = arith.truncf %201 : vector<1x4x8x128xf32> to vector<1x4x8x128xbf16>
    %c0_252 = arith.constant 0 : index
    %c0_253 = arith.constant 0 : index
    %c0_254 = arith.constant 0 : index
    %c0_255 = arith.constant 0 : index
    %203 = vector.load %arg13[%c0_252, %c0_253, %c0_254, %c0_255] : memref<1x4x8x128xbf16, #tpu.memory_space<vmem>>, vector<1x4x8x128xbf16>
    tpu.vector_store %arg13[%c0_252, %c0_253, %c0_254, %c0_255], %202 {strides = array<i32>} : memref<1x4x8x128xbf16, #tpu.memory_space<vmem>>, vector<1x4x8x128xbf16>,
    return
  }
  func.func @transform_0(%arg0: i32, %arg1: i32, %arg2: i32) -> (i32, i32, i32, i32) {
    %c0_i32 = arith.constant 0 : i32
    %c0_i32_0 = arith.constant 0 : i32
    %c0_i32_1 = arith.constant 0 : i32
    return %arg1, %arg2, %c0_i32, %c0_i32_0 : i32, i32, i32, i32
  }
  func.func @transform_1(%arg0: i32, %arg1: i32, %arg2: i32) -> (i32, i32, i32, i32) {
    %c4_i32 = arith.constant 4 : i32
    %0 = arith.muli %arg2, %c4_i32 : i32
    %c1_i32 = arith.constant 1 : i32
    %1 = arith.subi %0, %c1_i32 : i32
    %c0_i32 = arith.constant 0 : i32
    %2 = arith.maxsi %1, %c0_i32 : i32
    %c0_i32_0 = arith.constant 0 : i32
    %c0_i32_1 = arith.constant 0 : i32
    %c0_i32_2 = arith.constant 0 : i32
    return %arg1, %2, %c0_i32_0, %c0_i32_1 : i32, i32, i32, i32
  }
  func.func @transform_2(%arg0: i32, %arg1: i32, %arg2: i32) -> (i32, i32, i32, i32) {
    %c1_i32 = arith.constant 1 : i32
    %0 = arith.addi %arg2, %c1_i32 : i32
    %c4_i32 = arith.constant 4 : i32
    %1 = arith.muli %0, %c4_i32 : i32
    %c15_i32 = arith.constant 15 : i32
    %2 = arith.minsi %1, %c15_i32 : i32
    %c0_i32 = arith.constant 0 : i32
    %c0_i32_0 = arith.constant 0 : i32
    %c0_i32_1 = arith.constant 0 : i32
    return %arg1, %2, %c0_i32, %c0_i32_0 : i32, i32, i32, i32
  }
  func.func @transform_3(%arg0: i32, %arg1: i32, %arg2: i32) -> (i32, i32, i32, i32) {
    %c0_i32 = arith.constant 0 : i32
    %c0_i32_0 = arith.constant 0 : i32
    %c0_i32_1 = arith.constant 0 : i32
    return %arg1, %arg2, %c0_i32, %c0_i32_0 : i32, i32, i32, i32
  }
  func.func @transform_4(%arg0: i32, %arg1: i32, %arg2: i32) -> (i32, i32, i32, i32) {
    %c4_i32 = arith.constant 4 : i32
    %0 = arith.muli %arg2, %c4_i32 : i32
    %c1_i32 = arith.constant 1 : i32
    %1 = arith.subi %0, %c1_i32 : i32
    %c0_i32 = arith.constant 0 : i32
    %2 = arith.maxsi %1, %c0_i32 : i32
    %c0_i32_0 = arith.constant 0 : i32
    %c0_i32_1 = arith.constant 0 : i32
    %c0_i32_2 = arith.constant 0 : i32
    return %arg1, %2, %c0_i32_0, %c0_i32_1 : i32, i32, i32, i32
  }
  func.func @transform_5(%arg0: i32, %arg1: i32, %arg2: i32) -> (i32, i32, i32, i32) {
    %c1_i32 = arith.constant 1 : i32
    %0 = arith.addi %arg2, %c1_i32 : i32
    %c4_i32 = arith.constant 4 : i32
    %1 = arith.muli %0, %c4_i32 : i32
    %c15_i32 = arith.constant 15 : i32
    %2 = arith.minsi %1, %c15_i32 : i32
    %c0_i32 = arith.constant 0 : i32
    %c0_i32_0 = arith.constant 0 : i32
    %c0_i32_1 = arith.constant 0 : i32
    return %arg1, %2, %c0_i32, %c0_i32_0 : i32, i32, i32, i32
  }
  func.func @transform_6(%arg0: i32, %arg1: i32, %arg2: i32) -> (i32, i32, i32) {
    %c0_i32 = arith.constant 0 : i32
    %c0_i32_0 = arith.constant 0 : i32
    %c0_i32_1 = arith.constant 0 : i32
    return %c0_i32, %c0_i32_0, %arg0 : i32, i32, i32
  }
  func.func @transform_7(%arg0: i32, %arg1: i32, %arg2: i32) -> (i32, i32, i32) {
    %c0_i32 = arith.constant 0 : i32
    %c0_i32_0 = arith.constant 0 : i32
    %c0_i32_1 = arith.constant 0 : i32
    return %c0_i32, %c0_i32_0, %arg0 : i32, i32, i32
  }
  func.func @transform_8(%arg0: i32, %arg1: i32, %arg2: i32) -> (i32, i32) {
    %c0_i32 = arith.constant 0 : i32
    %c0_i32_0 = arith.constant 0 : i32
    return %c0_i32, %arg0 : i32, i32
  }
  func.func @transform_9(%arg0: i32, %arg1: i32, %arg2: i32) -> (i32, i32) {
    %c0_i32 = arith.constant 0 : i32
    %c0_i32_0 = arith.constant 0 : i32
    return %c0_i32, %arg0 : i32, i32
  }
  func.func @transform_10(%arg0: i32, %arg1: i32, %arg2: i32) -> (i32, i32, i32, i32) {
    %c0_i32 = arith.constant 0 : i32
    %c0_i32_0 = arith.constant 0 : i32
    return %arg1, %arg2, %c0_i32, %arg0 : i32, i32, i32, i32
  }
}

</mosaic_0001>

<llo_original>
// kernel: tpu_custom_call.1
$region0: #{tpu_custom_call.1}
  #allocation0 [shape = 'u32[]', space=smem, size = 0x4, offset = 0x4, fixed_abs, tag = 'smem constant byte address 0x4 - core index']
  #allocation1 [shape = 'u32[144,128]{1,0:T(1,128)}', space=vmem, size = 0x12000, scoped, tag = 'internal scratch']
  #allocation2 [shape = 'bf16[6,10,32]{2,1,0:T(8,128)(2,1)}', space=vmem, size = 0x6000, scoped, tag = 'scratch operand']
  #allocation3 [shape = 'bf16[6,10,16]{2,1,0:T(8,128)(2,1)}', space=vmem, size = 0x6000, scoped, tag = 'scratch operand']
  #allocation4 [shape = 'f32[32,128]{1,0:T(8,128)}', space=vmem, size = 0x4000, scoped, tag = 'scratch operand']
  %s0 = inlined_call_operand.hbm [shape: bf16[2,16,8,32], index: 0, kind: input, shape index: {}]
  %s1 = inlined_call_operand.hbm [shape: bf16[2,16,8,32], index: 1, kind: input, shape index: {}]
  %s2 = inlined_call_operand.hbm [shape: bf16[2,16,8,32], index: 2, kind: input, shape index: {}]
  %s3 = inlined_call_operand.hbm [shape: bf16[2,16,8,16], index: 3, kind: input, shape index: {}]
  %s4 = inlined_call_operand.hbm [shape: bf16[2,16,8,16], index: 4, kind: input, shape index: {}]
  %s5 = inlined_call_operand.hbm [shape: bf16[2,16,8,16], index: 5, kind: input, shape index: {}]
  %s6 = inlined_call_operand.hbm [shape: bf16[9,32,128], index: 6, kind: input, shape index: {}]
  %s7 = inlined_call_operand.hbm [shape: bf16[9,16,128], index: 7, kind: input, shape index: {}]
  %s8 = inlined_call_operand.vmem [shape: f32[1,128], index: 8, kind: input, shape index: {}]
  %s9 = inlined_call_operand.vmem [shape: f32[1,128], index: 9, kind: input, shape index: {}]
  %s10 = inlined_call_operand.hbm [shape: bf16[2,16,8,128], index: 10, kind: output, shape index: {}]
  %s11 = sld [smem:[#allocation0]]
  $region105: #{tpu_custom_call.1} parent=0
    _
  %s13 = ssub.s32 1, %s11
  %s14 = scalar_select 0, %s13, %s11
  $region1: #{tpu_custom_call.1} parent=0
    #allocation5 [shape = 'u8[16384]{0}', space=vmem, size = 0x4000, scoped, tag = 'input window, operand 0']
    #allocation6 [shape = 's32[2]{0}', space=sflag, size = 0x8, scoped, tag = 'scoped memory for tpu_custom_call.1']
    #allocation7 [shape = 's32[2]{0}', space=sflag, size = 0x8, scoped, tag = 'scoped memory for tpu_custom_call.1']
    #allocation8 [shape = 'u8[4096]{0}', space=vmem, size = 0x1000, scoped, tag = 'input window, operand 1']
    #allocation9 [shape = 's32[2]{0}', space=sflag, size = 0x8, scoped, tag = 'scoped memory for tpu_custom_call.1']
    #allocation10 [shape = 'u8[4096]{0}', space=vmem, size = 0x1000, scoped, tag = 'input window, operand 2']
    #allocation11 [shape = 'u8[16384]{0}', space=vmem, size = 0x4000, scoped, tag = 'input window, operand 3']
    #allocation12 [shape = 's32[2]{0}', space=sflag, size = 0x8, scoped, tag = 'scoped memory for tpu_custom_call.1']
    #allocation13 [shape = 'u8[4096]{0}', space=vmem, size = 0x1000, scoped, tag = 'input window, operand 4']
    #allocation14 [shape = 'u8[4096]{0}', space=vmem, size = 0x1000, scoped, tag = 'input window, operand 5']
    #allocation15 [shape = 's32[2]{0}', space=sflag, size = 0x8, scoped, tag = 'scoped memory for tpu_custom_call.1']
    #allocation16 [shape = 'u8[73728]{0}', space=vmem, size = 0x12000, scoped, tag = 'input window, operand 6, single buffered']
    #allocation17 [shape = 'u8[36864]{0}', space=vmem, size = 0x9000, scoped, tag = 'input window, operand 7, single buffered']
    #allocation18 [shape = 's32[1]{0}', space=sflag, size = 0x4, scoped, tag = 'scoped memory for tpu_custom_call.1']
    #allocation19 [shape = 'u8[16384]{0}', space=vmem, size = 0x4000, scoped, tag = 'output window, operand 0']
    %15 = vsyncpa [#allocation6], 0
    %s16 = scalar_lea.sflag [#allocation6], 1
    %17 = vsyncpa %s16, 0
    %18 = vsyncpa [#allocation9], 0
    %s19 = scalar_lea.sflag [#allocation9], 1
    %20 = vsyncpa %s19, 0
    %21 = vsyncpa [#allocation12], 0
    %s22 = scalar_lea.sflag [#allocation12], 1
    %23 = vsyncpa %s22, 0
    %24 = vsyncpa [#allocation15], 0
    %s25 = scalar_lea.sflag [#allocation15], 1
    %26 = vsyncpa %s25, 0
    %27 = vsyncpa [#allocation18], 0
    %28 = vsyncpa [#allocation7], 0
    %s29 = scalar_lea.sflag [#allocation7], 1
    %30 = vsyncpa %s29, 0
    loop: start=0, step=1, limit=10
    $region2: #{tpu_custom_call.1} parent=1 // loop_pre_header
      _
    $region3: #{tpu_custom_call.1} parent=1 // loop_header
      %s32 = sphi 0, %s36
      %p33 = scmp.ge.s32.totalorder %s32, 10
      %s39 = sphi 0, %s58
      %s40 = sphi 0, %s54
      %s41 = sphi 0, %s50
      %s42 = sphi 0, %s39
      %s43 = sphi 0, %s40
      %s44 = sphi 0, %s41
      %s45 = sphi 0, %s42
      %s46 = sphi 0, %s43
      %s47 = sphi 0, %s44
      %s63 = sphi 0, %s65
      %s66 = sphi 0, %s63
      %s67 = sphi 0, %s66
      %s83 = sphi 0, %s67
      %s99 = sphi 0, %s101
      %s102 = sphi 0, %s99
      %s103 = sphi 0, %s102
      %s119 = sphi 0, %s103
      %s135 = sphi 0, %s137
      %s138 = sphi 0, %s135
      %s139 = sphi 0, %s138
      %s155 = sphi 0, %s139
      %s163 = sphi 0, %s165
      %s166 = sphi 0, %s163
      %s167 = sphi 0, %s166
      %s183 = sphi 0, %s167
      %s199 = sphi 0, %s201
      %s202 = sphi 0, %s199
      %s203 = sphi 0, %s202
      %s219 = sphi 0, %s203
      %s235 = sphi 0, %s237
      %s238 = sphi 0, %s235
      %s239 = sphi 0, %s238
      %s255 = sphi 0, %s239
      %s261 = sphi 0, %s263
      %s264 = sphi 0, %s261
      %s265 = sphi 0, %s264
      %s281 = sphi 0, %s265
      %s287 = sphi 0, %s289
      %s290 = sphi 0, %s287
      %s291 = sphi 0, %s290
      %s307 = sphi 0, %s291
      %s313 = sphi 0, %s315
      %s316 = sphi 0, %s313
      %s317 = sphi 0, %s316
      %s333 = sphi 0, %s317
      %s339 = sphi 0, %s341
      %s342 = sphi 0, %s339
      %s343 = sphi 0, %s342
      %s359 = sphi 0, %s343
      %s369 = sphi 0, %s371
      %s372 = sphi 0, %s369
      %s373 = sphi 0, %s372
      %s389 = sphi 0, %s373
    $region4: #{tpu_custom_call.1} parent=1 // loop_header_branch
      %35 = sbr.rel (%p33) target = $region8
    $region5: #{tpu_custom_call.1} parent=1 // loop_body
      %s37 = ssub.s32 %s32, 1
      %s38 = ssub.s32 %s32, 2
      %s48 = sadd.s32 1, %s41
      %p49 = scmp.ge.s32.totalorder %s48, 4
      %s50 = scalar_select %p49, 0, %s48
      %s51 = sadd.s32 1, %s40
      %s52 = scalar_select %p49, %s51, %s40
      %p53 = scmp.ge.s32.totalorder %s52, 2
      %s54 = scalar_select %p53, 0, %s52
      %s55 = sadd.s32 1, %s39
      %s56 = scalar_select %p53, %s55, %s39
      %p57 = scmp.ge.s32.totalorder %s56, 1
      %s58 = scalar_select %p57, 0, %s56
      %s59 = ssub.s32 %s40, %s54
      %s60 = ssub.s32 %s41, %s50
      %s61 = sor.u32 %s59, %s60
      %p62 = scmp.eq.s32.totalorder %s61, 0
      %s64 = sadd.s32 %s63, 1
      %s65 = scalar_select %p62, %s63, %s64
      %p68 = pneg %p62
      %p69 = scmp.eq.s32.totalorder %s32, 7
      %p70 = por %p68, %p69
      %p71 = scmp.ne.s32.totalorder %s63, %s66
      %p72 = scmp.eq.s32.totalorder %s32, 0
      %p73 = por %p71, %p72
      %p74 = scmp.ne.s32.totalorder %s63, %s66
      %p75 = scmp.eq.s32.totalorder %s37, 7
      %p76 = por %p74, %p75
      %p77 = scmp.ne.s32.totalorder %s66, %s67
      %p78 = scmp.eq.s32.totalorder %s37, 0
      %p79 = por %p77, %p78
      %p80 = scmp.ne.s32.totalorder %s66, %s67
      %p81 = scmp.eq.s32.totalorder %s38, 7
      %p82 = por %p80, %p81
      %p84 = scmp.ne.s32.totalorder %s67, %s83
      %p85 = scmp.eq.s32.totalorder %s38, 0
      %p86 = por %p84, %p85
      %s87 = smul.u32 %s41, 4
      %s88 = ssub.s32 %s87, 1
      %p89 = scmp.gt.s32.totalorder %s88, 0
      %s90 = scalar_select %p89, %s88, 0
      %s91 = smul.u32 %s50, 4
      %s92 = ssub.s32 %s91, 1
      %p93 = scmp.gt.s32.totalorder %s92, 0
      %s94 = scalar_select %p93, %s92, 0
      %s95 = ssub.s32 %s40, %s54
      %s96 = ssub.s32 %s90, %s94
      %s97 = sor.u32 %s95, %s96
      %p98 = scmp.eq.s32.totalorder %s97, 0
      %s100 = sadd.s32 %s99, 1
      %s101 = scalar_select %p98, %s99, %s100
      %p104 = pneg %p98
      %p105 = scmp.eq.s32.totalorder %s32, 7
      %p106 = por %p104, %p105
      %p107 = scmp.ne.s32.totalorder %s99, %s102
      %p108 = scmp.eq.s32.totalorder %s32, 0
      %p109 = por %p107, %p108
      %p110 = scmp.ne.s32.totalorder %s99, %s102
      %p111 = scmp.eq.s32.totalorder %s37, 7
      %p112 = por %p110, %p111
      %p113 = scmp.ne.s32.totalorder %s102, %s103
      %p114 = scmp.eq.s32.totalorder %s37, 0
      %p115 = por %p113, %p114
      %p116 = scmp.ne.s32.totalorder %s102, %s103
      %p117 = scmp.eq.s32.totalorder %s38, 7
      %p118 = por %p116, %p117
      %p120 = scmp.ne.s32.totalorder %s103, %s119
      %p121 = scmp.eq.s32.totalorder %s38, 0
      %p122 = por %p120, %p121
      %s123 = sadd.s32 %s41, 1
      %s124 = smul.u32 %s123, 4
      %p125 = scmp.lt.s32.totalorder %s124, 15
      %s126 = scalar_select %p125, %s124, 15
      %s127 = sadd.s32 %s50, 1
      %s128 = smul.u32 %s127, 4
      %p129 = scmp.lt.s32.totalorder %s128, 15
      %s130 = scalar_select %p129, %s128, 15
      %s131 = ssub.s32 %s40, %s54
      %s132 = ssub.s32 %s126, %s130
      %s133 = sor.u32 %s131, %s132
      %p134 = scmp.eq.s32.totalorder %s133, 0
      %s136 = sadd.s32 %s135, 1
      %s137 = scalar_select %p134, %s135, %s136
      %p140 = pneg %p134
      %p141 = scmp.eq.s32.totalorder %s32, 7
      %p142 = por %p140, %p141
      %p143 = scmp.ne.s32.totalorder %s135, %s138
      %p144 = scmp.eq.s32.totalorder %s32, 0
      %p145 = por %p143, %p144
      %p146 = scmp.ne.s32.totalorder %s135, %s138
      %p147 = scmp.eq.s32.totalorder %s37, 7
      %p148 = por %p146, %p147
      %p149 = scmp.ne.s32.totalorder %s138, %s139
      %p150 = scmp.eq.s32.totalorder %s37, 0
      %p151 = por %p149, %p150
      %p152 = scmp.ne.s32.totalorder %s138, %s139
      %p153 = scmp.eq.s32.totalorder %s38, 7
      %p154 = por %p152, %p153
      %p156 = scmp.ne.s32.totalorder %s139, %s155
      %p157 = scmp.eq.s32.totalorder %s38, 0
      %p158 = por %p156, %p157
      %s159 = ssub.s32 %s40, %s54
      %s160 = ssub.s32 %s41, %s50
      %s161 = sor.u32 %s159, %s160
      %p162 = scmp.eq.s32.totalorder %s161, 0
      %s164 = sadd.s32 %s163, 1
      %s165 = scalar_select %p162, %s163, %s164
      %p168 = pneg %p162
      %p169 = scmp.eq.s32.totalorder %s32, 7
      %p170 = por %p168, %p169
      %p171 = scmp.ne.s32.totalorder %s163, %s166
      %p172 = scmp.eq.s32.totalorder %s32, 0
      %p173 = por %p171, %p172
      %p174 = scmp.ne.s32.totalorder %s163, %s166
      %p175 = scmp.eq.s32.totalorder %s37, 7
      %p176 = por %p174, %p175
      %p177 = scmp.ne.s32.totalorder %s166, %s167
      %p178 = scmp.eq.s32.totalorder %s37, 0
      %p179 = por %p177, %p178
      %p180 = scmp.ne.s32.totalorder %s166, %s167
      %p181 = scmp.eq.s32.totalorder %s38, 7
      %p182 = por %p180, %p181
      %p184 = scmp.ne.s32.totalorder %s167, %s183
      %p185 = scmp.eq.s32.totalorder %s38, 0
      %p186 = por %p184, %p185
      %s187 = smul.u32 %s41, 4
      %s188 = ssub.s32 %s187, 1
      %p189 = scmp.gt.s32.totalorder %s188, 0
      %s190 = scalar_select %p189, %s188, 0
      %s191 = smul.u32 %s50, 4
      %s192 = ssub.s32 %s191, 1
      %p193 = scmp.gt.s32.totalorder %s192, 0
      %s194 = scalar_select %p193, %s192, 0
      %s195 = ssub.s32 %s40, %s54
      %s196 = ssub.s32 %s190, %s194
      %s197 = sor.u32 %s195, %s196
      %p198 = scmp.eq.s32.totalorder %s197, 0
      %s200 = sadd.s32 %s199, 1
      %s201 = scalar_select %p198, %s199, %s200
      %p204 = pneg %p198
      %p205 = scmp.eq.s32.totalorder %s32, 7
      %p206 = por %p204, %p205
      %p207 = scmp.ne.s32.totalorder %s199, %s202
      %p208 = scmp.eq.s32.totalorder %s32, 0
      %p209 = por %p207, %p208
      %p210 = scmp.ne.s32.totalorder %s199, %s202
      %p211 = scmp.eq.s32.totalorder %s37, 7
      %p212 = por %p210, %p211
      %p213 = scmp.ne.s32.totalorder %s202, %s203
      %p214 = scmp.eq.s32.totalorder %s37, 0
      %p215 = por %p213, %p214
      %p216 = scmp.ne.s32.totalorder %s202, %s203
      %p217 = scmp.eq.s32.totalorder %s38, 7
      %p218 = por %p216, %p217
      %p220 = scmp.ne.s32.totalorder %s203, %s219
      %p221 = scmp.eq.s32.totalorder %s38, 0
      %p222 = por %p220, %p221
      %s223 = sadd.s32 %s41, 1
      %s224 = smul.u32 %s223, 4
      %p225 = scmp.lt.s32.totalorder %s224, 15
      %s226 = scalar_select %p225, %s224, 15
      %s227 = sadd.s32 %s50, 1
      %s228 = smul.u32 %s227, 4
      %p229 = scmp.lt.s32.totalorder %s228, 15
      %s230 = scalar_select %p229, %s228, 15
      %s231 = ssub.s32 %s40, %s54
      %s232 = ssub.s32 %s226, %s230
      %s233 = sor.u32 %s231, %s232
      %p234 = scmp.eq.s32.totalorder %s233, 0
      %s236 = sadd.s32 %s235, 1
      %s237 = scalar_select %p234, %s235, %s236
      %p240 = pneg %p234
      %p241 = scmp.eq.s32.totalorder %s32, 7
      %p242 = por %p240, %p241
      %p243 = scmp.ne.s32.totalorder %s235, %s238
      %p244 = scmp.eq.s32.totalorder %s32, 0
      %p245 = por %p243, %p244
      %p246 = scmp.ne.s32.totalorder %s235, %s238
      %p247 = scmp.eq.s32.totalorder %s37, 7
      %p248 = por %p246, %p247
      %p249 = scmp.ne.s32.totalorder %s238, %s239
      %p250 = scmp.eq.s32.totalorder %s37, 0
      %p251 = por %p249, %p250
      %p252 = scmp.ne.s32.totalorder %s238, %s239
      %p253 = scmp.eq.s32.totalorder %s38, 7
      %p254 = por %p252, %p253
      %p256 = scmp.ne.s32.totalorder %s239, %s255
      %p257 = scmp.eq.s32.totalorder %s38, 0
      %p258 = por %p256, %p257
      %s259 = ssub.s32 %s39, %s58
      %p260 = scmp.eq.s32.totalorder %s259, 0
      %s262 = sadd.s32 %s261, 1
      %s263 = scalar_select %p260, %s261, %s262
      %p266 = pneg %p260
      %p267 = scmp.eq.s32.totalorder %s32, 7
      %p268 = por %p266, %p267
      %p269 = scmp.ne.s32.totalorder %s261, %s264
      %p270 = scmp.eq.s32.totalorder %s32, 0
      %p271 = por %p269, %p270
      %p272 = scmp.ne.s32.totalorder %s261, %s264
      %p273 = scmp.eq.s32.totalorder %s37, 7
      %p274 = por %p272, %p273
      %p275 = scmp.ne.s32.totalorder %s264, %s265
      %p276 = scmp.eq.s32.totalorder %s37, 0
      %p277 = por %p275, %p276
      %p278 = scmp.ne.s32.totalorder %s264, %s265
      %p279 = scmp.eq.s32.totalorder %s38, 7
      %p280 = por %p278, %p279
      %p282 = scmp.ne.s32.totalorder %s265, %s281
      %p283 = scmp.eq.s32.totalorder %s38, 0
      %p284 = por %p282, %p283
      %s285 = ssub.s32 %s39, %s58
      %p286 = scmp.eq.s32.totalorder %s285, 0
      %s288 = sadd.s32 %s287, 1
      %s289 = scalar_select %p286, %s287, %s288
      %p292 = pneg %p286
      %p293 = scmp.eq.s32.totalorder %s32, 7
      %p294 = por %p292, %p293
      %p295 = scmp.ne.s32.totalorder %s287, %s290
      %p296 = scmp.eq.s32.totalorder %s32, 0
      %p297 = por %p295, %p296
      %p298 = scmp.ne.s32.totalorder %s287, %s290
      %p299 = scmp.eq.s32.totalorder %s37, 7
      %p300 = por %p298, %p299
      %p301 = scmp.ne.s32.totalorder %s290, %s291
      %p302 = scmp.eq.s32.totalorder %s37, 0
      %p303 = por %p301, %p302
      %p304 = scmp.ne.s32.totalorder %s290, %s291
      %p305 = scmp.eq.s32.totalorder %s38, 7
      %p306 = por %p304, %p305
      %p308 = scmp.ne.s32.totalorder %s291, %s307
      %p309 = scmp.eq.s32.totalorder %s38, 0
      %p310 = por %p308, %p309
      %s311 = ssub.s32 %s39, %s58
      %p312 = scmp.eq.s32.totalorder %s311, 0
      %s314 = sadd.s32 %s313, 1
      %s315 = scalar_select %p312, %s313, %s314
      %p318 = pneg %p312
      %p319 = scmp.eq.s32.totalorder %s32, 7
      %p320 = por %p318, %p319
      %p321 = scmp.ne.s32.totalorder %s313, %s316
      %p322 = scmp.eq.s32.totalorder %s32, 0
      %p323 = por %p321, %p322
      %p324 = scmp.ne.s32.totalorder %s313, %s316
      %p325 = scmp.eq.s32.totalorder %s37, 7
      %p326 = por %p324, %p325
      %p327 = scmp.ne.s32.totalorder %s316, %s317
      %p328 = scmp.eq.s32.totalorder %s37, 0
      %p329 = por %p327, %p328
      %p330 = scmp.ne.s32.totalorder %s316, %s317
      %p331 = scmp.eq.s32.totalorder %s38, 7
      %p332 = por %p330, %p331
      %p334 = scmp.ne.s32.totalorder %s317, %s333
      %p335 = scmp.eq.s32.totalorder %s38, 0
      %p336 = por %p334, %p335
      %s337 = ssub.s32 %s39, %s58
      %p338 = scmp.eq.s32.totalorder %s337, 0
      %s340 = sadd.s32 %s339, 1
      %s341 = scalar_select %p338, %s339, %s340
      %p344 = pneg %p338
      %p345 = scmp.eq.s32.totalorder %s32, 7
      %p346 = por %p344, %p345
      %p347 = scmp.ne.s32.totalorder %s339, %s342
      %p348 = scmp.eq.s32.totalorder %s32, 0
      %p349 = por %p347, %p348
      %p350 = scmp.ne.s32.totalorder %s339, %s342
      %p351 = scmp.eq.s32.totalorder %s37, 7
      %p352 = por %p350, %p351
      %p353 = scmp.ne.s32.totalorder %s342, %s343
      %p354 = scmp.eq.s32.totalorder %s37, 0
      %p355 = por %p353, %p354
      %p356 = scmp.ne.s32.totalorder %s342, %s343
      %p357 = scmp.eq.s32.totalorder %s38, 7
      %p358 = por %p356, %p357
      %p360 = scmp.ne.s32.totalorder %s343, %s359
      %p361 = scmp.eq.s32.totalorder %s38, 0
      %p362 = por %p360, %p361
      %s363 = ssub.s32 %s40, %s54
      %s364 = ssub.s32 %s41, %s50
      %s365 = sor.u32 %s363, %s364
      %s366 = ssub.s32 %s39, %s58
      %s367 = sor.u32 %s365, %s366
      %p368 = scmp.eq.s32.totalorder %s367, 0
      %s370 = sadd.s32 %s369, 1
      %s371 = scalar_select %p368, %s369, %s370
      %p374 = pneg %p368
      %p375 = scmp.eq.s32.totalorder %s32, 7
      %p376 = por %p374, %p375
      %p377 = scmp.ne.s32.totalorder %s369, %s372
      %p378 = scmp.eq.s32.totalorder %s32, 0
      %p379 = por %p377, %p378
      %p380 = scmp.ne.s32.totalorder %s369, %s372
      %p381 = scmp.eq.s32.totalorder %s37, 7
      %p382 = por %p380, %p381
      %p383 = scmp.ne.s32.totalorder %s372, %s373
      %p384 = scmp.eq.s32.totalorder %s37, 0
      %p385 = por %p383, %p384
      %p386 = scmp.ne.s32.totalorder %s372, %s373
      %p387 = scmp.eq.s32.totalorder %s38, 7
      %p388 = por %p386, %p387
      %p390 = scmp.ne.s32.totalorder %s373, %s389
      %p391 = scmp.eq.s32.totalorder %s38, 0
      %p392 = por %p390, %p391
      %p393 = scmp.le.s32.totalorder 1, %s32
      %p394 = scmp.lt.s32.totalorder %s32, 9
      %p395 = pnand %p393, %p394
      %p396 = pneg %p395
      // Predicated region
      $region9: #{tpu_custom_call.1} parent=5 // pred_check
        _
      $region10: #{tpu_custom_call.1} parent=5 // pred_check_branch
        %398 = sbr.rel (%p395) target = $region12
      $region11: #{tpu_custom_call.1} parent=5 // pred_region
        %s399 = ssub.s32 %s32, 1
        // Predicated region
        $region13: #{tpu_custom_call.1} parent=11 // pred_check
          %p400 = pneg %p277
        $region14: #{tpu_custom_call.1} parent=11 // pred_check_branch
          %402 = sbr.rel (%p400) target = $region16
        $region15: #{tpu_custom_call.1} parent=11 // pred_region
          %s404 = ssub.s32 2304, 2304
          %405 = vsyncadd [#allocation15], %s404
          %s406 = smul.addr %s42, 64
          %s407 = scalar_lea.hbm %s6, %s406
          %s408 = sshll.u32 [#allocation16], 4
          %s409 = int_to_ptr.vmem [resolvable:$true] %s408
          %414 = dma.hbm_to_vmem [thread:$0]  %s407, 2304, %s409, [#allocation15], 64, 64, 4
        $region16: #{tpu_custom_call.1} parent=11 // pred_fallthru
          _
        // Predicated region
        $region17: #{tpu_custom_call.1} parent=11 // pred_check
          %p415 = pneg %p303
        $region18: #{tpu_custom_call.1} parent=11 // pred_check_branch
          %417 = sbr.rel (%p415) target = $region20
        $region19: #{tpu_custom_call.1} parent=11 // pred_region
          %s419 = ssub.s32 1152, 1152
          %420 = vsyncadd [#allocation18], %s419
          %s421 = smul.addr %s42, 64
          %s422 = scalar_lea.hbm %s7, %s421
          %s423 = sshll.u32 [#allocation17], 4
          %s424 = int_to_ptr.vmem [resolvable:$true] %s423
          %429 = dma.hbm_to_vmem [thread:$0]  %s422, 1152, %s424, [#allocation18], 64, 64, 4
        $region20: #{tpu_custom_call.1} parent=11 // pred_fallthru
          _
        // Predicated region
        $region21: #{tpu_custom_call.1} parent=11 // pred_check
          %p430 = pneg %p329
        $region22: #{tpu_custom_call.1} parent=11 // pred_check_branch
          %432 = sbr.rel (%p430) target = $region24
        $region23: #{tpu_custom_call.1} parent=11 // pred_region
          %p433 = scmp.lt.s32.totalorder %s42, 0
          %s434 = scalar_select %p433, %s42, 0
          %s435 = scalar_lea.vmem %s8, %s434
        $region24: #{tpu_custom_call.1} parent=11 // pred_fallthru
          _
        // Predicated region
        $region25: #{tpu_custom_call.1} parent=11 // pred_check
          %p436 = pneg %p355
        $region26: #{tpu_custom_call.1} parent=11 // pred_check_branch
          %438 = sbr.rel (%p436) target = $region28
        $region27: #{tpu_custom_call.1} parent=11 // pred_region
          %p439 = scmp.lt.s32.totalorder %s42, 0
          %s440 = scalar_select %p439, %s42, 0
          %s441 = scalar_lea.vmem %s9, %s440
        $region28: #{tpu_custom_call.1} parent=11 // pred_fallthru
          _
      $region12: #{tpu_custom_call.1} parent=5 // pred_fallthru
        _
      %p442 = scmp.lt.s32.totalorder %s32, 8
      // Predicated region
      $region29: #{tpu_custom_call.1} parent=5 // pred_check
        %p443 = pneg %p442
      $region30: #{tpu_custom_call.1} parent=5 // pred_check_branch
        %445 = sbr.rel (%p443) target = $region32
      $region31: #{tpu_custom_call.1} parent=5 // pred_region
        // Predicated region
        $region33: #{tpu_custom_call.1} parent=31 // pred_check
          %p446 = pneg %p73
        $region34: #{tpu_custom_call.1} parent=31 // pred_check_branch
          %448 = sbr.rel (%p446) target = $region36
        $region35: #{tpu_custom_call.1} parent=31 // pred_region
          %s449 = sand.u32 %s63, 1
          %s450 = scalar_lea.sflag [#allocation6], %s449
          %s451 = sand.u32 %s63, 1
          %s452 = smul.addr %s451, 16
          %s453 = scalar_lea.vmem [#allocation5], %s452
          %s454 = smul.u32 4, %s41
          %s456 = ssub.s32 256, 256
          %457 = vsyncadd %s450, %s456
          %s458 = smul.addr %s40, 16
          %s459 = sadd.s32 %s454, %s458
          %s460 = smul.addr %s459, 64
          %s461 = scalar_lea.hbm %s0, %s460
          %s462 = sshll.u32 %s453, 4
          %s463 = int_to_ptr.vmem [resolvable:$true] %s462
          %468 = dma.hbm_to_vmem [thread:$0]  %s461, 256, %s463, %s450, 64, 64, 4
        $region36: #{tpu_custom_call.1} parent=31 // pred_fallthru
          _
        // Predicated region
        $region37: #{tpu_custom_call.1} parent=31 // pred_check
          %p469 = pneg %p109
        $region38: #{tpu_custom_call.1} parent=31 // pred_check_branch
          %471 = sbr.rel (%p469) target = $region40
        $region39: #{tpu_custom_call.1} parent=31 // pred_region
          %s472 = sand.u32 %s32, 1
          %s473 = scalar_lea.sflag [#allocation9], %s472
          %s474 = sand.u32 %s99, 1
          %s475 = smul.addr %s474, 4
          %s476 = scalar_lea.vmem [#allocation8], %s475
          %s477 = smul.u32 %s41, 4
          %s478 = ssub.s32 %s477, 1
          %p479 = scmp.gt.s32.totalorder %s478, 0
          %s480 = scalar_select %p479, %s478, 0
          %s482 = ssub.s32 64, 64
          %483 = vsyncadd %s473, %s482
          %s484 = smul.addr %s40, 16
          %s485 = sadd.s32 %s480, %s484
          %s486 = smul.addr %s485, 64
          %s487 = scalar_lea.hbm %s1, %s486
          %s489 = sshll.u32 %s476, 4
          %s490 = int_to_ptr.vmem [resolvable:$true] %s489
          %492 = dma.hbm_to_vmem [thread:$0]  %s487, 64, %s490, %s473
        $region40: #{tpu_custom_call.1} parent=31 // pred_fallthru
          _
        // Predicated region
        $region41: #{tpu_custom_call.1} parent=31 // pred_check
          %p493 = pneg %p145
        $region42: #{tpu_custom_call.1} parent=31 // pred_check_branch
          %495 = sbr.rel (%p493) target = $region44
        $region43: #{tpu_custom_call.1} parent=31 // pred_region
          %s496 = sand.u32 %s32, 1
          %s497 = scalar_lea.sflag [#allocation9], %s496
          %s498 = sand.u32 %s135, 1
          %s499 = smul.addr %s498, 4
          %s500 = scalar_lea.vmem [#allocation10], %s499
          %s501 = sadd.s32 %s41, 1
          %s502 = smul.u32 %s501, 4
          %p503 = scmp.lt.s32.totalorder %s502, 15
          %s504 = scalar_select %p503, %s502, 15
          %s506 = ssub.s32 64, 64
          %507 = vsyncadd %s497, %s506
          %s508 = smul.addr %s40, 16
          %s509 = sadd.s32 %s504, %s508
          %s510 = smul.addr %s509, 64
          %s511 = scalar_lea.hbm %s2, %s510
          %s513 = sshll.u32 %s500, 4
          %s514 = int_to_ptr.vmem [resolvable:$true] %s513
          %516 = dma.hbm_to_vmem [thread:$0]  %s511, 64, %s514, %s497
        $region44: #{tpu_custom_call.1} parent=31 // pred_fallthru
          _
        // Predicated region
        $region45: #{tpu_custom_call.1} parent=31 // pred_check
          %p517 = pneg %p173
        $region46: #{tpu_custom_call.1} parent=31 // pred_check_branch
          %519 = sbr.rel (%p517) target = $region48
        $region47: #{tpu_custom_call.1} parent=31 // pred_region
          %s520 = sand.u32 %s32, 1
          %s521 = scalar_lea.sflag [#allocation12], %s520
          %s522 = sand.u32 %s163, 1
          %s523 = smul.addr %s522, 16
          %s524 = scalar_lea.vmem [#allocation11], %s523
          %s525 = smul.u32 4, %s41
          %s527 = ssub.s32 256, 256
          %528 = vsyncadd %s521, %s527
          %s529 = smul.addr %s40, 16
          %s530 = sadd.s32 %s525, %s529
          %s531 = smul.addr %s530, 64
          %s532 = scalar_lea.hbm %s3, %s531
          %s533 = sshll.u32 %s524, 4
          %s534 = int_to_ptr.vmem [resolvable:$true] %s533
          %539 = dma.hbm_to_vmem [thread:$0]  %s532, 256, %s534, %s521, 64, 64, 4
        $region48: #{tpu_custom_call.1} parent=31 // pred_fallthru
          _
        // Predicated region
        $region49: #{tpu_custom_call.1} parent=31 // pred_check
          %p540 = pneg %p209
        $region50: #{tpu_custom_call.1} parent=31 // pred_check_branch
          %542 = sbr.rel (%p540) target = $region52
        $region51: #{tpu_custom_call.1} parent=31 // pred_region
          %s543 = sand.u32 %s32, 1
          %s544 = scalar_lea.sflag [#allocation12], %s543
          %s545 = sand.u32 %s199, 1
          %s546 = smul.addr %s545, 4
          %s547 = scalar_lea.vmem [#allocation13], %s546
          %s548 = smul.u32 %s41, 4
          %s549 = ssub.s32 %s548, 1
          %p550 = scmp.gt.s32.totalorder %s549, 0
          %s551 = scalar_select %p550, %s549, 0
          %s553 = ssub.s32 64, 64
          %554 = vsyncadd %s544, %s553
          %s555 = smul.addr %s40, 16
          %s556 = sadd.s32 %s551, %s555
          %s557 = smul.addr %s556, 64
          %s558 = scalar_lea.hbm %s4, %s557
          %s560 = sshll.u32 %s547, 4
          %s561 = int_to_ptr.vmem [resolvable:$true] %s560
          %563 = dma.hbm_to_vmem [thread:$0]  %s558, 64, %s561, %s544
        $region52: #{tpu_custom_call.1} parent=31 // pred_fallthru
          _
        // Predicated region
        $region53: #{tpu_custom_call.1} parent=31 // pred_check
          %p564 = pneg %p245
        $region54: #{tpu_custom_call.1} parent=31 // pred_check_branch
          %566 = sbr.rel (%p564) target = $region56
        $region55: #{tpu_custom_call.1} parent=31 // pred_region
          %s567 = sand.u32 %s32, 1
          %s568 = scalar_lea.sflag [#allocation15], %s567
          %s569 = sand.u32 %s235, 1
          %s570 = smul.addr %s569, 4
          %s571 = scalar_lea.vmem [#allocation14], %s570
          %s572 = sadd.s32 %s41, 1
          %s573 = smul.u32 %s572, 4
          %p574 = scmp.lt.s32.totalorder %s573, 15
          %s575 = scalar_select %p574, %s573, 15
          %s577 = ssub.s32 64, 64
          %578 = vsyncadd %s568, %s577
          %s579 = smul.addr %s40, 16
          %s580 = sadd.s32 %s575, %s579
          %s581 = smul.addr %s580, 64
          %s582 = scalar_lea.hbm %s5, %s581
          %s584 = sshll.u32 %s571, 4
          %s585 = int_to_ptr.vmem [resolvable:$true] %s584
          %587 = dma.hbm_to_vmem [thread:$0]  %s582, 64, %s585, %s568
        $region56: #{tpu_custom_call.1} parent=31 // pred_fallthru
          _
      $region32: #{tpu_custom_call.1} parent=5 // pred_fallthru
        _
      %p588 = scmp.le.s32.totalorder 1, %s32
      %p589 = scmp.lt.s32.totalorder %s32, 9
      %p590 = pnand %p588, %p589
      %p591 = pneg %p590
      // Predicated region
      $region57: #{tpu_custom_call.1} parent=5 // pred_check
        _
      $region58: #{tpu_custom_call.1} parent=5 // pred_check_branch
        %593 = sbr.rel (%p590) target = $region60
      $region59: #{tpu_custom_call.1} parent=5 // pred_region
        %s594 = ssub.s32 %s32, 1
        %s595 = sand.u32 %s66, 1
        %s596 = scalar_lea.sflag [#allocation6], %s595
        %s597 = sand.u32 %s66, 1
        %s598 = smul.addr %s597, 16
        %s599 = scalar_lea.vmem [#allocation5], %s598
        // Predicated region
        $region61: #{tpu_custom_call.1} parent=59 // pred_check
          %p600 = pneg %p79
        $region62: #{tpu_custom_call.1} parent=59 // pred_check_branch
          %602 = sbr.rel (%p600) target = $region64
        $region63: #{tpu_custom_call.1} parent=59 // pred_region
          %603 = dma.done %s596, 256
        $region64: #{tpu_custom_call.1} parent=59 // pred_fallthru
          _
        %s604 = sand.u32 %s37, 1
        %s605 = scalar_lea.sflag [#allocation9], %s604
        %s606 = sand.u32 %s102, 1
        %s607 = smul.addr %s606, 4
        %s608 = scalar_lea.vmem [#allocation8], %s607
        // Predicated region
        $region65: #{tpu_custom_call.1} parent=59 // pred_check
          %p609 = pneg %p115
        $region66: #{tpu_custom_call.1} parent=59 // pred_check_branch
          %611 = sbr.rel (%p609) target = $region68
        $region67: #{tpu_custom_call.1} parent=59 // pred_region
          %612 = dma.done %s605, 64
        $region68: #{tpu_custom_call.1} parent=59 // pred_fallthru
          _
        %s613 = sand.u32 %s37, 1
        %s614 = scalar_lea.sflag [#allocation9], %s613
        %s615 = sand.u32 %s138, 1
        %s616 = smul.addr %s615, 4
        %s617 = scalar_lea.vmem [#allocation10], %s616
        // Predicated region
        $region69: #{tpu_custom_call.1} parent=59 // pred_check
          %p618 = pneg %p151
        $region70: #{tpu_custom_call.1} parent=59 // pred_check_branch
          %620 = sbr.rel (%p618) target = $region72
        $region71: #{tpu_custom_call.1} parent=59 // pred_region
          %621 = dma.done %s614, 64
        $region72: #{tpu_custom_call.1} parent=59 // pred_fallthru
          _
        %s622 = sand.u32 %s37, 1
        %s623 = scalar_lea.sflag [#allocation12], %s622
        %s624 = sand.u32 %s166, 1
        %s625 = smul.addr %s624, 16
        %s626 = scalar_lea.vmem [#allocation11], %s625
        // Predicated region
        $region73: #{tpu_custom_call.1} parent=59 // pred_check
          %p627 = pneg %p179
        $region74: #{tpu_custom_call.1} parent=59 // pred_check_branch
          %629 = sbr.rel (%p627) target = $region76
        $region75: #{tpu_custom_call.1} parent=59 // pred_region
          %630 = dma.done %s623, 256
        $region76: #{tpu_custom_call.1} parent=59 // pred_fallthru
          _
        %s631 = sand.u32 %s37, 1
        %s632 = scalar_lea.sflag [#allocation12], %s631
        %s633 = sand.u32 %s202, 1
        %s634 = smul.addr %s633, 4
        %s635 = scalar_lea.vmem [#allocation13], %s634
        // Predicated region
        $region77: #{tpu_custom_call.1} parent=59 // pred_check
          %p636 = pneg %p215
        $region78: #{tpu_custom_call.1} parent=59 // pred_check_branch
          %638 = sbr.rel (%p636) target = $region80
        $region79: #{tpu_custom_call.1} parent=59 // pred_region
          %639 = dma.done %s632, 64
        $region80: #{tpu_custom_call.1} parent=59 // pred_fallthru
          _
        %s640 = sand.u32 %s37, 1
        %s641 = scalar_lea.sflag [#allocation15], %s640
        %s642 = sand.u32 %s238, 1
        %s643 = smul.addr %s642, 4
        %s644 = scalar_lea.vmem [#allocation14], %s643
        // Predicated region
        $region81: #{tpu_custom_call.1} parent=59 // pred_check
          %p645 = pneg %p251
        $region82: #{tpu_custom_call.1} parent=59 // pred_check_branch
          %647 = sbr.rel (%p645) target = $region84
        $region83: #{tpu_custom_call.1} parent=59 // pred_region
          %648 = dma.done %s641, 64
        $region84: #{tpu_custom_call.1} parent=59 // pred_fallthru
          _
        // Predicated region
        $region85: #{tpu_custom_call.1} parent=59 // pred_check
          %p649 = pneg %p277
        $region86: #{tpu_custom_call.1} parent=59 // pred_check_branch
          %651 = sbr.rel (%p649) target = $region88
        $region87: #{tpu_custom_call.1} parent=59 // pred_region
          %652 = dma.done [#allocation15], 2304
        $region88: #{tpu_custom_call.1} parent=59 // pred_fallthru
          _
        // Predicated region
        $region89: #{tpu_custom_call.1} parent=59 // pred_check
          %p653 = pneg %p303
        $region90: #{tpu_custom_call.1} parent=59 // pred_check_branch
          %655 = sbr.rel (%p653) target = $region92
        $region91: #{tpu_custom_call.1} parent=59 // pred_region
          %656 = dma.done [#allocation18], 1152
        $region92: #{tpu_custom_call.1} parent=59 // pred_fallthru
          _
        %s657 = sand.u32 %s66, 1
        %s658 = scalar_lea.sflag [#allocation6], %s657
        %s659 = sand.u32 %s66, 1
        %s660 = smul.addr %s659, 16
        %s661 = scalar_lea.vmem [#allocation5], %s660
        %p662 = pneg %p79
        %p663 = pneg %p76
        %s664 = sand.u32 %s37, 1
        %s665 = scalar_lea.sflag [#allocation9], %s664
        %s666 = sand.u32 %s102, 1
        %s667 = smul.addr %s666, 4
        %s668 = scalar_lea.vmem [#allocation8], %s667
        %p669 = pneg %p115
        %p670 = pneg %p112
        %s671 = sand.u32 %s37, 1
        %s672 = scalar_lea.sflag [#allocation9], %s671
        %s673 = sand.u32 %s138, 1
        %s674 = smul.addr %s673, 4
        %s675 = scalar_lea.vmem [#allocation10], %s674
        %p676 = pneg %p151
        %p677 = pneg %p148
        %s678 = sand.u32 %s37, 1
        %s679 = scalar_lea.sflag [#allocation12], %s678
        %s680 = sand.u32 %s166, 1
        %s681 = smul.addr %s680, 16
        %s682 = scalar_lea.vmem [#allocation11], %s681
        %p683 = pneg %p179
        %p684 = pneg %p176
        %s685 = sand.u32 %s37, 1
        %s686 = scalar_lea.sflag [#allocation12], %s685
        %s687 = sand.u32 %s202, 1
        %s688 = smul.addr %s687, 4
        %s689 = scalar_lea.vmem [#allocation13], %s688
        %p690 = pneg %p215
        %p691 = pneg %p212
        %s692 = sand.u32 %s37, 1
        %s693 = scalar_lea.sflag [#allocation15], %s692
        %s694 = sand.u32 %s238, 1
        %s695 = smul.addr %s694, 4
        %s696 = scalar_lea.vmem [#allocation14], %s695
        %p697 = pneg %p251
        %p698 = pneg %p248
        %p699 = pneg %p277
        %p700 = pneg %p274
        %p701 = pneg %p303
        %p702 = pneg %p300
        %p703 = scmp.lt.s32.totalorder %s42, 0
        %s704 = scalar_select %p703, %s42, 0
        %s705 = scalar_lea.vmem %s8, %s704
        %p706 = pneg %p329
        %p707 = pneg %p326
        %p708 = scmp.lt.s32.totalorder %s42, 0
        %s709 = scalar_select %p708, %s42, 0
        %s710 = scalar_lea.vmem %s9, %s709
        %p711 = pneg %p355
        %p712 = pneg %p352
        %p713 = pneg %p385
        %p714 = pneg %p382
        %s715 = sand.u32 %s372, 1
        %s716 = scalar_lea.sflag [#allocation7], %s715
        %s717 = sand.u32 %s372, 1
        %s718 = smul.addr %s717, 16
        %s719 = scalar_lea.vmem [#allocation19], %s718
        %s720 = smul.u32 4, %s44
        %s721 = smul.u32 %s44, 4
        %s722 = ssub.s32 %s721, 1
        %p723 = scmp.gt.s32.totalorder %s722, 0
        %s724 = scalar_select %p723, %s722, 0
        %s725 = sadd.s32 %s44, 1
        %s726 = smul.u32 %s725, 4
        %p727 = scmp.lt.s32.totalorder %s726, 15
        %s728 = scalar_select %p727, %s726, 15
        %s729 = smul.u32 4, %s44
        %s730 = smul.u32 %s44, 4
        %s731 = ssub.s32 %s730, 1
        %p732 = scmp.gt.s32.totalorder %s731, 0
        %s733 = scalar_select %p732, %s731, 0
        %s734 = sadd.s32 %s44, 1
        %s735 = smul.u32 %s734, 4
        %p736 = scmp.lt.s32.totalorder %s735, 15
        %s737 = scalar_select %p736, %s735, 15
        %p738 = scmp.lt.s32.totalorder %s42, 0
        %s739 = scalar_select %p738, %s42, 0
        %s740 = scalar_lea.vmem %s8, %s739
        %p741 = scmp.lt.s32.totalorder %s42, 0
        %s742 = scalar_select %p741, %s42, 0
        %s743 = scalar_lea.vmem %s9, %s742
        %s744 = smul.u32 4, %s44
        %vm746 = vcmask 253952
        %vm747 = vsmask.f32 256
        %vm748 = vmand %vm746, %vm747
        %v749 = vld [vmem:[#allocation2] sm:$0x1]
        %v750 = vsel %vm748, 0, %v749
        %751 = vst [vmem:[#allocation2] sm:$0x1] %v750
        %v752 = vld [vmem:[#allocation2 + $0x8] sm:$0x1]
        %v753 = vsel %vm748, 0, %v752
        %754 = vst [vmem:[#allocation2 + $0x8] sm:$0x1] %v753
        %v755 = vld [vmem:[#allocation2 + $0x10] sm:$0x1]
        %v756 = vsel %vm748, 0, %v755
        %757 = vst [vmem:[#allocation2 + $0x10] sm:$0x1] %v756
        %v758 = vld [vmem:[#allocation2 + $0x18] sm:$0x1]
        %v759 = vsel %vm748, 0, %v758
        %760 = vst [vmem:[#allocation2 + $0x18] sm:$0x1] %v759
        %v761 = vld [vmem:[#allocation2 + $0x20] sm:$0x1]
        %v762 = vsel %vm748, 0, %v761
        %763 = vst [vmem:[#allocation2 + $0x20] sm:$0x1] %v762
        %v764 = vld [vmem:[#allocation2 + $0x28] sm:$0x1]
        %v765 = vsel %vm748, 0, %v764
        %766 = vst [vmem:[#allocation2 + $0x28] sm:$0x1] %v765
        %vm767 = vsmask.f32 7938
        %vm768 = vmand %vm746, %vm767
        %v769 = vld [vmem:[#allocation2 + $0x4] sm:$0x1]
        %v770 = vsel %vm768, 0, %v769
        %771 = vst [vmem:[#allocation2 + $0x4] sm:$0x1] %v770
        %v772 = vld [vmem:[#allocation2 + $0xc] sm:$0x1]
        %v773 = vsel %vm768, 0, %v772
        %774 = vst [vmem:[#allocation2 + $0xc] sm:$0x1] %v773
        %v775 = vld [vmem:[#allocation2 + $0x14] sm:$0x1]
        %v776 = vsel %vm768, 0, %v775
        %777 = vst [vmem:[#allocation2 + $0x14] sm:$0x1] %v776
        %v778 = vld [vmem:[#allocation2 + $0x1c] sm:$0x1]
        %v779 = vsel %vm768, 0, %v778
        %780 = vst [vmem:[#allocation2 + $0x1c] sm:$0x1] %v779
        %v781 = vld [vmem:[#allocation2 + $0x24] sm:$0x1]
        %v782 = vsel %vm768, 0, %v781
        %783 = vst [vmem:[#allocation2 + $0x24] sm:$0x1] %v782
        %v784 = vld [vmem:[#allocation2 + $0x2c] sm:$0x1]
        %v785 = vsel %vm768, 0, %v784
        %786 = vst [vmem:[#allocation2 + $0x2c] sm:$0x1] %v785
        %p787 = scmp.gt.s32.totalorder %s44, 0
        %s788 = scalar_select %p787, 1, 0
        %s789 = scvt.s32.f32 %s788
        %p791 = scmp.ne.f32.partialorder %s789, %s789
        %s792 = sshrl.u32 %s789, 16
        %s793 = sand.u32 %s792, 1
        %s794 = sadd.s32 32767, %s793
        %s795 = sadd.s32 %s789, %s794
        %s796 = sand.u32 %s795, 4294901760
        %s797 = scalar_select %p791, 2143289344, %s796
        %s799 = sshrl.u32 %s797, 16
        %p800 = scmp.lt.s32.totalorder %s44, 3
        %s801 = scalar_select %p800, 1, 0
        %s802 = scvt.s32.f32 %s801
        %p804 = scmp.ne.f32.partialorder %s802, %s802
        %s805 = sshrl.u32 %s802, 16
        %s806 = sand.u32 %s805, 1
        %s807 = sadd.s32 32767, %s806
        %s808 = sadd.s32 %s802, %s807
        %s809 = sand.u32 %s808, 4294901760
        %s810 = scalar_select %p804, 2143289344, %s809
        %s812 = sshrl.u32 %s810, 16
        %v813 = vld [vmem:[%s608] sm:$0xf]
        %s814 = sshll.u32 %s799, 16
        %s815 = sor.u32 %s799, %s814
        %v816 = vstv %s815
        %v818 = vmul.bf16 %v813, %v816
        %v820 = vshrl.u32 %v818, 16
        %v822 = vrot.slane %v820, 7
        %v823 = vshll.u32 %v818, 16
        %v825 = vor.u32 %v822, %v823
        %v826 = vrot.slane %v822, 4
        %vm829 = vcmask 257024
        %vm830 = vmand %vm829, %vm767
        %v831 = vld [vmem:[#allocation2] sm:$0xf]
        %v832 = vsel %vm830, %v825, %v831
        %833 = vst [vmem:[#allocation2] sm:$0xf] %v832
        %v834 = vld [vmem:[#allocation2 + $0x4] sm:$0x1]
        %v835 = vsel %vm748, %v826, %v834
        %836 = vst [vmem:[#allocation2 + $0x4] sm:$0x1] %v835
        %v837 = vld [vmem:[%s617] sm:$0xf]
        %s838 = sshll.u32 %s812, 16
        %s839 = sor.u32 %s812, %s838
        %v840 = vstv %s839
        %v842 = vmul.bf16 %v837, %v840
        %v844 = vshrl.u32 %v842, 16
        %v846 = vrot.slane %v844, 7
        %v847 = vshll.u32 %v842, 16
        %v849 = vor.u32 %v846, %v847
        %v850 = vrot.slane %v846, 4
        %s853 = scalar_lea.vmem [#allocation2], 40
        %v854 = vld [vmem:[%s853] sm:$0xf]
        %v855 = vsel %vm830, %v849, %v854
        %856 = vst [vmem:[%s853] sm:$0xf] %v855
        %v857 = vld [vmem:[%s853 + $0x4] sm:$0x1]
        %v858 = vsel %vm748, %v850, %v857
        %859 = vst [vmem:[%s853 + $0x4] sm:$0x1] %v858
        %v860 = vld [vmem:[%s599] sm:$0xf]
        %v861 = vld [vmem:[%s599 + $0x4] sm:$0xf]
        %v862 = vld [vmem:[%s599 + $0x8] sm:$0xf]
        %v863 = vld [vmem:[%s599 + $0xc] sm:$0xf]
        %v865 = vshrl.u32 %v860, 16
        %v867 = vrot.slane %v865, 7
        %v868 = vshll.u32 %v860, 16
        %v870 = vor.u32 %v867, %v868
        %v871 = vrot.slane %v867, 4
        %v873 = vshrl.u32 %v861, 16
        %v875 = vrot.slane %v873, 7
        %v876 = vshll.u32 %v861, 16
        %v878 = vor.u32 %v875, %v876
        %v879 = vrot.slane %v875, 4
        %v881 = vshrl.u32 %v862, 16
        %v883 = vrot.slane %v881, 7
        %v884 = vshll.u32 %v862, 16
        %v886 = vor.u32 %v883, %v884
        %v887 = vrot.slane %v883, 4
        %v889 = vshrl.u32 %v863, 16
        %v891 = vrot.slane %v889, 7
        %v892 = vshll.u32 %v863, 16
        %v894 = vor.u32 %v891, %v892
        %v895 = vrot.slane %v891, 4
        %s904 = scalar_lea.vmem [#allocation2], 8
        %v905 = vld [vmem:[%s904] sm:$0xf]
        %v906 = vsel %vm830, %v870, %v905
        %907 = vst [vmem:[%s904] sm:$0xf] %v906
        %v908 = vld [vmem:[%s904 + $0x4] sm:$0x1]
        %v909 = vsel %vm748, %v871, %v908
        %910 = vst [vmem:[%s904 + $0x4] sm:$0x1] %v909
        %v911 = vld [vmem:[%s904 + $0x8] sm:$0xf]
        %v912 = vsel %vm830, %v878, %v911
        %913 = vst [vmem:[%s904 + $0x8] sm:$0xf] %v912
        %v914 = vld [vmem:[%s904 + $0xc] sm:$0x1]
        %v915 = vsel %vm748, %v879, %v914
        %916 = vst [vmem:[%s904 + $0xc] sm:$0x1] %v915
        %v917 = vld [vmem:[%s904 + $0x10] sm:$0xf]
        %v918 = vsel %vm830, %v886, %v917
        %919 = vst [vmem:[%s904 + $0x10] sm:$0xf] %v918
        %v920 = vld [vmem:[%s904 + $0x14] sm:$0x1]
        %v921 = vsel %vm748, %v887, %v920
        %922 = vst [vmem:[%s904 + $0x14] sm:$0x1] %v921
        %v923 = vld [vmem:[%s904 + $0x18] sm:$0xf]
        %v924 = vsel %vm830, %v894, %v923
        %925 = vst [vmem:[%s904 + $0x18] sm:$0xf] %v924
        %v926 = vld [vmem:[%s904 + $0x1c] sm:$0x1]
        %v927 = vsel %vm748, %v895, %v926
        %928 = vst [vmem:[%s904 + $0x1c] sm:$0x1] %v927
        %v929 = vld [vmem:[#allocation2] sm:$0xf]
        %v930 = vld [vmem:[#allocation2 + $0x8] sm:$0xf]
        %v931 = vld [vmem:[#allocation2 + $0x10] sm:$0xf]
        %v932 = vld [vmem:[#allocation2 + $0x18] sm:$0xf]
        %v933 = vld [vmem:[#allocation16] sm:$0xf]
        %v934 = vld [vmem:[#allocation16 + $0x4] sm:$0xf]
        %v935 = vld [vmem:[#allocation16 + $0x8] sm:$0xf]
        %v936 = vld [vmem:[#allocation16 + $0xc] sm:$0xf]
        %v941 = vunpack.c.l.b16 %v929
        %v942 = vunpack.c.l.b16 %v930
        %v943 = vunpack.c.l.b16 %v931
        %v944 = vunpack.c.l.b16 %v932
        %v945 = vpack.c.b16 %v942, %v941
        %v946 = vpack.c.b16 %v944, %v943
        %v951 = vunpack.c.l.b16 %v933
        %v952 = vunpack.c.l.b16 %v934
        %v953 = vunpack.c.l.b16 %v935
        %v954 = vunpack.c.l.b16 %v936
        %v955 = vpack.c.b16 %v952, %v951
        %v956 = vpack.c.b16 %v954, %v953
        %vm959 = vcmask 261120
        %v961 = vsel %vm959, %v945, 0
        %v964 = vsel %vm959, %v946, 0
        %966 = vmatprep.subr.bf16.mxu0 0
        %967 = vmatpush1.bf16.msra.mxu0 0
        %968 = vmatprep.subr.bf16.mxu0 0
        %969 = vmatpush1.bf16.msra.mxu0 0
        %970 = vmatprep.subr.bf16.mxu0 0
        %971 = vmatpush1.bf16.msra.mxu0 0
        %972 = vmatprep.subr.bf16.mxu0 0
        %973 = vmatpush1.bf16.msra.mxu0 0
        %974 = vmatprep.subr.bf16.mxu0 0
        %975 = vmatpush1.bf16.msra.mxu0 0
        %976 = vmatprep.subr.bf16.mxu0 0
        %977 = vmatpush1.bf16.msra.mxu0 0
        %978 = vmatprep.subr.bf16.mxu0 0
        %979 = vmatpush1.bf16.msra.mxu0 %v956
        %980 = vmatprep.subr.bf16.mxu0 0
        %981 = vmatpush1.bf16.msra.mxu0 %v955
        %982 = vmatprep.subr.bf16.mxu0 0
        %983 = vmatpush2.bf16.msra.mxu0 0
        %984 = vmatprep.subr.bf16.mxu0 0
        %985 = vmatpush2.bf16.msra.mxu0 0
        %986 = vmatprep.subr.bf16.mxu0 0
        %987 = vmatpush2.bf16.msra.mxu0 0
        %988 = vmatprep.subr.bf16.mxu0 0
        %989 = vmatpush2.bf16.msra.mxu0 0
        %990 = vmatprep.subr.bf16.mxu0 0
        %991 = vmatpush2.bf16.msra.mxu0 0
        %992 = vmatprep.subr.bf16.mxu0 0
        %993 = vmatpush2.bf16.msra.mxu0 0
        %994 = vmatprep.subr.bf16.mxu0 0
        %995 = vmatpush2.bf16.msra.mxu0 0
        %996 = vmatprep.subr.bf16.mxu0 0
        %997 = vmatpush2.bf16.msra.mxu0 0
        %998 = vmatprep.mubr.bf16.mxu0 0
        %999 = vmatmul.mubr.bf16.gmra.mxu0 %v961
        %v1000 = vpop.f32.mrf.mxu0
        %v1001 = vadd.f32 0.0, %v1000
        %v1002 = vpop.f32.mrf.mxu0
        %v1003 = vpop.f32.mrf.mxu0
        %v1004 = vadd.f32 0.0, %v1003
        %v1005 = vpop.f32.mrf.mxu0
        %1006 = vmatprep.mubr.bf16.mxu0 0
        %1007 = vmatmul.mubr.bf16.gmra.mxu0 %v964
        %v1008 = vpop.f32.mrf.mxu0
        %v1009 = vadd.f32 0.0, %v1008
        %v1010 = vpop.f32.mrf.mxu0
        %v1011 = vpop.f32.mrf.mxu0
        %v1012 = vadd.f32 0.0, %v1011
        %v1013 = vpop.f32.mrf.mxu0
        %1014 = vdwg.mxu0
        %1015 = vst [vmem:[#allocation4] sm:$0xff] %v1001
        %1016 = vst [vmem:[#allocation4 + $0x8] sm:$0xff] %v1004
        %1017 = vst [vmem:[#allocation4 + $0x10] sm:$0xff] %v1009
        %1018 = vst [vmem:[#allocation4 + $0x18] sm:$0xff] %v1012
        %v1019 = vld [vmem:[#allocation2] sm:$0xf]
        %v1020 = vld [vmem:[#allocation2 + $0x4] sm:$0x1]
        %v1021 = vld [vmem:[#allocation2 + $0x8] sm:$0xf]
        %v1022 = vld [vmem:[#allocation2 + $0xc] sm:$0x1]
        %v1023 = vld [vmem:[#allocation2 + $0x10] sm:$0xf]
        %v1024 = vld [vmem:[#allocation2 + $0x14] sm:$0x1]
        %v1025 = vld [vmem:[#allocation2 + $0x18] sm:$0xf]
        %v1026 = vld [vmem:[#allocation2 + $0x1c] sm:$0x1]
        %vm1027 = vsmask.f32 3328
        %vm1028 = vsmask.f32 7440
        %vm1029 = vmor %vm1027, %vm1028
        %v1031 = vshrl.u32 %v1019, 16
        %v1033 = vrot.slane %v1031, 4
        %v1034 = vshll.u32 %v1019, 16
        %v1036 = vrot.slane %v1034, 5
        %v1037 = vor.u32 %v1033, %v1036
        %v1038 = vrot.slane %v1037, 4
        %v1040 = vshll.u32 %v1020, 16
        %v1042 = vrot.slane %v1040, 5
        %v1043 = vsel %vm1029, %v1038, %v1042
        %v1045 = vshrl.u32 %v1021, 16
        %v1047 = vrot.slane %v1045, 4
        %v1048 = vshll.u32 %v1021, 16
        %v1050 = vrot.slane %v1048, 5
        %v1051 = vor.u32 %v1047, %v1050
        %v1052 = vrot.slane %v1051, 4
        %v1054 = vshll.u32 %v1022, 16
        %v1056 = vrot.slane %v1054, 5
        %v1057 = vsel %vm1029, %v1052, %v1056
        %v1059 = vshrl.u32 %v1023, 16
        %v1061 = vrot.slane %v1059, 4
        %v1062 = vshll.u32 %v1023, 16
        %v1064 = vrot.slane %v1062, 5
        %v1065 = vor.u32 %v1061, %v1064
        %v1066 = vrot.slane %v1065, 4
        %v1068 = vshll.u32 %v1024, 16
        %v1070 = vrot.slane %v1068, 5
        %v1071 = vsel %vm1029, %v1066, %v1070
        %v1073 = vshrl.u32 %v1025, 16
        %v1075 = vrot.slane %v1073, 4
        %v1076 = vshll.u32 %v1025, 16
        %v1078 = vrot.slane %v1076, 5
        %v1079 = vor.u32 %v1075, %v1078
        %v1080 = vrot.slane %v1079, 4
        %v1082 = vshll.u32 %v1026, 16
        %v1084 = vrot.slane %v1082, 5
        %v1085 = vsel %vm1029, %v1080, %v1084
        %s1086 = scalar_lea.vmem [#allocation16], 16
        %v1087 = vld [vmem:[%s1086] sm:$0xf]
        %v1088 = vld [vmem:[%s1086 + $0x4] sm:$0xf]
        %v1089 = vld [vmem:[%s1086 + $0x8] sm:$0xf]
        %v1090 = vld [vmem:[%s1086 + $0xc] sm:$0xf]
        %v1091 = vunpack.c.l.b16 %v1043
        %v1092 = vunpack.c.l.b16 %v1057
        %v1093 = vunpack.c.l.b16 %v1071
        %v1094 = vunpack.c.l.b16 %v1085
        %v1095 = vpack.c.b16 %v1092, %v1091
        %v1096 = vpack.c.b16 %v1094, %v1093
        %v1101 = vunpack.c.l.b16 %v1087
        %v1102 = vunpack.c.l.b16 %v1088
        %v1103 = vunpack.c.l.b16 %v1089
        %v1104 = vunpack.c.l.b16 %v1090
        %v1105 = vpack.c.b16 %v1102, %v1101
        %v1106 = vpack.c.b16 %v1104, %v1103
        %v1110 = vsel %vm959, %v1095, 0
        %v1113 = vsel %vm959, %v1096, 0
        %1115 = vmatprep.subr.bf16.mxu0 0
        %1116 = vmatpush1.bf16.msra.mxu0 0
        %1117 = vmatprep.subr.bf16.mxu0 0
        %1118 = vmatpush1.bf16.msra.mxu0 0
        %1119 = vmatprep.subr.bf16.mxu0 0
        %1120 = vmatpush1.bf16.msra.mxu0 0
        %1121 = vmatprep.subr.bf16.mxu0 0
        %1122 = vmatpush1.bf16.msra.mxu0 0
        %1123 = vmatprep.subr.bf16.mxu0 0
        %1124 = vmatpush1.bf16.msra.mxu0 0
        %1125 = vmatprep.subr.bf16.mxu0 0
        %1126 = vmatpush1.bf16.msra.mxu0 0
        %1127 = vmatprep.subr.bf16.mxu0 0
        %1128 = vmatpush1.bf16.msra.mxu0 %v1106
        %1129 = vmatprep.subr.bf16.mxu0 0
        %1130 = vmatpush1.bf16.msra.mxu0 %v1105
        %1131 = vmatprep.subr.bf16.mxu0 0
        %1132 = vmatpush2.bf16.msra.mxu0 0
        %1133 = vmatprep.subr.bf16.mxu0 0
        %1134 = vmatpush2.bf16.msra.mxu0 0
        %1135 = vmatprep.subr.bf16.mxu0 0
        %1136 = vmatpush2.bf16.msra.mxu0 0
        %1137 = vmatprep.subr.bf16.mxu0 0
        %1138 = vmatpush2.bf16.msra.mxu0 0
        %1139 = vmatprep.subr.bf16.mxu0 0
        %1140 = vmatpush2.bf16.msra.mxu0 0
        %1141 = vmatprep.subr.bf16.mxu0 0
        %1142 = vmatpush2.bf16.msra.mxu0 0
        %1143 = vmatprep.subr.bf16.mxu0 0
        %1144 = vmatpush2.bf16.msra.mxu0 0
        %1145 = vmatprep.subr.bf16.mxu0 0
        %1146 = vmatpush2.bf16.msra.mxu0 0
        %1147 = vmatprep.mubr.bf16.mxu0 0
        %1148 = vmatmul.mubr.bf16.gmra.mxu0 %v1110
        %v1149 = vpop.f32.mrf.mxu0
        %v1150 = vadd.f32 0.0, %v1149
        %v1151 = vpop.f32.mrf.mxu0
        %v1152 = vpop.f32.mrf.mxu0
        %v1153 = vadd.f32 0.0, %v1152
        %v1154 = vpop.f32.mrf.mxu0
        %1155 = vmatprep.mubr.bf16.mxu0 0
        %1156 = vmatmul.mubr.bf16.gmra.mxu0 %v1113
        %v1157 = vpop.f32.mrf.mxu0
        %v1158 = vadd.f32 0.0, %v1157
        %v1159 = vpop.f32.mrf.mxu0
        %v1160 = vpop.f32.mrf.mxu0
        %v1161 = vadd.f32 0.0, %v1160
        %v1162 = vpop.f32.mrf.mxu0
        %1163 = vdwg.mxu0
        %v1164 = vld [vmem:[#allocation4] sm:$0xff]
        %v1165 = vld [vmem:[#allocation4 + $0x8] sm:$0xff]
        %v1166 = vld [vmem:[#allocation4 + $0x10] sm:$0xff]
        %v1167 = vld [vmem:[#allocation4 + $0x18] sm:$0xff]
        %v1168 = vadd.f32 %v1164, %v1150
        %v1169 = vadd.f32 %v1165, %v1153
        %v1170 = vadd.f32 %v1166, %v1158
        %v1171 = vadd.f32 %v1167, %v1161
        %1172 = vst [vmem:[#allocation4] sm:$0xff] %v1168
        %1173 = vst [vmem:[#allocation4 + $0x8] sm:$0xff] %v1169
        %1174 = vst [vmem:[#allocation4 + $0x10] sm:$0xff] %v1170
        %1175 = vst [vmem:[#allocation4 + $0x18] sm:$0xff] %v1171
        %v1176 = vld [vmem:[#allocation2] sm:$0xe]
        %v1177 = vld [vmem:[#allocation2 + $0x4] sm:$0x1]
        %v1178 = vld [vmem:[#allocation2 + $0x8] sm:$0xe]
        %v1179 = vld [vmem:[#allocation2 + $0xc] sm:$0x1]
        %v1180 = vld [vmem:[#allocation2 + $0x10] sm:$0xe]
        %v1181 = vld [vmem:[#allocation2 + $0x14] sm:$0x1]
        %v1182 = vld [vmem:[#allocation2 + $0x18] sm:$0xe]
        %v1183 = vld [vmem:[#allocation2 + $0x1c] sm:$0x1]
        %vm1192 = vcmask 1042432
        %vm1193 = vcmask 1046532
        %vm1194 = vmor %vm1192, %vm1193
        %v1195 = vrot.slane %v1176, 5
        %v1196 = vrot.slane %v1195, 4
        %v1197 = vrot.slane %v1177, 5
        %v1198 = vsel %vm1194, %v1196, %v1197
        %v1199 = vrot.slane %v1178, 5
        %v1200 = vrot.slane %v1199, 4
        %v1201 = vrot.slane %v1179, 5
        %v1202 = vsel %vm1194, %v1200, %v1201
        %v1203 = vrot.slane %v1180, 5
        %v1204 = vrot.slane %v1203, 4
        %v1205 = vrot.slane %v1181, 5
        %v1206 = vsel %vm1194, %v1204, %v1205
        %v1207 = vrot.slane %v1182, 5
        %v1208 = vrot.slane %v1207, 4
        %v1209 = vrot.slane %v1183, 5
        %v1210 = vsel %vm1194, %v1208, %v1209
        %s1211 = scalar_lea.vmem [#allocation16], 32
        %v1212 = vld [vmem:[%s1211] sm:$0xf]
        %v1213 = vld [vmem:[%s1211 + $0x4] sm:$0xf]
        %v1214 = vld [vmem:[%s1211 + $0x8] sm:$0xf]
        %v1215 = vld [vmem:[%s1211 + $0xc] sm:$0xf]
        %v1216 = vunpack.c.l.b16 %v1198
        %v1217 = vunpack.c.l.b16 %v1202
        %v1218 = vunpack.c.l.b16 %v1206
        %v1219 = vunpack.c.l.b16 %v1210
        %v1220 = vpack.c.b16 %v1217, %v1216
        %v1221 = vpack.c.b16 %v1219, %v1218
        %v1226 = vunpack.c.l.b16 %v1212
        %v1227 = vunpack.c.l.b16 %v1213
        %v1228 = vunpack.c.l.b16 %v1214
        %v1229 = vunpack.c.l.b16 %v1215
        %v1230 = vpack.c.b16 %v1227, %v1226
        %v1231 = vpack.c.b16 %v1229, %v1228
        %v1235 = vsel %vm959, %v1220, 0
        %v1238 = vsel %vm959, %v1221, 0
        %1240 = vmatprep.subr.bf16.mxu0 0
        %1241 = vmatpush1.bf16.msra.mxu0 0
        %1242 = vmatprep.subr.bf16.mxu0 0
        %1243 = vmatpush1.bf16.msra.mxu0 0
        %1244 = vmatprep.subr.bf16.mxu0 0
        %1245 = vmatpush1.bf16.msra.mxu0 0
        %1246 = vmatprep.subr.bf16.mxu0 0
        %1247 = vmatpush1.bf16.msra.mxu0 0
        %1248 = vmatprep.subr.bf16.mxu0 0
        %1249 = vmatpush1.bf16.msra.mxu0 0
        %1250 = vmatprep.subr.bf16.mxu0 0
        %1251 = vmatpush1.bf16.msra.mxu0 0
        %1252 = vmatprep.subr.bf16.mxu0 0
        %1253 = vmatpush1.bf16.msra.mxu0 %v1231
        %1254 = vmatprep.subr.bf16.mxu0 0
        %1255 = vmatpush1.bf16.msra.mxu0 %v1230
        %1256 = vmatprep.subr.bf16.mxu0 0
        %1257 = vmatpush2.bf16.msra.mxu0 0
        %1258 = vmatprep.subr.bf16.mxu0 0
        %1259 = vmatpush2.bf16.msra.mxu0 0
        %1260 = vmatprep.subr.bf16.mxu0 0
        %1261 = vmatpush2.bf16.msra.mxu0 0
        %1262 = vmatprep.subr.bf16.mxu0 0
        %1263 = vmatpush2.bf16.msra.mxu0 0
        %1264 = vmatprep.subr.bf16.mxu0 0
        %1265 = vmatpush2.bf16.msra.mxu0 0
        %1266 = vmatprep.subr.bf16.mxu0 0
        %1267 = vmatpush2.bf16.msra.mxu0 0
        %1268 = vmatprep.subr.bf16.mxu0 0
        %1269 = vmatpush2.bf16.msra.mxu0 0
        %1270 = vmatprep.subr.bf16.mxu0 0
        %1271 = vmatpush2.bf16.msra.mxu0 0
        %1272 = vmatprep.mubr.bf16.mxu0 0
        %1273 = vmatmul.mubr.bf16.gmra.mxu0 %v1235
        %v1274 = vpop.f32.mrf.mxu0
        %v1275 = vadd.f32 0.0, %v1274
        %v1276 = vpop.f32.mrf.mxu0
        %v1277 = vpop.f32.mrf.mxu0
        %v1278 = vadd.f32 0.0, %v1277
        %v1279 = vpop.f32.mrf.mxu0
        %1280 = vmatprep.mubr.bf16.mxu0 0
        %1281 = vmatmul.mubr.bf16.gmra.mxu0 %v1238
        %v1282 = vpop.f32.mrf.mxu0
        %v1283 = vadd.f32 0.0, %v1282
        %v1284 = vpop.f32.mrf.mxu0
        %v1285 = vpop.f32.mrf.mxu0
        %v1286 = vadd.f32 0.0, %v1285
        %v1287 = vpop.f32.mrf.mxu0
        %1288 = vdwg.mxu0
        %v1289 = vld [vmem:[#allocation4] sm:$0xff]
        %v1290 = vld [vmem:[#allocation4 + $0x8] sm:$0xff]
        %v1291 = vld [vmem:[#allocation4 + $0x10] sm:$0xff]
        %v1292 = vld [vmem:[#allocation4 + $0x18] sm:$0xff]
        %v1293 = vadd.f32 %v1289, %v1275
        %v1294 = vadd.f32 %v1290, %v1278
        %v1295 = vadd.f32 %v1291, %v1283
        %v1296 = vadd.f32 %v1292, %v1286
        %1297 = vst [vmem:[#allocation4] sm:$0xff] %v1293
        %1298 = vst [vmem:[#allocation4 + $0x8] sm:$0xff] %v1294
        %1299 = vst [vmem:[#allocation4 + $0x10] sm:$0xff] %v1295
        %1300 = vst [vmem:[#allocation4 + $0x18] sm:$0xff] %v1296
        %v1301 = vld [vmem:[%s904] sm:$0xf]
        %v1302 = vld [vmem:[%s904 + $0x8] sm:$0xf]
        %v1303 = vld [vmem:[%s904 + $0x10] sm:$0xf]
        %v1304 = vld [vmem:[%s904 + $0x18] sm:$0xf]
        %s1305 = scalar_lea.vmem [#allocation16], 48
        %v1306 = vld [vmem:[%s1305] sm:$0xf]
        %v1307 = vld [vmem:[%s1305 + $0x4] sm:$0xf]
        %v1308 = vld [vmem:[%s1305 + $0x8] sm:$0xf]
        %v1309 = vld [vmem:[%s1305 + $0xc] sm:$0xf]
        %v1314 = vunpack.c.l.b16 %v1301
        %v1315 = vunpack.c.l.b16 %v1302
        %v1316 = vunpack.c.l.b16 %v1303
        %v1317 = vunpack.c.l.b16 %v1304
        %v1318 = vpack.c.b16 %v1315, %v1314
        %v1319 = vpack.c.b16 %v1317, %v1316
        %v1324 = vunpack.c.l.b16 %v1306
        %v1325 = vunpack.c.l.b16 %v1307
        %v1326 = vunpack.c.l.b16 %v1308
        %v1327 = vunpack.c.l.b16 %v1309
        %v1328 = vpack.c.b16 %v1325, %v1324
        %v1329 = vpack.c.b16 %v1327, %v1326
        %v1333 = vsel %vm959, %v1318, 0
        %v1336 = vsel %vm959, %v1319, 0
        %1338 = vmatprep.subr.bf16.mxu0 0
        %1339 = vmatpush1.bf16.msra.mxu0 0
        %1340 = vmatprep.subr.bf16.mxu0 0
        %1341 = vmatpush1.bf16.msra.mxu0 0
        %1342 = vmatprep.subr.bf16.mxu0 0
        %1343 = vmatpush1.bf16.msra.mxu0 0
        %1344 = vmatprep.subr.bf16.mxu0 0
        %1345 = vmatpush1.bf16.msra.mxu0 0
        %1346 = vmatprep.subr.bf16.mxu0 0
        %1347 = vmatpush1.bf16.msra.mxu0 0
        %1348 = vmatprep.subr.bf16.mxu0 0
        %1349 = vmatpush1.bf16.msra.mxu0 0
        %1350 = vmatprep.subr.bf16.mxu0 0
        %1351 = vmatpush1.bf16.msra.mxu0 %v1329
        %1352 = vmatprep.subr.bf16.mxu0 0
        %1353 = vmatpush1.bf16.msra.mxu0 %v1328
        %1354 = vmatprep.subr.bf16.mxu0 0
        %1355 = vmatpush2.bf16.msra.mxu0 0
        %1356 = vmatprep.subr.bf16.mxu0 0
        %1357 = vmatpush2.bf16.msra.mxu0 0
        %1358 = vmatprep.subr.bf16.mxu0 0
        %1359 = vmatpush2.bf16.msra.mxu0 0
        %1360 = vmatprep.subr.bf16.mxu0 0
        %1361 = vmatpush2.bf16.msra.mxu0 0
        %1362 = vmatprep.subr.bf16.mxu0 0
        %1363 = vmatpush2.bf16.msra.mxu0 0
        %1364 = vmatprep.subr.bf16.mxu0 0
        %1365 = vmatpush2.bf16.msra.mxu0 0
        %1366 = vmatprep.subr.bf16.mxu0 0
        %1367 = vmatpush2.bf16.msra.mxu0 0
        %1368 = vmatprep.subr.bf16.mxu0 0
        %1369 = vmatpush2.bf16.msra.mxu0 0
        %1370 = vmatprep.mubr.bf16.mxu0 0
        %1371 = vmatmul.mubr.bf16.gmra.mxu0 %v1333
        %v1372 = vpop.f32.mrf.mxu0
        %v1373 = vadd.f32 0.0, %v1372
        %v1374 = vpop.f32.mrf.mxu0
        %v1375 = vpop.f32.mrf.mxu0
        %v1376 = vadd.f32 0.0, %v1375
        %v1377 = vpop.f32.mrf.mxu0
        %1378 = vmatprep.mubr.bf16.mxu0 0
        %1379 = vmatmul.mubr.bf16.gmra.mxu0 %v1336
        %v1380 = vpop.f32.mrf.mxu0
        %v1381 = vadd.f32 0.0, %v1380
        %v1382 = vpop.f32.mrf.mxu0
        %v1383 = vpop.f32.mrf.mxu0
        %v1384 = vadd.f32 0.0, %v1383
        %v1385 = vpop.f32.mrf.mxu0
        %1386 = vdwg.mxu0
        %v1387 = vld [vmem:[#allocation4] sm:$0xff]
        %v1388 = vld [vmem:[#allocation4 + $0x8] sm:$0xff]
        %v1389 = vld [vmem:[#allocation4 + $0x10] sm:$0xff]
        %v1390 = vld [vmem:[#allocation4 + $0x18] sm:$0xff]
        %v1391 = vadd.f32 %v1387, %v1373
        %v1392 = vadd.f32 %v1388, %v1376
        %v1393 = vadd.f32 %v1389, %v1381
        %v1394 = vadd.f32 %v1390, %v1384
        %1395 = vst [vmem:[#allocation4] sm:$0xff] %v1391
        %1396 = vst [vmem:[#allocation4 + $0x8] sm:$0xff] %v1392
        %1397 = vst [vmem:[#allocation4 + $0x10] sm:$0xff] %v1393
        %1398 = vst [vmem:[#allocation4 + $0x18] sm:$0xff] %v1394
        %v1399 = vld [vmem:[%s904] sm:$0xf]
        %v1400 = vld [vmem:[%s904 + $0x4] sm:$0x1]
        %v1401 = vld [vmem:[%s904 + $0x8] sm:$0xf]
        %v1402 = vld [vmem:[%s904 + $0xc] sm:$0x1]
        %v1403 = vld [vmem:[%s904 + $0x10] sm:$0xf]
        %v1404 = vld [vmem:[%s904 + $0x14] sm:$0x1]
        %v1405 = vld [vmem:[%s904 + $0x18] sm:$0xf]
        %v1406 = vld [vmem:[%s904 + $0x1c] sm:$0x1]
        %v1408 = vshrl.u32 %v1399, 16
        %v1410 = vrot.slane %v1408, 4
        %v1411 = vshll.u32 %v1399, 16
        %v1413 = vrot.slane %v1411, 5
        %v1414 = vor.u32 %v1410, %v1413
        %v1415 = vrot.slane %v1414, 4
        %v1417 = vshll.u32 %v1400, 16
        %v1419 = vrot.slane %v1417, 5
        %v1420 = vsel %vm1029, %v1415, %v1419
        %v1422 = vshrl.u32 %v1401, 16
        %v1424 = vrot.slane %v1422, 4
        %v1425 = vshll.u32 %v1401, 16
        %v1427 = vrot.slane %v1425, 5
        %v1428 = vor.u32 %v1424, %v1427
        %v1429 = vrot.slane %v1428, 4
        %v1431 = vshll.u32 %v1402, 16
        %v1433 = vrot.slane %v1431, 5
        %v1434 = vsel %vm1029, %v1429, %v1433
        %v1436 = vshrl.u32 %v1403, 16
        %v1438 = vrot.slane %v1436, 4
        %v1439 = vshll.u32 %v1403, 16
        %v1441 = vrot.slane %v1439, 5
        %v1442 = vor.u32 %v1438, %v1441
        %v1443 = vrot.slane %v1442, 4
        %v1445 = vshll.u32 %v1404, 16
        %v1447 = vrot.slane %v1445, 5
        %v1448 = vsel %vm1029, %v1443, %v1447
        %v1450 = vshrl.u32 %v1405, 16
        %v1452 = vrot.slane %v1450, 4
        %v1453 = vshll.u32 %v1405, 16
        %v1455 = vrot.slane %v1453, 5
        %v1456 = vor.u32 %v1452, %v1455
        %v1457 = vrot.slane %v1456, 4
        %v1459 = vshll.u32 %v1406, 16
        %v1461 = vrot.slane %v1459, 5
        %v1462 = vsel %vm1029, %v1457, %v1461
        %s1463 = scalar_lea.vmem [#allocation16], 64
        %v1464 = vld [vmem:[%s1463] sm:$0xf]
        %v1465 = vld [vmem:[%s1463 + $0x4] sm:$0xf]
        %v1466 = vld [vmem:[%s1463 + $0x8] sm:$0xf]
        %v1467 = vld [vmem:[%s1463 + $0xc] sm:$0xf]
        %v1468 = vunpack.c.l.b16 %v1420
        %v1469 = vunpack.c.l.b16 %v1434
        %v1470 = vunpack.c.l.b16 %v1448
        %v1471 = vunpack.c.l.b16 %v1462
        %v1472 = vpack.c.b16 %v1469, %v1468
        %v1473 = vpack.c.b16 %v1471, %v1470
        %v1478 = vunpack.c.l.b16 %v1464
        %v1479 = vunpack.c.l.b16 %v1465
        %v1480 = vunpack.c.l.b16 %v1466
        %v1481 = vunpack.c.l.b16 %v1467
        %v1482 = vpack.c.b16 %v1479, %v1478
        %v1483 = vpack.c.b16 %v1481, %v1480
        %v1487 = vsel %vm959, %v1472, 0
        %v1490 = vsel %vm959, %v1473, 0
        %1492 = vmatprep.subr.bf16.mxu0 0
        %1493 = vmatpush1.bf16.msra.mxu0 0
        %1494 = vmatprep.subr.bf16.mxu0 0
        %1495 = vmatpush1.bf16.msra.mxu0 0
        %1496 = vmatprep.subr.bf16.mxu0 0
        %1497 = vmatpush1.bf16.msra.mxu0 0
        %1498 = vmatprep.subr.bf16.mxu0 0
        %1499 = vmatpush1.bf16.msra.mxu0 0
        %1500 = vmatprep.subr.bf16.mxu0 0
        %1501 = vmatpush1.bf16.msra.mxu0 0
        %1502 = vmatprep.subr.bf16.mxu0 0
        %1503 = vmatpush1.bf16.msra.mxu0 0
        %1504 = vmatprep.subr.bf16.mxu0 0
        %1505 = vmatpush1.bf16.msra.mxu0 %v1483
        %1506 = vmatprep.subr.bf16.mxu0 0
        %1507 = vmatpush1.bf16.msra.mxu0 %v1482
        %1508 = vmatprep.subr.bf16.mxu0 0
        %1509 = vmatpush2.bf16.msra.mxu0 0
        %1510 = vmatprep.subr.bf16.mxu0 0
        %1511 = vmatpush2.bf16.msra.mxu0 0
        %1512 = vmatprep.subr.bf16.mxu0 0
        %1513 = vmatpush2.bf16.msra.mxu0 0
        %1514 = vmatprep.subr.bf16.mxu0 0
        %1515 = vmatpush2.bf16.msra.mxu0 0
        %1516 = vmatprep.subr.bf16.mxu0 0
        %1517 = vmatpush2.bf16.msra.mxu0 0
        %1518 = vmatprep.subr.bf16.mxu0 0
        %1519 = vmatpush2.bf16.msra.mxu0 0
        %1520 = vmatprep.subr.bf16.mxu0 0
        %1521 = vmatpush2.bf16.msra.mxu0 0
        %1522 = vmatprep.subr.bf16.mxu0 0
        %1523 = vmatpush2.bf16.msra.mxu0 0
        %1524 = vmatprep.mubr.bf16.mxu0 0
        %1525 = vmatmul.mubr.bf16.gmra.mxu0 %v1487
        %v1526 = vpop.f32.mrf.mxu0
        %v1527 = vadd.f32 0.0, %v1526
        %v1528 = vpop.f32.mrf.mxu0
        %v1529 = vpop.f32.mrf.mxu0
        %v1530 = vadd.f32 0.0, %v1529
        %v1531 = vpop.f32.mrf.mxu0
        %1532 = vmatprep.mubr.bf16.mxu0 0
        %1533 = vmatmul.mubr.bf16.gmra.mxu0 %v1490
        %v1534 = vpop.f32.mrf.mxu0
        %v1535 = vadd.f32 0.0, %v1534
        %v1536 = vpop.f32.mrf.mxu0
        %v1537 = vpop.f32.mrf.mxu0
        %v1538 = vadd.f32 0.0, %v1537
        %v1539 = vpop.f32.mrf.mxu0
        %1540 = vdwg.mxu0
        %v1541 = vld [vmem:[#allocation4] sm:$0xff]
        %v1542 = vld [vmem:[#allocation4 + $0x8] sm:$0xff]
        %v1543 = vld [vmem:[#allocation4 + $0x10] sm:$0xff]
        %v1544 = vld [vmem:[#allocation4 + $0x18] sm:$0xff]
        %v1545 = vadd.f32 %v1541, %v1527
        %v1546 = vadd.f32 %v1542, %v1530
        %v1547 = vadd.f32 %v1543, %v1535
        %v1548 = vadd.f32 %v1544, %v1538
        %1549 = vst [vmem:[#allocation4] sm:$0xff] %v1545
        %1550 = vst [vmem:[#allocation4 + $0x8] sm:$0xff] %v1546
        %1551 = vst [vmem:[#allocation4 + $0x10] sm:$0xff] %v1547
        %1552 = vst [vmem:[#allocation4 + $0x18] sm:$0xff] %v1548
        %v1553 = vld [vmem:[%s904] sm:$0xe]
        %v1554 = vld [vmem:[%s904 + $0x4] sm:$0x1]
        %v1555 = vld [vmem:[%s904 + $0x8] sm:$0xe]
        %v1556 = vld [vmem:[%s904 + $0xc] sm:$0x1]
        %v1557 = vld [vmem:[%s904 + $0x10] sm:$0xe]
        %v1558 = vld [vmem:[%s904 + $0x14] sm:$0x1]
        %v1559 = vld [vmem:[%s904 + $0x18] sm:$0xe]
        %v1560 = vld [vmem:[%s904 + $0x1c] sm:$0x1]
        %v1569 = vrot.slane %v1553, 5
        %v1570 = vrot.slane %v1569, 4
        %v1571 = vrot.slane %v1554, 5
        %v1572 = vsel %vm1194, %v1570, %v1571
        %v1573 = vrot.slane %v1555, 5
        %v1574 = vrot.slane %v1573, 4
        %v1575 = vrot.slane %v1556, 5
        %v1576 = vsel %vm1194, %v1574, %v1575
        %v1577 = vrot.slane %v1557, 5
        %v1578 = vrot.slane %v1577, 4
        %v1579 = vrot.slane %v1558, 5
        %v1580 = vsel %vm1194, %v1578, %v1579
        %v1581 = vrot.slane %v1559, 5
        %v1582 = vrot.slane %v1581, 4
        %v1583 = vrot.slane %v1560, 5
        %v1584 = vsel %vm1194, %v1582, %v1583
        %s1585 = scalar_lea.vmem [#allocation16], 80
        %v1586 = vld [vmem:[%s1585] sm:$0xf]
        %v1587 = vld [vmem:[%s1585 + $0x4] sm:$0xf]
        %v1588 = vld [vmem:[%s1585 + $0x8] sm:$0xf]
        %v1589 = vld [vmem:[%s1585 + $0xc] sm:$0xf]
        %v1590 = vunpack.c.l.b16 %v1572
        %v1591 = vunpack.c.l.b16 %v1576
        %v1592 = vunpack.c.l.b16 %v1580
        %v1593 = vunpack.c.l.b16 %v1584
        %v1594 = vpack.c.b16 %v1591, %v1590
        %v1595 = vpack.c.b16 %v1593, %v1592
        %v1600 = vunpack.c.l.b16 %v1586
        %v1601 = vunpack.c.l.b16 %v1587
        %v1602 = vunpack.c.l.b16 %v1588
        %v1603 = vunpack.c.l.b16 %v1589
        %v1604 = vpack.c.b16 %v1601, %v1600
        %v1605 = vpack.c.b16 %v1603, %v1602
        %v1609 = vsel %vm959, %v1594, 0
        %v1612 = vsel %vm959, %v1595, 0
        %1614 = vmatprep.subr.bf16.mxu0 0
        %1615 = vmatpush1.bf16.msra.mxu0 0
        %1616 = vmatprep.subr.bf16.mxu0 0
        %1617 = vmatpush1.bf16.msra.mxu0 0
        %1618 = vmatprep.subr.bf16.mxu0 0
        %1619 = vmatpush1.bf16.msra.mxu0 0
        %1620 = vmatprep.subr.bf16.mxu0 0
        %1621 = vmatpush1.bf16.msra.mxu0 0
        %1622 = vmatprep.subr.bf16.mxu0 0
        %1623 = vmatpush1.bf16.msra.mxu0 0
        %1624 = vmatprep.subr.bf16.mxu0 0
        %1625 = vmatpush1.bf16.msra.mxu0 0
        %1626 = vmatprep.subr.bf16.mxu0 0
        %1627 = vmatpush1.bf16.msra.mxu0 %v1605
        %1628 = vmatprep.subr.bf16.mxu0 0
        %1629 = vmatpush1.bf16.msra.mxu0 %v1604
        %1630 = vmatprep.subr.bf16.mxu0 0
        %1631 = vmatpush2.bf16.msra.mxu0 0
        %1632 = vmatprep.subr.bf16.mxu0 0
        %1633 = vmatpush2.bf16.msra.mxu0 0
        %1634 = vmatprep.subr.bf16.mxu0 0
        %1635 = vmatpush2.bf16.msra.mxu0 0
        %1636 = vmatprep.subr.bf16.mxu0 0
        %1637 = vmatpush2.bf16.msra.mxu0 0
        %1638 = vmatprep.subr.bf16.mxu0 0
        %1639 = vmatpush2.bf16.msra.mxu0 0
        %1640 = vmatprep.subr.bf16.mxu0 0
        %1641 = vmatpush2.bf16.msra.mxu0 0
        %1642 = vmatprep.subr.bf16.mxu0 0
        %1643 = vmatpush2.bf16.msra.mxu0 0
        %1644 = vmatprep.subr.bf16.mxu0 0
        %1645 = vmatpush2.bf16.msra.mxu0 0
        %1646 = vmatprep.mubr.bf16.mxu0 0
        %1647 = vmatmul.mubr.bf16.gmra.mxu0 %v1609
        %v1648 = vpop.f32.mrf.mxu0
        %v1649 = vadd.f32 0.0, %v1648
        %v1650 = vpop.f32.mrf.mxu0
        %v1651 = vpop.f32.mrf.mxu0
        %v1652 = vadd.f32 0.0, %v1651
        %v1653 = vpop.f32.mrf.mxu0
        %1654 = vmatprep.mubr.bf16.mxu0 0
        %1655 = vmatmul.mubr.bf16.gmra.mxu0 %v1612
        %v1656 = vpop.f32.mrf.mxu0
        %v1657 = vadd.f32 0.0, %v1656
        %v1658 = vpop.f32.mrf.mxu0
        %v1659 = vpop.f32.mrf.mxu0
        %v1660 = vadd.f32 0.0, %v1659
        %v1661 = vpop.f32.mrf.mxu0
        %1662 = vdwg.mxu0
        %v1663 = vld [vmem:[#allocation4] sm:$0xff]
        %v1664 = vld [vmem:[#allocation4 + $0x8] sm:$0xff]
        %v1665 = vld [vmem:[#allocation4 + $0x10] sm:$0xff]
        %v1666 = vld [vmem:[#allocation4 + $0x18] sm:$0xff]
        %v1667 = vadd.f32 %v1663, %v1649
        %v1668 = vadd.f32 %v1664, %v1652
        %v1669 = vadd.f32 %v1665, %v1657
        %v1670 = vadd.f32 %v1666, %v1660
        %1671 = vst [vmem:[#allocation4] sm:$0xff] %v1667
        %1672 = vst [vmem:[#allocation4 + $0x8] sm:$0xff] %v1668
        %1673 = vst [vmem:[#allocation4 + $0x10] sm:$0xff] %v1669
        %1674 = vst [vmem:[#allocation4 + $0x18] sm:$0xff] %v1670
        %s1675 = scalar_lea.vmem [#allocation2], 16
        %v1676 = vld [vmem:[%s1675] sm:$0xf]
        %v1677 = vld [vmem:[%s1675 + $0x8] sm:$0xf]
        %v1678 = vld [vmem:[%s1675 + $0x10] sm:$0xf]
        %v1679 = vld [vmem:[%s1675 + $0x18] sm:$0xf]
        %s1680 = scalar_lea.vmem [#allocation16], 96
        %v1681 = vld [vmem:[%s1680] sm:$0xf]
        %v1682 = vld [vmem:[%s1680 + $0x4] sm:$0xf]
        %v1683 = vld [vmem:[%s1680 + $0x8] sm:$0xf]
        %v1684 = vld [vmem:[%s1680 + $0xc] sm:$0xf]
        %v1689 = vunpack.c.l.b16 %v1676
        %v1690 = vunpack.c.l.b16 %v1677
        %v1691 = vunpack.c.l.b16 %v1678
        %v1692 = vunpack.c.l.b16 %v1679
        %v1693 = vpack.c.b16 %v1690, %v1689
        %v1694 = vpack.c.b16 %v1692, %v1691
        %v1699 = vunpack.c.l.b16 %v1681
        %v1700 = vunpack.c.l.b16 %v1682
        %v1701 = vunpack.c.l.b16 %v1683
        %v1702 = vunpack.c.l.b16 %v1684
        %v1703 = vpack.c.b16 %v1700, %v1699
        %v1704 = vpack.c.b16 %v1702, %v1701
        %v1708 = vsel %vm959, %v1693, 0
        %v1711 = vsel %vm959, %v1694, 0
        %1713 = vmatprep.subr.bf16.mxu0 0
        %1714 = vmatpush1.bf16.msra.mxu0 0
        %1715 = vmatprep.subr.bf16.mxu0 0
        %1716 = vmatpush1.bf16.msra.mxu0 0
        %1717 = vmatprep.subr.bf16.mxu0 0
        %1718 = vmatpush1.bf16.msra.mxu0 0
        %1719 = vmatprep.subr.bf16.mxu0 0
        %1720 = vmatpush1.bf16.msra.mxu0 0
        %1721 = vmatprep.subr.bf16.mxu0 0
        %1722 = vmatpush1.bf16.msra.mxu0 0
        %1723 = vmatprep.subr.bf16.mxu0 0
        %1724 = vmatpush1.bf16.msra.mxu0 0
        %1725 = vmatprep.subr.bf16.mxu0 0
        %1726 = vmatpush1.bf16.msra.mxu0 %v1704
        %1727 = vmatprep.subr.bf16.mxu0 0
        %1728 = vmatpush1.bf16.msra.mxu0 %v1703
        %1729 = vmatprep.subr.bf16.mxu0 0
        %1730 = vmatpush2.bf16.msra.mxu0 0
        %1731 = vmatprep.subr.bf16.mxu0 0
        %1732 = vmatpush2.bf16.msra.mxu0 0
        %1733 = vmatprep.subr.bf16.mxu0 0
        %1734 = vmatpush2.bf16.msra.mxu0 0
        %1735 = vmatprep.subr.bf16.mxu0 0
        %1736 = vmatpush2.bf16.msra.mxu0 0
        %1737 = vmatprep.subr.bf16.mxu0 0
        %1738 = vmatpush2.bf16.msra.mxu0 0
        %1739 = vmatprep.subr.bf16.mxu0 0
        %1740 = vmatpush2.bf16.msra.mxu0 0
        %1741 = vmatprep.subr.bf16.mxu0 0
        %1742 = vmatpush2.bf16.msra.mxu0 0
        %1743 = vmatprep.subr.bf16.mxu0 0
        %1744 = vmatpush2.bf16.msra.mxu0 0
        %1745 = vmatprep.mubr.bf16.mxu0 0
        %1746 = vmatmul.mubr.bf16.gmra.mxu0 %v1708
        %v1747 = vpop.f32.mrf.mxu0
        %v1748 = vadd.f32 0.0, %v1747
        %v1749 = vpop.f32.mrf.mxu0
        %v1750 = vpop.f32.mrf.mxu0
        %v1751 = vadd.f32 0.0, %v1750
        %v1752 = vpop.f32.mrf.mxu0
        %1753 = vmatprep.mubr.bf16.mxu0 0
        %1754 = vmatmul.mubr.bf16.gmra.mxu0 %v1711
        %v1755 = vpop.f32.mrf.mxu0
        %v1756 = vadd.f32 0.0, %v1755
        %v1757 = vpop.f32.mrf.mxu0
        %v1758 = vpop.f32.mrf.mxu0
        %v1759 = vadd.f32 0.0, %v1758
        %v1760 = vpop.f32.mrf.mxu0
        %1761 = vdwg.mxu0
        %v1762 = vld [vmem:[#allocation4] sm:$0xff]
        %v1763 = vld [vmem:[#allocation4 + $0x8] sm:$0xff]
        %v1764 = vld [vmem:[#allocation4 + $0x10] sm:$0xff]
        %v1765 = vld [vmem:[#allocation4 + $0x18] sm:$0xff]
        %v1766 = vadd.f32 %v1762, %v1748
        %v1767 = vadd.f32 %v1763, %v1751
        %v1768 = vadd.f32 %v1764, %v1756
        %v1769 = vadd.f32 %v1765, %v1759
        %1770 = vst [vmem:[#allocation4] sm:$0xff] %v1766
        %1771 = vst [vmem:[#allocation4 + $0x8] sm:$0xff] %v1767
        %1772 = vst [vmem:[#allocation4 + $0x10] sm:$0xff] %v1768
        %1773 = vst [vmem:[#allocation4 + $0x18] sm:$0xff] %v1769
        %v1774 = vld [vmem:[%s1675] sm:$0xf]
        %v1775 = vld [vmem:[%s1675 + $0x4] sm:$0x1]
        %v1776 = vld [vmem:[%s1675 + $0x8] sm:$0xf]
        %v1777 = vld [vmem:[%s1675 + $0xc] sm:$0x1]
        %v1778 = vld [vmem:[%s1675 + $0x10] sm:$0xf]
        %v1779 = vld [vmem:[%s1675 + $0x14] sm:$0x1]
        %v1780 = vld [vmem:[%s1675 + $0x18] sm:$0xf]
        %v1781 = vld [vmem:[%s1675 + $0x1c] sm:$0x1]
        %v1783 = vshrl.u32 %v1774, 16
        %v1785 = vrot.slane %v1783, 4
        %v1786 = vshll.u32 %v1774, 16
        %v1788 = vrot.slane %v1786, 5
        %v1789 = vor.u32 %v1785, %v1788
        %v1790 = vrot.slane %v1789, 4
        %v1792 = vshll.u32 %v1775, 16
        %v1794 = vrot.slane %v1792, 5
        %v1795 = vsel %vm1029, %v1790, %v1794
        %v1797 = vshrl.u32 %v1776, 16
        %v1799 = vrot.slane %v1797, 4
        %v1800 = vshll.u32 %v1776, 16
        %v1802 = vrot.slane %v1800, 5
        %v1803 = vor.u32 %v1799, %v1802
        %v1804 = vrot.slane %v1803, 4
        %v1806 = vshll.u32 %v1777, 16
        %v1808 = vrot.slane %v1806, 5
        %v1809 = vsel %vm1029, %v1804, %v1808
        %v1811 = vshrl.u32 %v1778, 16
        %v1813 = vrot.slane %v1811, 4
        %v1814 = vshll.u32 %v1778, 16
        %v1816 = vrot.slane %v1814, 5
        %v1817 = vor.u32 %v1813, %v1816
        %v1818 = vrot.slane %v1817, 4
        %v1820 = vshll.u32 %v1779, 16
        %v1822 = vrot.slane %v1820, 5
        %v1823 = vsel %vm1029, %v1818, %v1822
        %v1825 = vshrl.u32 %v1780, 16
        %v1827 = vrot.slane %v1825, 4
        %v1828 = vshll.u32 %v1780, 16
        %v1830 = vrot.slane %v1828, 5
        %v1831 = vor.u32 %v1827, %v1830
        %v1832 = vrot.slane %v1831, 4
        %v1834 = vshll.u32 %v1781, 16
        %v1836 = vrot.slane %v1834, 5
        %v1837 = vsel %vm1029, %v1832, %v1836
        %s1838 = scalar_lea.vmem [#allocation16], 112
        %v1839 = vld [vmem:[%s1838] sm:$0xf]
        %v1840 = vld [vmem:[%s1838 + $0x4] sm:$0xf]
        %v1841 = vld [vmem:[%s1838 + $0x8] sm:$0xf]
        %v1842 = vld [vmem:[%s1838 + $0xc] sm:$0xf]
        %v1843 = vunpack.c.l.b16 %v1795
        %v1844 = vunpack.c.l.b16 %v1809
        %v1845 = vunpack.c.l.b16 %v1823
        %v1846 = vunpack.c.l.b16 %v1837
        %v1847 = vpack.c.b16 %v1844, %v1843
        %v1848 = vpack.c.b16 %v1846, %v1845
        %v1853 = vunpack.c.l.b16 %v1839
        %v1854 = vunpack.c.l.b16 %v1840
        %v1855 = vunpack.c.l.b16 %v1841
        %v1856 = vunpack.c.l.b16 %v1842
        %v1857 = vpack.c.b16 %v1854, %v1853
        %v1858 = vpack.c.b16 %v1856, %v1855
        %v1862 = vsel %vm959, %v1847, 0
        %v1865 = vsel %vm959, %v1848, 0
        %1867 = vmatprep.subr.bf16.mxu0 0
        %1868 = vmatpush1.bf16.msra.mxu0 0
        %1869 = vmatprep.subr.bf16.mxu0 0
        %1870 = vmatpush1.bf16.msra.mxu0 0
        %1871 = vmatprep.subr.bf16.mxu0 0
        %1872 = vmatpush1.bf16.msra.mxu0 0
        %1873 = vmatprep.subr.bf16.mxu0 0
        %1874 = vmatpush1.bf16.msra.mxu0 0
        %1875 = vmatprep.subr.bf16.mxu0 0
        %1876 = vmatpush1.bf16.msra.mxu0 0
        %1877 = vmatprep.subr.bf16.mxu0 0
        %1878 = vmatpush1.bf16.msra.mxu0 0
        %1879 = vmatprep.subr.bf16.mxu0 0
        %1880 = vmatpush1.bf16.msra.mxu0 %v1858
        %1881 = vmatprep.subr.bf16.mxu0 0
        %1882 = vmatpush1.bf16.msra.mxu0 %v1857
        %1883 = vmatprep.subr.bf16.mxu0 0
        %1884 = vmatpush2.bf16.msra.mxu0 0
        %1885 = vmatprep.subr.bf16.mxu0 0
        %1886 = vmatpush2.bf16.msra.mxu0 0
        %1887 = vmatprep.subr.bf16.mxu0 0
        %1888 = vmatpush2.bf16.msra.mxu0 0
        %1889 = vmatprep.subr.bf16.mxu0 0
        %1890 = vmatpush2.bf16.msra.mxu0 0
        %1891 = vmatprep.subr.bf16.mxu0 0
        %1892 = vmatpush2.bf16.msra.mxu0 0
        %1893 = vmatprep.subr.bf16.mxu0 0
        %1894 = vmatpush2.bf16.msra.mxu0 0
        %1895 = vmatprep.subr.bf16.mxu0 0
        %1896 = vmatpush2.bf16.msra.mxu0 0
        %1897 = vmatprep.subr.bf16.mxu0 0
        %1898 = vmatpush2.bf16.msra.mxu0 0
        %1899 = vmatprep.mubr.bf16.mxu0 0
        %1900 = vmatmul.mubr.bf16.gmra.mxu0 %v1862
        %v1901 = vpop.f32.mrf.mxu0
        %v1902 = vadd.f32 0.0, %v1901
        %v1903 = vpop.f32.mrf.mxu0
        %v1904 = vpop.f32.mrf.mxu0
        %v1905 = vadd.f32 0.0, %v1904
        %v1906 = vpop.f32.mrf.mxu0
        %1907 = vmatprep.mubr.bf16.mxu0 0
        %1908 = vmatmul.mubr.bf16.gmra.mxu0 %v1865
        %v1909 = vpop.f32.mrf.mxu0
        %v1910 = vadd.f32 0.0, %v1909
        %v1911 = vpop.f32.mrf.mxu0
        %v1912 = vpop.f32.mrf.mxu0
        %v1913 = vadd.f32 0.0, %v1912
        %v1914 = vpop.f32.mrf.mxu0
        %1915 = vdwg.mxu0
        %v1916 = vld [vmem:[#allocation4] sm:$0xff]
        %v1917 = vld [vmem:[#allocation4 + $0x8] sm:$0xff]
        %v1918 = vld [vmem:[#allocation4 + $0x10] sm:$0xff]
        %v1919 = vld [vmem:[#allocation4 + $0x18] sm:$0xff]
        %v1920 = vadd.f32 %v1916, %v1902
        %v1921 = vadd.f32 %v1917, %v1905
        %v1922 = vadd.f32 %v1918, %v1910
        %v1923 = vadd.f32 %v1919, %v1913
        %1924 = vst [vmem:[#allocation4] sm:$0xff] %v1920
        %1925 = vst [vmem:[#allocation4 + $0x8] sm:$0xff] %v1921
        %1926 = vst [vmem:[#allocation4 + $0x10] sm:$0xff] %v1922
        %1927 = vst [vmem:[#allocation4 + $0x18] sm:$0xff] %v1923
        %v1928 = vld [vmem:[%s1675] sm:$0xe]
        %v1929 = vld [vmem:[%s1675 + $0x4] sm:$0x1]
        %v1930 = vld [vmem:[%s1675 + $0x8] sm:$0xe]
        %v1931 = vld [vmem:[%s1675 + $0xc] sm:$0x1]
        %v1932 = vld [vmem:[%s1675 + $0x10] sm:$0xe]
        %v1933 = vld [vmem:[%s1675 + $0x14] sm:$0x1]
        %v1934 = vld [vmem:[%s1675 + $0x18] sm:$0xe]
        %v1935 = vld [vmem:[%s1675 + $0x1c] sm:$0x1]
        %v1944 = vrot.slane %v1928, 5
        %v1945 = vrot.slane %v1944, 4
        %v1946 = vrot.slane %v1929, 5
        %v1947 = vsel %vm1194, %v1945, %v1946
        %v1948 = vrot.slane %v1930, 5
        %v1949 = vrot.slane %v1948, 4
        %v1950 = vrot.slane %v1931, 5
        %v1951 = vsel %vm1194, %v1949, %v1950
        %v1952 = vrot.slane %v1932, 5
        %v1953 = vrot.slane %v1952, 4
        %v1954 = vrot.slane %v1933, 5
        %v1955 = vsel %vm1194, %v1953, %v1954
        %v1956 = vrot.slane %v1934, 5
        %v1957 = vrot.slane %v1956, 4
        %v1958 = vrot.slane %v1935, 5
        %v1959 = vsel %vm1194, %v1957, %v1958
        %s1960 = scalar_lea.vmem [#allocation16], 128
        %v1961 = vld [vmem:[%s1960] sm:$0xf]
        %v1962 = vld [vmem:[%s1960 + $0x4] sm:$0xf]
        %v1963 = vld [vmem:[%s1960 + $0x8] sm:$0xf]
        %v1964 = vld [vmem:[%s1960 + $0xc] sm:$0xf]
        %v1965 = vunpack.c.l.b16 %v1947
        %v1966 = vunpack.c.l.b16 %v1951
        %v1967 = vunpack.c.l.b16 %v1955
        %v1968 = vunpack.c.l.b16 %v1959
        %v1969 = vpack.c.b16 %v1966, %v1965
        %v1970 = vpack.c.b16 %v1968, %v1967
        %v1975 = vunpack.c.l.b16 %v1961
        %v1976 = vunpack.c.l.b16 %v1962
        %v1977 = vunpack.c.l.b16 %v1963
        %v1978 = vunpack.c.l.b16 %v1964
        %v1979 = vpack.c.b16 %v1976, %v1975
        %v1980 = vpack.c.b16 %v1978, %v1977
        %v1984 = vsel %vm959, %v1969, 0
        %v1987 = vsel %vm959, %v1970, 0
        %1989 = vmatprep.subr.bf16.mxu0 0
        %1990 = vmatpush1.bf16.msra.mxu0 0
        %1991 = vmatprep.subr.bf16.mxu0 0
        %1992 = vmatpush1.bf16.msra.mxu0 0
        %1993 = vmatprep.subr.bf16.mxu0 0
        %1994 = vmatpush1.bf16.msra.mxu0 0
        %1995 = vmatprep.subr.bf16.mxu0 0
        %1996 = vmatpush1.bf16.msra.mxu0 0
        %1997 = vmatprep.subr.bf16.mxu0 0
        %1998 = vmatpush1.bf16.msra.mxu0 0
        %1999 = vmatprep.subr.bf16.mxu0 0
        %2000 = vmatpush1.bf16.msra.mxu0 0
        %2001 = vmatprep.subr.bf16.mxu0 0
        %2002 = vmatpush1.bf16.msra.mxu0 %v1980
        %2003 = vmatprep.subr.bf16.mxu0 0
        %2004 = vmatpush1.bf16.msra.mxu0 %v1979
        %2005 = vmatprep.subr.bf16.mxu0 0
        %2006 = vmatpush2.bf16.msra.mxu0 0
        %2007 = vmatprep.subr.bf16.mxu0 0
        %2008 = vmatpush2.bf16.msra.mxu0 0
        %2009 = vmatprep.subr.bf16.mxu0 0
        %2010 = vmatpush2.bf16.msra.mxu0 0
        %2011 = vmatprep.subr.bf16.mxu0 0
        %2012 = vmatpush2.bf16.msra.mxu0 0
        %2013 = vmatprep.subr.bf16.mxu0 0
        %2014 = vmatpush2.bf16.msra.mxu0 0
        %2015 = vmatprep.subr.bf16.mxu0 0
        %2016 = vmatpush2.bf16.msra.mxu0 0
        %2017 = vmatprep.subr.bf16.mxu0 0
        %2018 = vmatpush2.bf16.msra.mxu0 0
        %2019 = vmatprep.subr.bf16.mxu0 0
        %2020 = vmatpush2.bf16.msra.mxu0 0
        %2021 = vmatprep.mubr.bf16.mxu0 0
        %2022 = vmatmul.mubr.bf16.gmra.mxu0 %v1984
        %v2023 = vpop.f32.mrf.mxu0
        %v2024 = vadd.f32 0.0, %v2023
        %v2025 = vpop.f32.mrf.mxu0
        %v2026 = vpop.f32.mrf.mxu0
        %v2027 = vadd.f32 0.0, %v2026
        %v2028 = vpop.f32.mrf.mxu0
        %2029 = vmatprep.mubr.bf16.mxu0 0
        %2030 = vmatmul.mubr.bf16.gmra.mxu0 %v1987
        %v2031 = vpop.f32.mrf.mxu0
        %v2032 = vadd.f32 0.0, %v2031
        %v2033 = vpop.f32.mrf.mxu0
        %v2034 = vpop.f32.mrf.mxu0
        %v2035 = vadd.f32 0.0, %v2034
        %v2036 = vpop.f32.mrf.mxu0
        %2037 = vdwg.mxu0
        %v2038 = vld [vmem:[#allocation4] sm:$0xff]
        %v2039 = vld [vmem:[#allocation4 + $0x8] sm:$0xff]
        %v2040 = vld [vmem:[#allocation4 + $0x10] sm:$0xff]
        %v2041 = vld [vmem:[#allocation4 + $0x18] sm:$0xff]
        %v2042 = vadd.f32 %v2038, %v2024
        %v2043 = vadd.f32 %v2039, %v2027
        %v2044 = vadd.f32 %v2040, %v2032
        %v2045 = vadd.f32 %v2041, %v2035
        %2046 = vst [vmem:[#allocation4] sm:$0xff] %v2042
        %2047 = vst [vmem:[#allocation4 + $0x8] sm:$0xff] %v2043
        %2048 = vst [vmem:[#allocation4 + $0x10] sm:$0xff] %v2044
        %2049 = vst [vmem:[#allocation4 + $0x18] sm:$0xff] %v2045
        %vm2050 = vcmask 122880
        %vm2051 = vmand %vm2050, %vm747
        %v2052 = vld [vmem:[#allocation3] sm:$0x1]
        %v2053 = vsel %vm2051, 0, %v2052
        %2054 = vst [vmem:[#allocation3] sm:$0x1] %v2053
        %v2055 = vld [vmem:[#allocation3 + $0x8] sm:$0x1]
        %v2056 = vsel %vm2051, 0, %v2055
        %2057 = vst [vmem:[#allocation3 + $0x8] sm:$0x1] %v2056
        %v2058 = vld [vmem:[#allocation3 + $0x10] sm:$0x1]
        %v2059 = vsel %vm2051, 0, %v2058
        %2060 = vst [vmem:[#allocation3 + $0x10] sm:$0x1] %v2059
        %v2061 = vld [vmem:[#allocation3 + $0x18] sm:$0x1]
        %v2062 = vsel %vm2051, 0, %v2061
        %2063 = vst [vmem:[#allocation3 + $0x18] sm:$0x1] %v2062
        %v2064 = vld [vmem:[#allocation3 + $0x20] sm:$0x1]
        %v2065 = vsel %vm2051, 0, %v2064
        %2066 = vst [vmem:[#allocation3 + $0x20] sm:$0x1] %v2065
        %v2067 = vld [vmem:[#allocation3 + $0x28] sm:$0x1]
        %v2068 = vsel %vm2051, 0, %v2067
        %2069 = vst [vmem:[#allocation3 + $0x28] sm:$0x1] %v2068
        %vm2070 = vmand %vm2050, %vm767
        %v2071 = vld [vmem:[#allocation3 + $0x4] sm:$0x1]
        %v2072 = vsel %vm2070, 0, %v2071
        %2073 = vst [vmem:[#allocation3 + $0x4] sm:$0x1] %v2072
        %v2074 = vld [vmem:[#allocation3 + $0xc] sm:$0x1]
        %v2075 = vsel %vm2070, 0, %v2074
        %2076 = vst [vmem:[#allocation3 + $0xc] sm:$0x1] %v2075
        %v2077 = vld [vmem:[#allocation3 + $0x14] sm:$0x1]
        %v2078 = vsel %vm2070, 0, %v2077
        %2079 = vst [vmem:[#allocation3 + $0x14] sm:$0x1] %v2078
        %v2080 = vld [vmem:[#allocation3 + $0x1c] sm:$0x1]
        %v2081 = vsel %vm2070, 0, %v2080
        %2082 = vst [vmem:[#allocation3 + $0x1c] sm:$0x1] %v2081
        %v2083 = vld [vmem:[#allocation3 + $0x24] sm:$0x1]
        %v2084 = vsel %vm2070, 0, %v2083
        %2085 = vst [vmem:[#allocation3 + $0x24] sm:$0x1] %v2084
        %v2086 = vld [vmem:[#allocation3 + $0x2c] sm:$0x1]
        %v2087 = vsel %vm2070, 0, %v2086
        %2088 = vst [vmem:[#allocation3 + $0x2c] sm:$0x1] %v2087
        %v2089 = vld [vmem:[%s635] sm:$0xf]
        %v2090 = vmul.bf16 %v2089, %v816
        %v2092 = vshrl.u32 %v2090, 16
        %v2094 = vrot.slane %v2092, 7
        %v2095 = vshll.u32 %v2090, 16
        %v2097 = vor.u32 %v2094, %v2095
        %v2098 = vrot.slane %v2094, 4
        %vm2101 = vcmask 125952
        %vm2102 = vmand %vm2101, %vm767
        %v2103 = vld [vmem:[#allocation3] sm:$0xf]
        %v2104 = vsel %vm2102, %v2097, %v2103
        %2105 = vst [vmem:[#allocation3] sm:$0xf] %v2104
        %v2106 = vld [vmem:[#allocation3 + $0x4] sm:$0x1]
        %v2107 = vsel %vm2051, %v2098, %v2106
        %2108 = vst [vmem:[#allocation3 + $0x4] sm:$0x1] %v2107
        %v2109 = vld [vmem:[%s644] sm:$0xf]
        %v2110 = vmul.bf16 %v2109, %v840
        %v2112 = vshrl.u32 %v2110, 16
        %v2114 = vrot.slane %v2112, 7
        %v2115 = vshll.u32 %v2110, 16
        %v2117 = vor.u32 %v2114, %v2115
        %v2118 = vrot.slane %v2114, 4
        %s2121 = scalar_lea.vmem [#allocation3], 40
        %v2122 = vld [vmem:[%s2121] sm:$0xf]
        %v2123 = vsel %vm2102, %v2117, %v2122
        %2124 = vst [vmem:[%s2121] sm:$0xf] %v2123
        %v2125 = vld [vmem:[%s2121 + $0x4] sm:$0x1]
        %v2126 = vsel %vm2051, %v2118, %v2125
        %2127 = vst [vmem:[%s2121 + $0x4] sm:$0x1] %v2126
        %v2128 = vld [vmem:[%s626] sm:$0xf]
        %v2129 = vld [vmem:[%s626 + $0x4] sm:$0xf]
        %v2130 = vld [vmem:[%s626 + $0x8] sm:$0xf]
        %v2131 = vld [vmem:[%s626 + $0xc] sm:$0xf]
        %v2133 = vshrl.u32 %v2128, 16
        %v2135 = vrot.slane %v2133, 7
        %v2136 = vshll.u32 %v2128, 16
        %v2138 = vor.u32 %v2135, %v2136
        %v2139 = vrot.slane %v2135, 4
        %v2141 = vshrl.u32 %v2129, 16
        %v2143 = vrot.slane %v2141, 7
        %v2144 = vshll.u32 %v2129, 16
        %v2146 = vor.u32 %v2143, %v2144
        %v2147 = vrot.slane %v2143, 4
        %v2149 = vshrl.u32 %v2130, 16
        %v2151 = vrot.slane %v2149, 7
        %v2152 = vshll.u32 %v2130, 16
        %v2154 = vor.u32 %v2151, %v2152
        %v2155 = vrot.slane %v2151, 4
        %v2157 = vshrl.u32 %v2131, 16
        %v2159 = vrot.slane %v2157, 7
        %v2160 = vshll.u32 %v2131, 16
        %v2162 = vor.u32 %v2159, %v2160
        %v2163 = vrot.slane %v2159, 4
        %s2172 = scalar_lea.vmem [#allocation3], 8
        %v2173 = vld [vmem:[%s2172] sm:$0xf]
        %v2174 = vsel %vm2102, %v2138, %v2173
        %2175 = vst [vmem:[%s2172] sm:$0xf] %v2174
        %v2176 = vld [vmem:[%s2172 + $0x4] sm:$0x1]
        %v2177 = vsel %vm2051, %v2139, %v2176
        %2178 = vst [vmem:[%s2172 + $0x4] sm:$0x1] %v2177
        %v2179 = vld [vmem:[%s2172 + $0x8] sm:$0xf]
        %v2180 = vsel %vm2102, %v2146, %v2179
        %2181 = vst [vmem:[%s2172 + $0x8] sm:$0xf] %v2180
        %v2182 = vld [vmem:[%s2172 + $0xc] sm:$0x1]
        %v2183 = vsel %vm2051, %v2147, %v2182
        %2184 = vst [vmem:[%s2172 + $0xc] sm:$0x1] %v2183
        %v2185 = vld [vmem:[%s2172 + $0x10] sm:$0xf]
        %v2186 = vsel %vm2102, %v2154, %v2185
        %2187 = vst [vmem:[%s2172 + $0x10] sm:$0xf] %v2186
        %v2188 = vld [vmem:[%s2172 + $0x14] sm:$0x1]
        %v2189 = vsel %vm2051, %v2155, %v2188
        %2190 = vst [vmem:[%s2172 + $0x14] sm:$0x1] %v2189
        %v2191 = vld [vmem:[%s2172 + $0x18] sm:$0xf]
        %v2192 = vsel %vm2102, %v2162, %v2191
        %2193 = vst [vmem:[%s2172 + $0x18] sm:$0xf] %v2192
        %v2194 = vld [vmem:[%s2172 + $0x1c] sm:$0x1]
        %v2195 = vsel %vm2051, %v2163, %v2194
        %2196 = vst [vmem:[%s2172 + $0x1c] sm:$0x1] %v2195
        %v2197 = vld [vmem:[#allocation3] sm:$0xf]
        %v2198 = vld [vmem:[#allocation3 + $0x8] sm:$0xf]
        %v2199 = vld [vmem:[#allocation3 + $0x10] sm:$0xf]
        %v2200 = vld [vmem:[#allocation3 + $0x18] sm:$0xf]
        %v2201 = vld [vmem:[#allocation17] sm:$0xf]
        %v2202 = vld [vmem:[#allocation17 + $0x4] sm:$0xf]
        %v2207 = vunpack.c.l.b16 %v2197
        %v2208 = vunpack.c.l.b16 %v2198
        %v2209 = vunpack.c.l.b16 %v2199
        %v2210 = vunpack.c.l.b16 %v2200
        %v2211 = vpack.c.b16 %v2208, %v2207
        %v2212 = vpack.c.b16 %v2210, %v2209
        %v2215 = vunpack.c.l.b16 %v2201
        %v2216 = vunpack.c.l.b16 %v2202
        %v2217 = vpack.c.b16 %v2216, %v2215
        %vm2219 = vcmask 130048
        %v2221 = vsel %vm2219, %v2211, 0
        %v2224 = vsel %vm2219, %v2212, 0
        %2226 = vmatprep.subr.bf16.mxu0 0
        %2227 = vmatpush1.bf16.msra.mxu0 0
        %2228 = vmatprep.subr.bf16.mxu0 0
        %2229 = vmatpush1.bf16.msra.mxu0 0
        %2230 = vmatprep.subr.bf16.mxu0 0
        %2231 = vmatpush1.bf16.msra.mxu0 0
        %2232 = vmatprep.subr.bf16.mxu0 0
        %2233 = vmatpush1.bf16.msra.mxu0 0
        %2234 = vmatprep.subr.bf16.mxu0 0
        %2235 = vmatpush1.bf16.msra.mxu0 0
        %2236 = vmatprep.subr.bf16.mxu0 0
        %2237 = vmatpush1.bf16.msra.mxu0 0
        %2238 = vmatprep.subr.bf16.mxu0 0
        %2239 = vmatpush1.bf16.msra.mxu0 0
        %2240 = vmatprep.subr.bf16.mxu0 0
        %2241 = vmatpush1.bf16.msra.mxu0 %v2217
        %2242 = vmatprep.subr.bf16.mxu0 0
        %2243 = vmatpush2.bf16.msra.mxu0 0
        %2244 = vmatprep.subr.bf16.mxu0 0
        %2245 = vmatpush2.bf16.msra.mxu0 0
        %2246 = vmatprep.subr.bf16.mxu0 0
        %2247 = vmatpush2.bf16.msra.mxu0 0
        %2248 = vmatprep.subr.bf16.mxu0 0
        %2249 = vmatpush2.bf16.msra.mxu0 0
        %2250 = vmatprep.subr.bf16.mxu0 0
        %2251 = vmatpush2.bf16.msra.mxu0 0
        %2252 = vmatprep.subr.bf16.mxu0 0
        %2253 = vmatpush2.bf16.msra.mxu0 0
        %2254 = vmatprep.subr.bf16.mxu0 0
        %2255 = vmatpush2.bf16.msra.mxu0 0
        %2256 = vmatprep.subr.bf16.mxu0 0
        %2257 = vmatpush2.bf16.msra.mxu0 0
        %2258 = vmatprep.mubr.bf16.mxu0 0
        %2259 = vmatmul.mubr.bf16.gmra.mxu0 %v2221
        %v2260 = vpop.f32.mrf.mxu0
        %v2261 = vadd.f32 0.0, %v2260
        %v2262 = vpop.f32.mrf.mxu0
        %v2263 = vpop.f32.mrf.mxu0
        %v2264 = vadd.f32 0.0, %v2263
        %v2265 = vpop.f32.mrf.mxu0
        %2266 = vmatprep.mubr.bf16.mxu0 0
        %2267 = vmatmul.mubr.bf16.gmra.mxu0 %v2224
        %v2268 = vpop.f32.mrf.mxu0
        %v2269 = vadd.f32 0.0, %v2268
        %v2270 = vpop.f32.mrf.mxu0
        %v2271 = vpop.f32.mrf.mxu0
        %v2272 = vadd.f32 0.0, %v2271
        %v2273 = vpop.f32.mrf.mxu0
        %2274 = vdwg.mxu0
        %v2275 = vld [vmem:[#allocation4] sm:$0xff]
        %v2276 = vld [vmem:[#allocation4 + $0x8] sm:$0xff]
        %v2277 = vld [vmem:[#allocation4 + $0x10] sm:$0xff]
        %v2278 = vld [vmem:[#allocation4 + $0x18] sm:$0xff]
        %v2279 = vadd.f32 %v2275, %v2261
        %v2280 = vadd.f32 %v2276, %v2264
        %v2281 = vadd.f32 %v2277, %v2269
        %v2282 = vadd.f32 %v2278, %v2272
        %2283 = vst [vmem:[#allocation4] sm:$0xff] %v2279
        %2284 = vst [vmem:[#allocation4 + $0x8] sm:$0xff] %v2280
        %2285 = vst [vmem:[#allocation4 + $0x10] sm:$0xff] %v2281
        %2286 = vst [vmem:[#allocation4 + $0x18] sm:$0xff] %v2282
        %v2287 = vld [vmem:[#allocation3] sm:$0xf]
        %v2288 = vld [vmem:[#allocation3 + $0x4] sm:$0x1]
        %v2289 = vld [vmem:[#allocation3 + $0x8] sm:$0xf]
        %v2290 = vld [vmem:[#allocation3 + $0xc] sm:$0x1]
        %v2291 = vld [vmem:[#allocation3 + $0x10] sm:$0xf]
        %v2292 = vld [vmem:[#allocation3 + $0x14] sm:$0x1]
        %v2293 = vld [vmem:[#allocation3 + $0x18] sm:$0xf]
        %v2294 = vld [vmem:[#allocation3 + $0x1c] sm:$0x1]
        %v2296 = vshrl.u32 %v2287, 16
        %v2298 = vrot.slane %v2296, 4
        %v2299 = vshll.u32 %v2287, 16
        %v2301 = vrot.slane %v2299, 5
        %v2302 = vor.u32 %v2298, %v2301
        %v2303 = vrot.slane %v2302, 4
        %v2305 = vshll.u32 %v2288, 16
        %v2307 = vrot.slane %v2305, 5
        %v2308 = vsel %vm1029, %v2303, %v2307
        %v2310 = vshrl.u32 %v2289, 16
        %v2312 = vrot.slane %v2310, 4
        %v2313 = vshll.u32 %v2289, 16
        %v2315 = vrot.slane %v2313, 5
        %v2316 = vor.u32 %v2312, %v2315
        %v2317 = vrot.slane %v2316, 4
        %v2319 = vshll.u32 %v2290, 16
        %v2321 = vrot.slane %v2319, 5
        %v2322 = vsel %vm1029, %v2317, %v2321
        %v2324 = vshrl.u32 %v2291, 16
        %v2326 = vrot.slane %v2324, 4
        %v2327 = vshll.u32 %v2291, 16
        %v2329 = vrot.slane %v2327, 5
        %v2330 = vor.u32 %v2326, %v2329
        %v2331 = vrot.slane %v2330, 4
        %v2333 = vshll.u32 %v2292, 16
        %v2335 = vrot.slane %v2333, 5
        %v2336 = vsel %vm1029, %v2331, %v2335
        %v2338 = vshrl.u32 %v2293, 16
        %v2340 = vrot.slane %v2338, 4
        %v2341 = vshll.u32 %v2293, 16
        %v2343 = vrot.slane %v2341, 5
        %v2344 = vor.u32 %v2340, %v2343
        %v2345 = vrot.slane %v2344, 4
        %v2347 = vshll.u32 %v2294, 16
        %v2349 = vrot.slane %v2347, 5
        %v2350 = vsel %vm1029, %v2345, %v2349
        %s2351 = scalar_lea.vmem [#allocation17], 8
        %v2352 = vld [vmem:[%s2351] sm:$0xf]
        %v2353 = vld [vmem:[%s2351 + $0x4] sm:$0xf]
        %v2354 = vunpack.c.l.b16 %v2308
        %v2355 = vunpack.c.l.b16 %v2322
        %v2356 = vunpack.c.l.b16 %v2336
        %v2357 = vunpack.c.l.b16 %v2350
        %v2358 = vpack.c.b16 %v2355, %v2354
        %v2359 = vpack.c.b16 %v2357, %v2356
        %v2362 = vunpack.c.l.b16 %v2352
        %v2363 = vunpack.c.l.b16 %v2353
        %v2364 = vpack.c.b16 %v2363, %v2362
        %v2367 = vsel %vm2219, %v2358, 0
        %v2370 = vsel %vm2219, %v2359, 0
        %2372 = vmatprep.subr.bf16.mxu0 0
        %2373 = vmatpush1.bf16.msra.mxu0 0
        %2374 = vmatprep.subr.bf16.mxu0 0
        %2375 = vmatpush1.bf16.msra.mxu0 0
        %2376 = vmatprep.subr.bf16.mxu0 0
        %2377 = vmatpush1.bf16.msra.mxu0 0
        %2378 = vmatprep.subr.bf16.mxu0 0
        %2379 = vmatpush1.bf16.msra.mxu0 0
        %2380 = vmatprep.subr.bf16.mxu0 0
        %2381 = vmatpush1.bf16.msra.mxu0 0
        %2382 = vmatprep.subr.bf16.mxu0 0
        %2383 = vmatpush1.bf16.msra.mxu0 0
        %2384 = vmatprep.subr.bf16.mxu0 0
        %2385 = vmatpush1.bf16.msra.mxu0 0
        %2386 = vmatprep.subr.bf16.mxu0 0
        %2387 = vmatpush1.bf16.msra.mxu0 %v2364
        %2388 = vmatprep.subr.bf16.mxu0 0
        %2389 = vmatpush2.bf16.msra.mxu0 0
        %2390 = vmatprep.subr.bf16.mxu0 0
        %2391 = vmatpush2.bf16.msra.mxu0 0
        %2392 = vmatprep.subr.bf16.mxu0 0
        %2393 = vmatpush2.bf16.msra.mxu0 0
        %2394 = vmatprep.subr.bf16.mxu0 0
        %2395 = vmatpush2.bf16.msra.mxu0 0
        %2396 = vmatprep.subr.bf16.mxu0 0
        %2397 = vmatpush2.bf16.msra.mxu0 0
        %2398 = vmatprep.subr.bf16.mxu0 0
        %2399 = vmatpush2.bf16.msra.mxu0 0
        %2400 = vmatprep.subr.bf16.mxu0 0
        %2401 = vmatpush2.bf16.msra.mxu0 0
        %2402 = vmatprep.subr.bf16.mxu0 0
        %2403 = vmatpush2.bf16.msra.mxu0 0
        %2404 = vmatprep.mubr.bf16.mxu0 0
        %2405 = vmatmul.mubr.bf16.gmra.mxu0 %v2367
        %v2406 = vpop.f32.mrf.mxu0
        %v2407 = vadd.f32 0.0, %v2406
        %v2408 = vpop.f32.mrf.mxu0
        %v2409 = vpop.f32.mrf.mxu0
        %v2410 = vadd.f32 0.0, %v2409
        %v2411 = vpop.f32.mrf.mxu0
        %2412 = vmatprep.mubr.bf16.mxu0 0
        %2413 = vmatmul.mubr.bf16.gmra.mxu0 %v2370
        %v2414 = vpop.f32.mrf.mxu0
        %v2415 = vadd.f32 0.0, %v2414
        %v2416 = vpop.f32.mrf.mxu0
        %v2417 = vpop.f32.mrf.mxu0
        %v2418 = vadd.f32 0.0, %v2417
        %v2419 = vpop.f32.mrf.mxu0
        %2420 = vdwg.mxu0
        %v2421 = vld [vmem:[#allocation4] sm:$0xff]
        %v2422 = vld [vmem:[#allocation4 + $0x8] sm:$0xff]
        %v2423 = vld [vmem:[#allocation4 + $0x10] sm:$0xff]
        %v2424 = vld [vmem:[#allocation4 + $0x18] sm:$0xff]
        %v2425 = vadd.f32 %v2421, %v2407
        %v2426 = vadd.f32 %v2422, %v2410
        %v2427 = vadd.f32 %v2423, %v2415
        %v2428 = vadd.f32 %v2424, %v2418
        %2429 = vst [vmem:[#allocation4] sm:$0xff] %v2425
        %2430 = vst [vmem:[#allocation4 + $0x8] sm:$0xff] %v2426
        %2431 = vst [vmem:[#allocation4 + $0x10] sm:$0xff] %v2427
        %2432 = vst [vmem:[#allocation4 + $0x18] sm:$0xff] %v2428
        %v2433 = vld [vmem:[#allocation3] sm:$0xe]
        %v2434 = vld [vmem:[#allocation3 + $0x4] sm:$0x1]
        %v2435 = vld [vmem:[#allocation3 + $0x8] sm:$0xe]
        %v2436 = vld [vmem:[#allocation3 + $0xc] sm:$0x1]
        %v2437 = vld [vmem:[#allocation3 + $0x10] sm:$0xe]
        %v2438 = vld [vmem:[#allocation3 + $0x14] sm:$0x1]
        %v2439 = vld [vmem:[#allocation3 + $0x18] sm:$0xe]
        %v2440 = vld [vmem:[#allocation3 + $0x1c] sm:$0x1]
        %v2449 = vrot.slane %v2433, 5
        %v2450 = vrot.slane %v2449, 4
        %v2451 = vrot.slane %v2434, 5
        %v2452 = vsel %vm1194, %v2450, %v2451
        %v2453 = vrot.slane %v2435, 5
        %v2454 = vrot.slane %v2453, 4
        %v2455 = vrot.slane %v2436, 5
        %v2456 = vsel %vm1194, %v2454, %v2455
        %v2457 = vrot.slane %v2437, 5
        %v2458 = vrot.slane %v2457, 4
        %v2459 = vrot.slane %v2438, 5
        %v2460 = vsel %vm1194, %v2458, %v2459
        %v2461 = vrot.slane %v2439, 5
        %v2462 = vrot.slane %v2461, 4
        %v2463 = vrot.slane %v2440, 5
        %v2464 = vsel %vm1194, %v2462, %v2463
        %s2465 = scalar_lea.vmem [#allocation17], 16
        %v2466 = vld [vmem:[%s2465] sm:$0xf]
        %v2467 = vld [vmem:[%s2465 + $0x4] sm:$0xf]
        %v2468 = vunpack.c.l.b16 %v2452
        %v2469 = vunpack.c.l.b16 %v2456
        %v2470 = vunpack.c.l.b16 %v2460
        %v2471 = vunpack.c.l.b16 %v2464
        %v2472 = vpack.c.b16 %v2469, %v2468
        %v2473 = vpack.c.b16 %v2471, %v2470
        %v2476 = vunpack.c.l.b16 %v2466
        %v2477 = vunpack.c.l.b16 %v2467
        %v2478 = vpack.c.b16 %v2477, %v2476
        %v2481 = vsel %vm2219, %v2472, 0
        %v2484 = vsel %vm2219, %v2473, 0
        %2486 = vmatprep.subr.bf16.mxu0 0
        %2487 = vmatpush1.bf16.msra.mxu0 0
        %2488 = vmatprep.subr.bf16.mxu0 0
        %2489 = vmatpush1.bf16.msra.mxu0 0
        %2490 = vmatprep.subr.bf16.mxu0 0
        %2491 = vmatpush1.bf16.msra.mxu0 0
        %2492 = vmatprep.subr.bf16.mxu0 0
        %2493 = vmatpush1.bf16.msra.mxu0 0
        %2494 = vmatprep.subr.bf16.mxu0 0
        %2495 = vmatpush1.bf16.msra.mxu0 0
        %2496 = vmatprep.subr.bf16.mxu0 0
        %2497 = vmatpush1.bf16.msra.mxu0 0
        %2498 = vmatprep.subr.bf16.mxu0 0
        %2499 = vmatpush1.bf16.msra.mxu0 0
        %2500 = vmatprep.subr.bf16.mxu0 0
        %2501 = vmatpush1.bf16.msra.mxu0 %v2478
        %2502 = vmatprep.subr.bf16.mxu0 0
        %2503 = vmatpush2.bf16.msra.mxu0 0
        %2504 = vmatprep.subr.bf16.mxu0 0
        %2505 = vmatpush2.bf16.msra.mxu0 0
        %2506 = vmatprep.subr.bf16.mxu0 0
        %2507 = vmatpush2.bf16.msra.mxu0 0
        %2508 = vmatprep.subr.bf16.mxu0 0
        %2509 = vmatpush2.bf16.msra.mxu0 0
        %2510 = vmatprep.subr.bf16.mxu0 0
        %2511 = vmatpush2.bf16.msra.mxu0 0
        %2512 = vmatprep.subr.bf16.mxu0 0
        %2513 = vmatpush2.bf16.msra.mxu0 0
        %2514 = vmatprep.subr.bf16.mxu0 0
        %2515 = vmatpush2.bf16.msra.mxu0 0
        %2516 = vmatprep.subr.bf16.mxu0 0
        %2517 = vmatpush2.bf16.msra.mxu0 0
        %2518 = vmatprep.mubr.bf16.mxu0 0
        %2519 = vmatmul.mubr.bf16.gmra.mxu0 %v2481
        %v2520 = vpop.f32.mrf.mxu0
        %v2521 = vadd.f32 0.0, %v2520
        %v2522 = vpop.f32.mrf.mxu0
        %v2523 = vpop.f32.mrf.mxu0
        %v2524 = vadd.f32 0.0, %v2523
        %v2525 = vpop.f32.mrf.mxu0
        %2526 = vmatprep.mubr.bf16.mxu0 0
        %2527 = vmatmul.mubr.bf16.gmra.mxu0 %v2484
        %v2528 = vpop.f32.mrf.mxu0
        %v2529 = vadd.f32 0.0, %v2528
        %v2530 = vpop.f32.mrf.mxu0
        %v2531 = vpop.f32.mrf.mxu0
        %v2532 = vadd.f32 0.0, %v2531
        %v2533 = vpop.f32.mrf.mxu0
        %2534 = vdwg.mxu0
        %v2535 = vld [vmem:[#allocation4] sm:$0xff]
        %v2536 = vld [vmem:[#allocation4 + $0x8] sm:$0xff]
        %v2537 = vld [vmem:[#allocation4 + $0x10] sm:$0xff]
        %v2538 = vld [vmem:[#allocation4 + $0x18] sm:$0xff]
        %v2539 = vadd.f32 %v2535, %v2521
        %v2540 = vadd.f32 %v2536, %v2524
        %v2541 = vadd.f32 %v2537, %v2529
        %v2542 = vadd.f32 %v2538, %v2532
        %2543 = vst [vmem:[#allocation4] sm:$0xff] %v2539
        %2544 = vst [vmem:[#allocation4 + $0x8] sm:$0xff] %v2540
        %2545 = vst [vmem:[#allocation4 + $0x10] sm:$0xff] %v2541
        %2546 = vst [vmem:[#allocation4 + $0x18] sm:$0xff] %v2542
        %v2547 = vld [vmem:[%s2172] sm:$0xf]
        %v2548 = vld [vmem:[%s2172 + $0x8] sm:$0xf]
        %v2549 = vld [vmem:[%s2172 + $0x10] sm:$0xf]
        %v2550 = vld [vmem:[%s2172 + $0x18] sm:$0xf]
        %s2551 = scalar_lea.vmem [#allocation17], 24
        %v2552 = vld [vmem:[%s2551] sm:$0xf]
        %v2553 = vld [vmem:[%s2551 + $0x4] sm:$0xf]
        %v2558 = vunpack.c.l.b16 %v2547
        %v2559 = vunpack.c.l.b16 %v2548
        %v2560 = vunpack.c.l.b16 %v2549
        %v2561 = vunpack.c.l.b16 %v2550
        %v2562 = vpack.c.b16 %v2559, %v2558
        %v2563 = vpack.c.b16 %v2561, %v2560
        %v2566 = vunpack.c.l.b16 %v2552
        %v2567 = vunpack.c.l.b16 %v2553
        %v2568 = vpack.c.b16 %v2567, %v2566
        %v2571 = vsel %vm2219, %v2562, 0
        %v2574 = vsel %vm2219, %v2563, 0
        %2576 = vmatprep.subr.bf16.mxu0 0
        %2577 = vmatpush1.bf16.msra.mxu0 0
        %2578 = vmatprep.subr.bf16.mxu0 0
        %2579 = vmatpush1.bf16.msra.mxu0 0
        %2580 = vmatprep.subr.bf16.mxu0 0
        %2581 = vmatpush1.bf16.msra.mxu0 0
        %2582 = vmatprep.subr.bf16.mxu0 0
        %2583 = vmatpush1.bf16.msra.mxu0 0
        %2584 = vmatprep.subr.bf16.mxu0 0
        %2585 = vmatpush1.bf16.msra.mxu0 0
        %2586 = vmatprep.subr.bf16.mxu0 0
        %2587 = vmatpush1.bf16.msra.mxu0 0
        %2588 = vmatprep.subr.bf16.mxu0 0
        %2589 = vmatpush1.bf16.msra.mxu0 0
        %2590 = vmatprep.subr.bf16.mxu0 0
        %2591 = vmatpush1.bf16.msra.mxu0 %v2568
        %2592 = vmatprep.subr.bf16.mxu0 0
        %2593 = vmatpush2.bf16.msra.mxu0 0
        %2594 = vmatprep.subr.bf16.mxu0 0
        %2595 = vmatpush2.bf16.msra.mxu0 0
        %2596 = vmatprep.subr.bf16.mxu0 0
        %2597 = vmatpush2.bf16.msra.mxu0 0
        %2598 = vmatprep.subr.bf16.mxu0 0
        %2599 = vmatpush2.bf16.msra.mxu0 0
        %2600 = vmatprep.subr.bf16.mxu0 0
        %2601 = vmatpush2.bf16.msra.mxu0 0
        %2602 = vmatprep.subr.bf16.mxu0 0
        %2603 = vmatpush2.bf16.msra.mxu0 0
        %2604 = vmatprep.subr.bf16.mxu0 0
        %2605 = vmatpush2.bf16.msra.mxu0 0
        %2606 = vmatprep.subr.bf16.mxu0 0
        %2607 = vmatpush2.bf16.msra.mxu0 0
        %2608 = vmatprep.mubr.bf16.mxu0 0
        %2609 = vmatmul.mubr.bf16.gmra.mxu0 %v2571
        %v2610 = vpop.f32.mrf.mxu0
        %v2611 = vadd.f32 0.0, %v2610
        %v2612 = vpop.f32.mrf.mxu0
        %v2613 = vpop.f32.mrf.mxu0
        %v2614 = vadd.f32 0.0, %v2613
        %v2615 = vpop.f32.mrf.mxu0
        %2616 = vmatprep.mubr.bf16.mxu0 0
        %2617 = vmatmul.mubr.bf16.gmra.mxu0 %v2574
        %v2618 = vpop.f32.mrf.mxu0
        %v2619 = vadd.f32 0.0, %v2618
        %v2620 = vpop.f32.mrf.mxu0
        %v2621 = vpop.f32.mrf.mxu0
        %v2622 = vadd.f32 0.0, %v2621
        %v2623 = vpop.f32.mrf.mxu0
        %2624 = vdwg.mxu0
        %v2625 = vld [vmem:[#allocation4] sm:$0xff]
        %v2626 = vld [vmem:[#allocation4 + $0x8] sm:$0xff]
        %v2627 = vld [vmem:[#allocation4 + $0x10] sm:$0xff]
        %v2628 = vld [vmem:[#allocation4 + $0x18] sm:$0xff]
        %v2629 = vadd.f32 %v2625, %v2611
        %v2630 = vadd.f32 %v2626, %v2614
        %v2631 = vadd.f32 %v2627, %v2619
        %v2632 = vadd.f32 %v2628, %v2622
        %2633 = vst [vmem:[#allocation4] sm:$0xff] %v2629
        %2634 = vst [vmem:[#allocation4 + $0x8] sm:$0xff] %v2630
        %2635 = vst [vmem:[#allocation4 + $0x10] sm:$0xff] %v2631
        %2636 = vst [vmem:[#allocation4 + $0x18] sm:$0xff] %v2632
        %v2637 = vld [vmem:[%s2172] sm:$0xf]
        %v2638 = vld [vmem:[%s2172 + $0x4] sm:$0x1]
        %v2639 = vld [vmem:[%s2172 + $0x8] sm:$0xf]
        %v2640 = vld [vmem:[%s2172 + $0xc] sm:$0x1]
        %v2641 = vld [vmem:[%s2172 + $0x10] sm:$0xf]
        %v2642 = vld [vmem:[%s2172 + $0x14] sm:$0x1]
        %v2643 = vld [vmem:[%s2172 + $0x18] sm:$0xf]
        %v2644 = vld [vmem:[%s2172 + $0x1c] sm:$0x1]
        %v2646 = vshrl.u32 %v2637, 16
        %v2648 = vrot.slane %v2646, 4
        %v2649 = vshll.u32 %v2637, 16
        %v2651 = vrot.slane %v2649, 5
        %v2652 = vor.u32 %v2648, %v2651
        %v2653 = vrot.slane %v2652, 4
        %v2655 = vshll.u32 %v2638, 16
        %v2657 = vrot.slane %v2655, 5
        %v2658 = vsel %vm1029, %v2653, %v2657
        %v2660 = vshrl.u32 %v2639, 16
        %v2662 = vrot.slane %v2660, 4
        %v2663 = vshll.u32 %v2639, 16
        %v2665 = vrot.slane %v2663, 5
        %v2666 = vor.u32 %v2662, %v2665
        %v2667 = vrot.slane %v2666, 4
        %v2669 = vshll.u32 %v2640, 16
        %v2671 = vrot.slane %v2669, 5
        %v2672 = vsel %vm1029, %v2667, %v2671
        %v2674 = vshrl.u32 %v2641, 16
        %v2676 = vrot.slane %v2674, 4
        %v2677 = vshll.u32 %v2641, 16
        %v2679 = vrot.slane %v2677, 5
        %v2680 = vor.u32 %v2676, %v2679
        %v2681 = vrot.slane %v2680, 4
        %v2683 = vshll.u32 %v2642, 16
        %v2685 = vrot.slane %v2683, 5
        %v2686 = vsel %vm1029, %v2681, %v2685
        %v2688 = vshrl.u32 %v2643, 16
        %v2690 = vrot.slane %v2688, 4
        %v2691 = vshll.u32 %v2643, 16
        %v2693 = vrot.slane %v2691, 5
        %v2694 = vor.u32 %v2690, %v2693
        %v2695 = vrot.slane %v2694, 4
        %v2697 = vshll.u32 %v2644, 16
        %v2699 = vrot.slane %v2697, 5
        %v2700 = vsel %vm1029, %v2695, %v2699
        %s2701 = scalar_lea.vmem [#allocation17], 32
        %v2702 = vld [vmem:[%s2701] sm:$0xf]
        %v2703 = vld [vmem:[%s2701 + $0x4] sm:$0xf]
        %v2704 = vunpack.c.l.b16 %v2658
        %v2705 = vunpack.c.l.b16 %v2672
        %v2706 = vunpack.c.l.b16 %v2686
        %v2707 = vunpack.c.l.b16 %v2700
        %v2708 = vpack.c.b16 %v2705, %v2704
        %v2709 = vpack.c.b16 %v2707, %v2706
        %v2712 = vunpack.c.l.b16 %v2702
        %v2713 = vunpack.c.l.b16 %v2703
        %v2714 = vpack.c.b16 %v2713, %v2712
        %v2717 = vsel %vm2219, %v2708, 0
        %v2720 = vsel %vm2219, %v2709, 0
        %2722 = vmatprep.subr.bf16.mxu0 0
        %2723 = vmatpush1.bf16.msra.mxu0 0
        %2724 = vmatprep.subr.bf16.mxu0 0
        %2725 = vmatpush1.bf16.msra.mxu0 0
        %2726 = vmatprep.subr.bf16.mxu0 0
        %2727 = vmatpush1.bf16.msra.mxu0 0
        %2728 = vmatprep.subr.bf16.mxu0 0
        %2729 = vmatpush1.bf16.msra.mxu0 0
        %2730 = vmatprep.subr.bf16.mxu0 0
        %2731 = vmatpush1.bf16.msra.mxu0 0
        %2732 = vmatprep.subr.bf16.mxu0 0
        %2733 = vmatpush1.bf16.msra.mxu0 0
        %2734 = vmatprep.subr.bf16.mxu0 0
        %2735 = vmatpush1.bf16.msra.mxu0 0
        %2736 = vmatprep.subr.bf16.mxu0 0
        %2737 = vmatpush1.bf16.msra.mxu0 %v2714
        %2738 = vmatprep.subr.bf16.mxu0 0
        %2739 = vmatpush2.bf16.msra.mxu0 0
        %2740 = vmatprep.subr.bf16.mxu0 0
        %2741 = vmatpush2.bf16.msra.mxu0 0
        %2742 = vmatprep.subr.bf16.mxu0 0
        %2743 = vmatpush2.bf16.msra.mxu0 0
        %2744 = vmatprep.subr.bf16.mxu0 0
        %2745 = vmatpush2.bf16.msra.mxu0 0
        %2746 = vmatprep.subr.bf16.mxu0 0
        %2747 = vmatpush2.bf16.msra.mxu0 0
        %2748 = vmatprep.subr.bf16.mxu0 0
        %2749 = vmatpush2.bf16.msra.mxu0 0
        %2750 = vmatprep.subr.bf16.mxu0 0
        %2751 = vmatpush2.bf16.msra.mxu0 0
        %2752 = vmatprep.subr.bf16.mxu0 0
        %2753 = vmatpush2.bf16.msra.mxu0 0
        %2754 = vmatprep.mubr.bf16.mxu0 0
        %2755 = vmatmul.mubr.bf16.gmra.mxu0 %v2717
        %v2756 = vpop.f32.mrf.mxu0
        %v2757 = vadd.f32 0.0, %v2756
        %v2758 = vpop.f32.mrf.mxu0
        %v2759 = vpop.f32.mrf.mxu0
        %v2760 = vadd.f32 0.0, %v2759
        %v2761 = vpop.f32.mrf.mxu0
        %2762 = vmatprep.mubr.bf16.mxu0 0
        %2763 = vmatmul.mubr.bf16.gmra.mxu0 %v2720
        %v2764 = vpop.f32.mrf.mxu0
        %v2765 = vadd.f32 0.0, %v2764
        %v2766 = vpop.f32.mrf.mxu0
        %v2767 = vpop.f32.mrf.mxu0
        %v2768 = vadd.f32 0.0, %v2767
        %v2769 = vpop.f32.mrf.mxu0
        %2770 = vdwg.mxu0
        %v2771 = vld [vmem:[#allocation4] sm:$0xff]
        %v2772 = vld [vmem:[#allocation4 + $0x8] sm:$0xff]
        %v2773 = vld [vmem:[#allocation4 + $0x10] sm:$0xff]
        %v2774 = vld [vmem:[#allocation4 + $0x18] sm:$0xff]
        %v2775 = vadd.f32 %v2771, %v2757
        %v2776 = vadd.f32 %v2772, %v2760
        %v2777 = vadd.f32 %v2773, %v2765
        %v2778 = vadd.f32 %v2774, %v2768
        %2779 = vst [vmem:[#allocation4] sm:$0xff] %v2775
        %2780 = vst [vmem:[#allocation4 + $0x8] sm:$0xff] %v2776
        %2781 = vst [vmem:[#allocation4 + $0x10] sm:$0xff] %v2777
        %2782 = vst [vmem:[#allocation4 + $0x18] sm:$0xff] %v2778
        %v2783 = vld [vmem:[%s2172] sm:$0xe]
        %v2784 = vld [vmem:[%s2172 + $0x4] sm:$0x1]
        %v2785 = vld [vmem:[%s2172 + $0x8] sm:$0xe]
        %v2786 = vld [vmem:[%s2172 + $0xc] sm:$0x1]
        %v2787 = vld [vmem:[%s2172 + $0x10] sm:$0xe]
        %v2788 = vld [vmem:[%s2172 + $0x14] sm:$0x1]
        %v2789 = vld [vmem:[%s2172 + $0x18] sm:$0xe]
        %v2790 = vld [vmem:[%s2172 + $0x1c] sm:$0x1]
        %v2799 = vrot.slane %v2783, 5
        %v2800 = vrot.slane %v2799, 4
        %v2801 = vrot.slane %v2784, 5
        %v2802 = vsel %vm1194, %v2800, %v2801
        %v2803 = vrot.slane %v2785, 5
        %v2804 = vrot.slane %v2803, 4
        %v2805 = vrot.slane %v2786, 5
        %v2806 = vsel %vm1194, %v2804, %v2805
        %v2807 = vrot.slane %v2787, 5
        %v2808 = vrot.slane %v2807, 4
        %v2809 = vrot.slane %v2788, 5
        %v2810 = vsel %vm1194, %v2808, %v2809
        %v2811 = vrot.slane %v2789, 5
        %v2812 = vrot.slane %v2811, 4
        %v2813 = vrot.slane %v2790, 5
        %v2814 = vsel %vm1194, %v2812, %v2813
        %s2815 = scalar_lea.vmem [#allocation17], 40
        %v2816 = vld [vmem:[%s2815] sm:$0xf]
        %v2817 = vld [vmem:[%s2815 + $0x4] sm:$0xf]
        %v2818 = vunpack.c.l.b16 %v2802
        %v2819 = vunpack.c.l.b16 %v2806
        %v2820 = vunpack.c.l.b16 %v2810
        %v2821 = vunpack.c.l.b16 %v2814
        %v2822 = vpack.c.b16 %v2819, %v2818
        %v2823 = vpack.c.b16 %v2821, %v2820
        %v2826 = vunpack.c.l.b16 %v2816
        %v2827 = vunpack.c.l.b16 %v2817
        %v2828 = vpack.c.b16 %v2827, %v2826
        %v2831 = vsel %vm2219, %v2822, 0
        %v2834 = vsel %vm2219, %v2823, 0
        %2836 = vmatprep.subr.bf16.mxu0 0
        %2837 = vmatpush1.bf16.msra.mxu0 0
        %2838 = vmatprep.subr.bf16.mxu0 0
        %2839 = vmatpush1.bf16.msra.mxu0 0
        %2840 = vmatprep.subr.bf16.mxu0 0
        %2841 = vmatpush1.bf16.msra.mxu0 0
        %2842 = vmatprep.subr.bf16.mxu0 0
        %2843 = vmatpush1.bf16.msra.mxu0 0
        %2844 = vmatprep.subr.bf16.mxu0 0
        %2845 = vmatpush1.bf16.msra.mxu0 0
        %2846 = vmatprep.subr.bf16.mxu0 0
        %2847 = vmatpush1.bf16.msra.mxu0 0
        %2848 = vmatprep.subr.bf16.mxu0 0
        %2849 = vmatpush1.bf16.msra.mxu0 0
        %2850 = vmatprep.subr.bf16.mxu0 0
        %2851 = vmatpush1.bf16.msra.mxu0 %v2828
        %2852 = vmatprep.subr.bf16.mxu0 0
        %2853 = vmatpush2.bf16.msra.mxu0 0
        %2854 = vmatprep.subr.bf16.mxu0 0
        %2855 = vmatpush2.bf16.msra.mxu0 0
        %2856 = vmatprep.subr.bf16.mxu0 0
        %2857 = vmatpush2.bf16.msra.mxu0 0
        %2858 = vmatprep.subr.bf16.mxu0 0
        %2859 = vmatpush2.bf16.msra.mxu0 0
        %2860 = vmatprep.subr.bf16.mxu0 0
        %2861 = vmatpush2.bf16.msra.mxu0 0
        %2862 = vmatprep.subr.bf16.mxu0 0
        %2863 = vmatpush2.bf16.msra.mxu0 0
        %2864 = vmatprep.subr.bf16.mxu0 0
        %2865 = vmatpush2.bf16.msra.mxu0 0
        %2866 = vmatprep.subr.bf16.mxu0 0
        %2867 = vmatpush2.bf16.msra.mxu0 0
        %2868 = vmatprep.mubr.bf16.mxu0 0
        %2869 = vmatmul.mubr.bf16.gmra.mxu0 %v2831
        %v2870 = vpop.f32.mrf.mxu0
        %v2871 = vadd.f32 0.0, %v2870
        %v2872 = vpop.f32.mrf.mxu0
        %v2873 = vpop.f32.mrf.mxu0
        %v2874 = vadd.f32 0.0, %v2873
        %v2875 = vpop.f32.mrf.mxu0
        %2876 = vmatprep.mubr.bf16.mxu0 0
        %2877 = vmatmul.mubr.bf16.gmra.mxu0 %v2834
        %v2878 = vpop.f32.mrf.mxu0
        %v2879 = vadd.f32 0.0, %v2878
        %v2880 = vpop.f32.mrf.mxu0
        %v2881 = vpop.f32.mrf.mxu0
        %v2882 = vadd.f32 0.0, %v2881
        %v2883 = vpop.f32.mrf.mxu0
        %2884 = vdwg.mxu0
        %v2885 = vld [vmem:[#allocation4] sm:$0xff]
        %v2886 = vld [vmem:[#allocation4 + $0x8] sm:$0xff]
        %v2887 = vld [vmem:[#allocation4 + $0x10] sm:$0xff]
        %v2888 = vld [vmem:[#allocation4 + $0x18] sm:$0xff]
        %v2889 = vadd.f32 %v2885, %v2871
        %v2890 = vadd.f32 %v2886, %v2874
        %v2891 = vadd.f32 %v2887, %v2879
        %v2892 = vadd.f32 %v2888, %v2882
        %2893 = vst [vmem:[#allocation4] sm:$0xff] %v2889
        %2894 = vst [vmem:[#allocation4 + $0x8] sm:$0xff] %v2890
        %2895 = vst [vmem:[#allocation4 + $0x10] sm:$0xff] %v2891
        %2896 = vst [vmem:[#allocation4 + $0x18] sm:$0xff] %v2892
        %s2897 = scalar_lea.vmem [#allocation3], 16
        %v2898 = vld [vmem:[%s2897] sm:$0xf]
        %v2899 = vld [vmem:[%s2897 + $0x8] sm:$0xf]
        %v2900 = vld [vmem:[%s2897 + $0x10] sm:$0xf]
        %v2901 = vld [vmem:[%s2897 + $0x18] sm:$0xf]
        %s2902 = scalar_lea.vmem [#allocation17], 48
        %v2903 = vld [vmem:[%s2902] sm:$0xf]
        %v2904 = vld [vmem:[%s2902 + $0x4] sm:$0xf]
        %v2909 = vunpack.c.l.b16 %v2898
        %v2910 = vunpack.c.l.b16 %v2899
        %v2911 = vunpack.c.l.b16 %v2900
        %v2912 = vunpack.c.l.b16 %v2901
        %v2913 = vpack.c.b16 %v2910, %v2909
        %v2914 = vpack.c.b16 %v2912, %v2911
        %v2917 = vunpack.c.l.b16 %v2903
        %v2918 = vunpack.c.l.b16 %v2904
        %v2919 = vpack.c.b16 %v2918, %v2917
        %v2922 = vsel %vm2219, %v2913, 0
        %v2925 = vsel %vm2219, %v2914, 0
        %2927 = vmatprep.subr.bf16.mxu0 0
        %2928 = vmatpush1.bf16.msra.mxu0 0
        %2929 = vmatprep.subr.bf16.mxu0 0
        %2930 = vmatpush1.bf16.msra.mxu0 0
        %2931 = vmatprep.subr.bf16.mxu0 0
        %2932 = vmatpush1.bf16.msra.mxu0 0
        %2933 = vmatprep.subr.bf16.mxu0 0
        %2934 = vmatpush1.bf16.msra.mxu0 0
        %2935 = vmatprep.subr.bf16.mxu0 0
        %2936 = vmatpush1.bf16.msra.mxu0 0
        %2937 = vmatprep.subr.bf16.mxu0 0
        %2938 = vmatpush1.bf16.msra.mxu0 0
        %2939 = vmatprep.subr.bf16.mxu0 0
        %2940 = vmatpush1.bf16.msra.mxu0 0
        %2941 = vmatprep.subr.bf16.mxu0 0
        %2942 = vmatpush1.bf16.msra.mxu0 %v2919
        %2943 = vmatprep.subr.bf16.mxu0 0
        %2944 = vmatpush2.bf16.msra.mxu0 0
        %2945 = vmatprep.subr.bf16.mxu0 0
        %2946 = vmatpush2.bf16.msra.mxu0 0
        %2947 = vmatprep.subr.bf16.mxu0 0
        %2948 = vmatpush2.bf16.msra.mxu0 0
        %2949 = vmatprep.subr.bf16.mxu0 0
        %2950 = vmatpush2.bf16.msra.mxu0 0
        %2951 = vmatprep.subr.bf16.mxu0 0
        %2952 = vmatpush2.bf16.msra.mxu0 0
        %2953 = vmatprep.subr.bf16.mxu0 0
        %2954 = vmatpush2.bf16.msra.mxu0 0
        %2955 = vmatprep.subr.bf16.mxu0 0
        %2956 = vmatpush2.bf16.msra.mxu0 0
        %2957 = vmatprep.subr.bf16.mxu0 0
        %2958 = vmatpush2.bf16.msra.mxu0 0
        %2959 = vmatprep.mubr.bf16.mxu0 0
        %2960 = vmatmul.mubr.bf16.gmra.mxu0 %v2922
        %v2961 = vpop.f32.mrf.mxu0
        %v2962 = vadd.f32 0.0, %v2961
        %v2963 = vpop.f32.mrf.mxu0
        %v2964 = vpop.f32.mrf.mxu0
        %v2965 = vadd.f32 0.0, %v2964
        %v2966 = vpop.f32.mrf.mxu0
        %2967 = vmatprep.mubr.bf16.mxu0 0
        %2968 = vmatmul.mubr.bf16.gmra.mxu0 %v2925
        %v2969 = vpop.f32.mrf.mxu0
        %v2970 = vadd.f32 0.0, %v2969
        %v2971 = vpop.f32.mrf.mxu0
        %v2972 = vpop.f32.mrf.mxu0
        %v2973 = vadd.f32 0.0, %v2972
        %v2974 = vpop.f32.mrf.mxu0
        %2975 = vdwg.mxu0
        %v2976 = vld [vmem:[#allocation4] sm:$0xff]
        %v2977 = vld [vmem:[#allocation4 + $0x8] sm:$0xff]
        %v2978 = vld [vmem:[#allocation4 + $0x10] sm:$0xff]
        %v2979 = vld [vmem:[#allocation4 + $0x18] sm:$0xff]
        %v2980 = vadd.f32 %v2976, %v2962
        %v2981 = vadd.f32 %v2977, %v2965
        %v2982 = vadd.f32 %v2978, %v2970
        %v2983 = vadd.f32 %v2979, %v2973
        %2984 = vst [vmem:[#allocation4] sm:$0xff] %v2980
        %2985 = vst [vmem:[#allocation4 + $0x8] sm:$0xff] %v2981
        %2986 = vst [vmem:[#allocation4 + $0x10] sm:$0xff] %v2982
        %2987 = vst [vmem:[#allocation4 + $0x18] sm:$0xff] %v2983
        %v2988 = vld [vmem:[%s2897] sm:$0xf]
        %v2989 = vld [vmem:[%s2897 + $0x4] sm:$0x1]
        %v2990 = vld [vmem:[%s2897 + $0x8] sm:$0xf]
        %v2991 = vld [vmem:[%s2897 + $0xc] sm:$0x1]
        %v2992 = vld [vmem:[%s2897 + $0x10] sm:$0xf]
        %v2993 = vld [vmem:[%s2897 + $0x14] sm:$0x1]
        %v2994 = vld [vmem:[%s2897 + $0x18] sm:$0xf]
        %v2995 = vld [vmem:[%s2897 + $0x1c] sm:$0x1]
        %v2997 = vshrl.u32 %v2988, 16
        %v2999 = vrot.slane %v2997, 4
        %v3000 = vshll.u32 %v2988, 16
        %v3002 = vrot.slane %v3000, 5
        %v3003 = vor.u32 %v2999, %v3002
        %v3004 = vrot.slane %v3003, 4
        %v3006 = vshll.u32 %v2989, 16
        %v3008 = vrot.slane %v3006, 5
        %v3009 = vsel %vm1029, %v3004, %v3008
        %v3011 = vshrl.u32 %v2990, 16
        %v3013 = vrot.slane %v3011, 4
        %v3014 = vshll.u32 %v2990, 16
        %v3016 = vrot.slane %v3014, 5
        %v3017 = vor.u32 %v3013, %v3016
        %v3018 = vrot.slane %v3017, 4
        %v3020 = vshll.u32 %v2991, 16
        %v3022 = vrot.slane %v3020, 5
        %v3023 = vsel %vm1029, %v3018, %v3022
        %v3025 = vshrl.u32 %v2992, 16
        %v3027 = vrot.slane %v3025, 4
        %v3028 = vshll.u32 %v2992, 16
        %v3030 = vrot.slane %v3028, 5
        %v3031 = vor.u32 %v3027, %v3030
        %v3032 = vrot.slane %v3031, 4
        %v3034 = vshll.u32 %v2993, 16
        %v3036 = vrot.slane %v3034, 5
        %v3037 = vsel %vm1029, %v3032, %v3036
        %v3039 = vshrl.u32 %v2994, 16
        %v3041 = vrot.slane %v3039, 4
        %v3042 = vshll.u32 %v2994, 16
        %v3044 = vrot.slane %v3042, 5
        %v3045 = vor.u32 %v3041, %v3044
        %v3046 = vrot.slane %v3045, 4
        %v3048 = vshll.u32 %v2995, 16
        %v3050 = vrot.slane %v3048, 5
        %v3051 = vsel %vm1029, %v3046, %v3050
        %s3052 = scalar_lea.vmem [#allocation17], 56
        %v3053 = vld [vmem:[%s3052] sm:$0xf]
        %v3054 = vld [vmem:[%s3052 + $0x4] sm:$0xf]
        %v3055 = vunpack.c.l.b16 %v3009
        %v3056 = vunpack.c.l.b16 %v3023
        %v3057 = vunpack.c.l.b16 %v3037
        %v3058 = vunpack.c.l.b16 %v3051
        %v3059 = vpack.c.b16 %v3056, %v3055
        %v3060 = vpack.c.b16 %v3058, %v3057
        %v3063 = vunpack.c.l.b16 %v3053
        %v3064 = vunpack.c.l.b16 %v3054
        %v3065 = vpack.c.b16 %v3064, %v3063
        %v3068 = vsel %vm2219, %v3059, 0
        %v3071 = vsel %vm2219, %v3060, 0
        %3073 = vmatprep.subr.bf16.mxu0 0
        %3074 = vmatpush1.bf16.msra.mxu0 0
        %3075 = vmatprep.subr.bf16.mxu0 0
        %3076 = vmatpush1.bf16.msra.mxu0 0
        %3077 = vmatprep.subr.bf16.mxu0 0
        %3078 = vmatpush1.bf16.msra.mxu0 0
        %3079 = vmatprep.subr.bf16.mxu0 0
        %3080 = vmatpush1.bf16.msra.mxu0 0
        %3081 = vmatprep.subr.bf16.mxu0 0
        %3082 = vmatpush1.bf16.msra.mxu0 0
        %3083 = vmatprep.subr.bf16.mxu0 0
        %3084 = vmatpush1.bf16.msra.mxu0 0
        %3085 = vmatprep.subr.bf16.mxu0 0
        %3086 = vmatpush1.bf16.msra.mxu0 0
        %3087 = vmatprep.subr.bf16.mxu0 0
        %3088 = vmatpush1.bf16.msra.mxu0 %v3065
        %3089 = vmatprep.subr.bf16.mxu0 0
        %3090 = vmatpush2.bf16.msra.mxu0 0
        %3091 = vmatprep.subr.bf16.mxu0 0
        %3092 = vmatpush2.bf16.msra.mxu0 0
        %3093 = vmatprep.subr.bf16.mxu0 0
        %3094 = vmatpush2.bf16.msra.mxu0 0
        %3095 = vmatprep.subr.bf16.mxu0 0
        %3096 = vmatpush2.bf16.msra.mxu0 0
        %3097 = vmatprep.subr.bf16.mxu0 0
        %3098 = vmatpush2.bf16.msra.mxu0 0
        %3099 = vmatprep.subr.bf16.mxu0 0
        %3100 = vmatpush2.bf16.msra.mxu0 0
        %3101 = vmatprep.subr.bf16.mxu0 0
        %3102 = vmatpush2.bf16.msra.mxu0 0
        %3103 = vmatprep.subr.bf16.mxu0 0
        %3104 = vmatpush2.bf16.msra.mxu0 0
        %3105 = vmatprep.mubr.bf16.mxu0 0
        %3106 = vmatmul.mubr.bf16.gmra.mxu0 %v3068
        %v3107 = vpop.f32.mrf.mxu0
        %v3108 = vadd.f32 0.0, %v3107
        %v3109 = vpop.f32.mrf.mxu0
        %v3110 = vpop.f32.mrf.mxu0
        %v3111 = vadd.f32 0.0, %v3110
        %v3112 = vpop.f32.mrf.mxu0
        %3113 = vmatprep.mubr.bf16.mxu0 0
        %3114 = vmatmul.mubr.bf16.gmra.mxu0 %v3071
        %v3115 = vpop.f32.mrf.mxu0
        %v3116 = vadd.f32 0.0, %v3115
        %v3117 = vpop.f32.mrf.mxu0
        %v3118 = vpop.f32.mrf.mxu0
        %v3119 = vadd.f32 0.0, %v3118
        %v3120 = vpop.f32.mrf.mxu0
        %3121 = vdwg.mxu0
        %v3122 = vld [vmem:[#allocation4] sm:$0xff]
        %v3123 = vld [vmem:[#allocation4 + $0x8] sm:$0xff]
        %v3124 = vld [vmem:[#allocation4 + $0x10] sm:$0xff]
        %v3125 = vld [vmem:[#allocation4 + $0x18] sm:$0xff]
        %v3126 = vadd.f32 %v3122, %v3108
        %v3127 = vadd.f32 %v3123, %v3111
        %v3128 = vadd.f32 %v3124, %v3116
        %v3129 = vadd.f32 %v3125, %v3119
        %3130 = vst [vmem:[#allocation4] sm:$0xff] %v3126
        %3131 = vst [vmem:[#allocation4 + $0x8] sm:$0xff] %v3127
        %3132 = vst [vmem:[#allocation4 + $0x10] sm:$0xff] %v3128
        %3133 = vst [vmem:[#allocation4 + $0x18] sm:$0xff] %v3129
        %v3134 = vld [vmem:[%s2897] sm:$0xe]
        %v3135 = vld [vmem:[%s2897 + $0x4] sm:$0x1]
        %v3136 = vld [vmem:[%s2897 + $0x8] sm:$0xe]
        %v3137 = vld [vmem:[%s2897 + $0xc] sm:$0x1]
        %v3138 = vld [vmem:[%s2897 + $0x10] sm:$0xe]
        %v3139 = vld [vmem:[%s2897 + $0x14] sm:$0x1]
        %v3140 = vld [vmem:[%s2897 + $0x18] sm:$0xe]
        %v3141 = vld [vmem:[%s2897 + $0x1c] sm:$0x1]
        %v3150 = vrot.slane %v3134, 5
        %v3151 = vrot.slane %v3150, 4
        %v3152 = vrot.slane %v3135, 5
        %v3153 = vsel %vm1194, %v3151, %v3152
        %v3154 = vrot.slane %v3136, 5
        %v3155 = vrot.slane %v3154, 4
        %v3156 = vrot.slane %v3137, 5
        %v3157 = vsel %vm1194, %v3155, %v3156
        %v3158 = vrot.slane %v3138, 5
        %v3159 = vrot.slane %v3158, 4
        %v3160 = vrot.slane %v3139, 5
        %v3161 = vsel %vm1194, %v3159, %v3160
        %v3162 = vrot.slane %v3140, 5
        %v3163 = vrot.slane %v3162, 4
        %v3164 = vrot.slane %v3141, 5
        %v3165 = vsel %vm1194, %v3163, %v3164
        %s3166 = scalar_lea.vmem [#allocation17], 64
        %v3167 = vld [vmem:[%s3166] sm:$0xf]
        %v3168 = vld [vmem:[%s3166 + $0x4] sm:$0xf]
        %v3169 = vunpack.c.l.b16 %v3153
        %v3170 = vunpack.c.l.b16 %v3157
        %v3171 = vunpack.c.l.b16 %v3161
        %v3172 = vunpack.c.l.b16 %v3165
        %v3173 = vpack.c.b16 %v3170, %v3169
        %v3174 = vpack.c.b16 %v3172, %v3171
        %v3177 = vunpack.c.l.b16 %v3167
        %v3178 = vunpack.c.l.b16 %v3168
        %v3179 = vpack.c.b16 %v3178, %v3177
        %v3182 = vsel %vm2219, %v3173, 0
        %v3185 = vsel %vm2219, %v3174, 0
        %3187 = vmatprep.subr.bf16.mxu0 0
        %3188 = vmatpush1.bf16.msra.mxu0 0
        %3189 = vmatprep.subr.bf16.mxu0 0
        %3190 = vmatpush1.bf16.msra.mxu0 0
        %3191 = vmatprep.subr.bf16.mxu0 0
        %3192 = vmatpush1.bf16.msra.mxu0 0
        %3193 = vmatprep.subr.bf16.mxu0 0
        %3194 = vmatpush1.bf16.msra.mxu0 0
        %3195 = vmatprep.subr.bf16.mxu0 0
        %3196 = vmatpush1.bf16.msra.mxu0 0
        %3197 = vmatprep.subr.bf16.mxu0 0
        %3198 = vmatpush1.bf16.msra.mxu0 0
        %3199 = vmatprep.subr.bf16.mxu0 0
        %3200 = vmatpush1.bf16.msra.mxu0 0
        %3201 = vmatprep.subr.bf16.mxu0 0
        %3202 = vmatpush1.bf16.msra.mxu0 %v3179
        %3203 = vmatprep.subr.bf16.mxu0 0
        %3204 = vmatpush2.bf16.msra.mxu0 0
        %3205 = vmatprep.subr.bf16.mxu0 0
        %3206 = vmatpush2.bf16.msra.mxu0 0
        %3207 = vmatprep.subr.bf16.mxu0 0
        %3208 = vmatpush2.bf16.msra.mxu0 0
        %3209 = vmatprep.subr.bf16.mxu0 0
        %3210 = vmatpush2.bf16.msra.mxu0 0
        %3211 = vmatprep.subr.bf16.mxu0 0
        %3212 = vmatpush2.bf16.msra.mxu0 0
        %3213 = vmatprep.subr.bf16.mxu0 0
        %3214 = vmatpush2.bf16.msra.mxu0 0
        %3215 = vmatprep.subr.bf16.mxu0 0
        %3216 = vmatpush2.bf16.msra.mxu0 0
        %3217 = vmatprep.subr.bf16.mxu0 0
        %3218 = vmatpush2.bf16.msra.mxu0 0
        %3219 = vmatprep.mubr.bf16.mxu0 0
        %3220 = vmatmul.mubr.bf16.gmra.mxu0 %v3182
        %v3221 = vpop.f32.mrf.mxu0
        %v3222 = vadd.f32 0.0, %v3221
        %v3223 = vpop.f32.mrf.mxu0
        %v3224 = vpop.f32.mrf.mxu0
        %v3225 = vadd.f32 0.0, %v3224
        %v3226 = vpop.f32.mrf.mxu0
        %3227 = vmatprep.mubr.bf16.mxu0 0
        %3228 = vmatmul.mubr.bf16.gmra.mxu0 %v3185
        %v3229 = vpop.f32.mrf.mxu0
        %v3230 = vadd.f32 0.0, %v3229
        %v3231 = vpop.f32.mrf.mxu0
        %v3232 = vpop.f32.mrf.mxu0
        %v3233 = vadd.f32 0.0, %v3232
        %v3234 = vpop.f32.mrf.mxu0
        %3235 = vdwg.mxu0
        %v3236 = vld [vmem:[#allocation4] sm:$0xff]
        %v3237 = vld [vmem:[#allocation4 + $0x8] sm:$0xff]
        %v3238 = vld [vmem:[#allocation4 + $0x10] sm:$0xff]
        %v3239 = vld [vmem:[#allocation4 + $0x18] sm:$0xff]
        %v3240 = vadd.f32 %v3236, %v3222
        %v3241 = vadd.f32 %v3237, %v3225
        %v3242 = vadd.f32 %v3238, %v3230
        %v3243 = vadd.f32 %v3239, %v3233
        %3244 = vst [vmem:[#allocation4] sm:$0xff] %v3240
        %3245 = vst [vmem:[#allocation4 + $0x8] sm:$0xff] %v3241
        %3246 = vst [vmem:[#allocation4 + $0x10] sm:$0xff] %v3242
        %3247 = vst [vmem:[#allocation4 + $0x18] sm:$0xff] %v3243
        %v3248 = vld [vmem:[#allocation4] sm:$0xff]
        %v3249 = vld [vmem:[#allocation4 + $0x8] sm:$0xff]
        %v3250 = vld [vmem:[#allocation4 + $0x10] sm:$0xff]
        %v3251 = vld [vmem:[#allocation4 + $0x18] sm:$0xff]
        %v3252 = vld [vmem:[%s740] sm:$0x1]
        %v3254 = vlaneseq
        %v3255 = vshrl.u32 %v3254, 7
        %v3256 = vsub.s32 0, %v3255
        %v3257 = vrot.slane %v3252, %v3256
        %v3259 = vmul.f32 %v3248, %v3257
        %v3260 = vmul.f32 %v3249, %v3257
        %v3261 = vmul.f32 %v3250, %v3257
        %v3262 = vmul.f32 %v3251, %v3257
        %v3263 = vld [vmem:[%s743] sm:$0x1]
        %v3265 = vlaneseq
        %v3266 = vshrl.u32 %v3265, 7
        %v3267 = vsub.s32 0, %v3266
        %v3268 = vrot.slane %v3263, %v3267
        %v3270 = vadd.f32 %v3259, %v3268
        %v3271 = vadd.f32 %v3260, %v3268
        %v3272 = vadd.f32 %v3261, %v3268
        %v3273 = vadd.f32 %v3262, %v3268
        %v3274 = vmax.f32 %v3270, 0.0
        %v3275 = vmax.f32 %v3271, 0.0
        %v3276 = vmax.f32 %v3272, 0.0
        %v3277 = vmax.f32 %v3273, 0.0
        %v3278 = vpack.c.bf16 %v3274, %v3274
        %v3279 = vpack.c.bf16 %v3275, %v3275
        %v3280 = vpack.c.bf16 %v3276, %v3276
        %v3281 = vpack.c.bf16 %v3277, %v3277
        %3282 = vst [vmem:[%s719] sm:$0xf] %v3278
        %3283 = vst [vmem:[%s719 + $0x4] sm:$0xf] %v3279
        %3284 = vst [vmem:[%s719 + $0x8] sm:$0xf] %v3280
        %3285 = vst [vmem:[%s719 + $0xc] sm:$0xf] %v3281
        %s3286 = sand.u32 %s372, 1
        %s3287 = scalar_lea.sflag [#allocation7], %s3286
        %s3288 = sand.u32 %s372, 1
        %s3289 = smul.addr %s3288, 16
        %s3290 = scalar_lea.vmem [#allocation19], %s3289
        // Predicated region
        $region93: #{tpu_custom_call.1} parent=59 // pred_check
          %p3291 = pneg %p382
        $region94: #{tpu_custom_call.1} parent=59 // pred_check_branch
          %3293 = sbr.rel (%p3291) target = $region96
        $region95: #{tpu_custom_call.1} parent=59 // pred_region
          %s3294 = smul.u32 4, %s44
          %s3296 = ssub.s32 256, 256
          %3297 = vsyncadd %s3287, %s3296
          %s3298 = sadd.s32 %s42, %s3294
          %s3299 = smul.addr %s43, 16
          %s3300 = sadd.s32 %s3298, %s3299
          %s3301 = smul.addr %s3300, 64
          %s3302 = scalar_lea.hbm %s10, %s3301
          %s3303 = sshll.u32 %s3290, 4
          %s3304 = int_to_ptr.vmem [resolvable:$true] %s3303
          %3309 = dma.vmem_to_hbm [thread:$0]  %s3304, 256, %s3302, %s3287, 64, 64, 4
        $region96: #{tpu_custom_call.1} parent=59 // pred_fallthru
          _
      $region60: #{tpu_custom_call.1} parent=5 // pred_fallthru
        _
      %p3310 = scmp.le.s32.totalorder 2, %s32
      // Predicated region
      $region97: #{tpu_custom_call.1} parent=5 // pred_check
        %p3311 = pneg %p3310
      $region98: #{tpu_custom_call.1} parent=5 // pred_check_branch
        %3313 = sbr.rel (%p3311) target = $region100
      $region99: #{tpu_custom_call.1} parent=5 // pred_region
        %s3314 = ssub.s32 %s32, 2
        // Predicated region
        $region101: #{tpu_custom_call.1} parent=99 // pred_check
          %p3315 = pneg %p388
        $region102: #{tpu_custom_call.1} parent=99 // pred_check_branch
          %3317 = sbr.rel (%p3315) target = $region104
        $region103: #{tpu_custom_call.1} parent=99 // pred_region
          %s3318 = sand.u32 %s373, 1
          %s3319 = scalar_lea.sflag [#allocation7], %s3318
          %s3320 = sand.u32 %s373, 1
          %s3321 = smul.addr %s3320, 16
          %s3322 = scalar_lea.vmem [#allocation19], %s3321
          %3323 = dma.done %s3319, 256
        $region104: #{tpu_custom_call.1} parent=99 // pred_fallthru
          _
      $region100: #{tpu_custom_call.1} parent=5 // pred_fallthru
        _
    $region6: #{tpu_custom_call.1} parent=1 // loop_footer
      %s36 = sadd.s32 1, %s32
    $region7: #{tpu_custom_call.1} parent=1 // loop_footer_branch
      %31 = sbr.rel target = $region3
    $region8: #{tpu_custom_call.1} parent=1 // loop_exit
      _
    %3324 = vsyncpa [#allocation6], 1
    %s3325 = scalar_lea.sflag [#allocation6], 1
    %3326 = vsyncpa %s3325, 1
    %3327 = vsyncpa [#allocation9], 1
    %s3328 = scalar_lea.sflag [#allocation9], 1
    %3329 = vsyncpa %s3328, 1
    %3330 = vsyncpa [#allocation12], 1
    %s3331 = scalar_lea.sflag [#allocation12], 1
    %3332 = vsyncpa %s3331, 1
    %3333 = vsyncpa [#allocation15], 1
    %s3334 = scalar_lea.sflag [#allocation15], 1
    %3335 = vsyncpa %s3334, 1
    %3336 = vsyncpa [#allocation18], 1
    %3337 = vsyncpa [#allocation7], 1
    %s3338 = scalar_lea.sflag [#allocation7], 1
    %3339 = vsyncpa %s3338, 1

</llo_original>
